<compile_context>
chip_gen: v7x
topology: tpu7x:2x2x1
jax: 0.10.0
libtpu: 0.0.40
codegen_flags: <defaults>
</compile_context>

<pallas_src>
import math

import jax
import jax.numpy as jnp
from jax.experimental import pallas as pl
from jax.experimental.pallas import tpu as pltpu


def _round_up(n, m):
    return ((n + m - 1) // m) * m


# -----------------------------------------------------------------------------
# Fused kernel: 2-layer bidirectional LSTM + linear head + log_softmax(dim=1).
# Everything (inputs, weights, per-layer hidden sequences, h/c state) is VMEM-resident.
# -----------------------------------------------------------------------------
def _fused_bilstm_tagger_kernel(
        x_ref,
        w_ih_l0f, w_hh_l0f, b_l0f,
        w_ih_l0b, w_hh_l0b, b_l0b,
        w_ihf_l1f, w_ihb_l1f, w_hh_l1f, b_l1f,
        w_ihf_l1b, w_ihb_l1b, w_hh_l1b, b_l1b,
        w_out_f, w_out_b, b_out,
        out_ref,
        g_scr, y0f_scr, y0b_scr, y1f_scr, y1b_scr):
    L, B, E = x_ref.shape
    Hp = y0f_scr.shape[-1]          # per-gate width, padded to a multiple of 128 lanes
    T = w_out_f.shape[-1]

    # Flat (L*B, E) view of the whole input, cast once to bf16 for the MXU.
    x2d = x_ref[...].reshape(L * B, E).astype(jnp.bfloat16)

    # ---- input projections, hoisted out of the serial loop (one big MXU matmul each) ----
    def project_l0(w_ref, b_ref):
        g_scr[...] = (jnp.dot(x2d, w_ref[...], preferred_element_type=jnp.float32)
                      + b_ref[...]).reshape(L, B, 4 * Hp)

    def project_l1(yf2d, yb2d, wf_ref, wb_ref, b_ref):
        # Layer-1 input = [fwd ; bwd] of layer-0; concat avoided by splitting W_ih.
        g_scr[...] = (jnp.dot(yf2d, wf_ref[...], preferred_element_type=jnp.float32)
                      + jnp.dot(yb2d, wb_ref[...], preferred_element_type=jnp.float32)
                      + b_ref[...]).reshape(L, B, 4 * Hp)

    # ---- serial recurrence over time (only the small h @ W_hh matmul + gate math) ----
    def recur(w_hh_ref, y_ref, reverse):
        w_hh = w_hh_ref[...]                                    # (Hp, 4*Hp) bf16

        def body(t, carry):
            h, c = carry                                        # (B, Hp) f32
            idx = (L - 1 - t) if reverse else t
            gates = g_scr[idx] + jnp.dot(h.astype(jnp.bfloat16), w_hh,
                                         preferred_element_type=jnp.float32)
            # PyTorch gate order i, f, g, o; slices are 128-lane aligned (gate width = Hp).
            i = jax.nn.sigmoid(gates[:, 0 * Hp:1 * Hp])
            f = jax.nn.sigmoid(gates[:, 1 * Hp:2 * Hp])
            g = jnp.tanh(gates[:, 2 * Hp:3 * Hp])
            o = jax.nn.sigmoid(gates[:, 3 * Hp:4 * Hp])
            c = f * c + i * g
            h = o * jnp.tanh(c)
            y_ref[idx] = h
            return h, c

        zero = jnp.zeros((B, Hp), jnp.float32)
        jax.lax.fori_loop(0, L, body, (zero, zero))

    # ---------------- layer 0 ----------------
    project_l0(w_ih_l0f, b_l0f)
    recur(w_hh_l0f, y0f_scr, reverse=False)
    project_l0(w_ih_l0b, b_l0b)
    recur(w_hh_l0b, y0b_scr, reverse=True)

    # ---------------- layer 1 (inference: inter-layer dropout disabled) ----------------
    y0f2d = y0f_scr[...].reshape(L * B, Hp).astype(jnp.bfloat16)
    y0b2d = y0b_scr[...].reshape(L * B, Hp).astype(jnp.bfloat16)
    project_l1(y0f2d, y0b2d, w_ihf_l1f, w_ihb_l1f, b_l1f)
    recur(w_hh_l1f, y1f_scr, reverse=False)
    project_l1(y0f2d, y0b2d, w_ihf_l1b, w_ihb_l1b, b_l1b)
    recur(w_hh_l1b, y1b_scr, reverse=True)

    # ---------------- linear head + log_softmax over the BATCH axis (dim=1) ----------------
    y1f2d = y1f_scr[...].reshape(L * B, Hp).astype(jnp.bfloat16)
    y1b2d = y1b_scr[...].reshape(L * B, Hp).astype(jnp.bfloat16)
    logits = (jnp.dot(y1f2d, w_out_f[...], preferred_element_type=jnp.float32)
              + jnp.dot(y1b2d, w_out_b[...], preferred_element_type=jnp.float32)
              + b_out[...]).reshape(L, B, T)
    m = jnp.max(logits, axis=1, keepdims=True)
    z = logits - m
    lse = jnp.log(jnp.sum(jnp.exp(z), axis=1, keepdims=True))
    out_ref[...] = (z - lse).astype(out_ref.dtype)


# -----------------------------------------------------------------------------
# Wrapper
# -----------------------------------------------------------------------------
@jax.jit
def lstm_tagger_forward(x, packed_args):
    """x: (L, B, E) f32; packed_args: tuple from pack_params(). Returns (L, B, T) f32."""
    L, B, _ = x.shape
    Hp = packed_args[1].shape[0]      # layer-0 fwd W_hh: (Hp, 4*Hp)
    T = packed_args[-1].shape[1]      # b_out: (1, T)
    flat = (x,) + tuple(packed_args)
    return pl.pallas_call(
        _fused_bilstm_tagger_kernel,
        out_shape=jax.ShapeDtypeStruct((L, B, T), jnp.float32),
        in_specs=[pl.BlockSpec(memory_space=pltpu.MemorySpace.VMEM)] * len(flat),
        out_specs=pl.BlockSpec(memory_space=pltpu.MemorySpace.VMEM),
        scratch_shapes=[
            pltpu.VMEM((L, B, 4 * Hp), jnp.float32),   # pre-activation gates (reused 4x)
            pltpu.VMEM((L, B, Hp), jnp.float32),       # layer-0 fwd hidden sequence
            pltpu.VMEM((L, B, Hp), jnp.float32),       # layer-0 bwd hidden sequence
            pltpu.VMEM((L, B, Hp), jnp.float32),       # layer-1 fwd hidden sequence
            pltpu.VMEM((L, B, Hp), jnp.float32),       # layer-1 bwd hidden sequence
        ],
        compiler_params=pltpu.CompilerParams(vmem_limit_bytes=32 * 1024 * 1024),
    )(*flat)


# -----------------------------------------------------------------------------
# Parameter init (PyTorch-style uniform(-1/sqrt(H), 1/sqrt(H)), PyTorch layouts)
# and packing into the kernel layout (transposed, gate-padded to 128 lanes, bf16 weights).
# -----------------------------------------------------------------------------
def init_raw_params(key, embedding_dim, hidden_dim, tagset_size, num_layers=2):
    H = hidden_dim
    k = 1.0 / math.sqrt(H)
    layers = []
    for layer in range(num_layers):
        in_dim = embedding_dim if layer == 0 else 2 * H
        lp = {}
        for d in ("fwd", "bwd"):
            key, k1, k2, k3, k4 = jax.random.split(key, 5)
            lp[d] = dict(
                w_ih=jax.random.uniform(k1, (4 * H, in_dim), jnp.float32, -k, k),
                w_hh=jax.random.uniform(k2, (4 * H, H), jnp.float32, -k, k),
                b_ih=jax.random.uniform(k3, (4 * H,), jnp.float32, -k, k),
                b_hh=jax.random.uniform(k4, (4 * H,), jnp.float32, -k, k),
            )
        layers.append(lp)
    key, k1, k2 = jax.random.split(key, 3)
    kb = 1.0 / math.sqrt(2 * H)
    w_out = jax.random.uniform(k1, (tagset_size, 2 * H), jnp.float32, -kb, kb)
    b_out = jax.random.uniform(k2, (tagset_size,), jnp.float32, -kb, kb)
    return dict(layers=layers, w_out=w_out, b_out=b_out, hidden_dim=H)


def pack_params(raw):
    H = raw["hidden_dim"]
    Hp = max(128, _round_up(H, 128))   # per-gate lane width, 128-aligned

    def gate_pad_cols(w_t):
        # w_t: (in_dim, 4H) with gate blocks [i|f|g|o] of width H -> (in_dim, 4*Hp), zero-padded.
        out = jnp.zeros((w_t.shape[0], 4 * Hp), w_t.dtype)
        for g in range(4):
            out = out.at[:, g * Hp:g * Hp + H].set(w_t[:, g * H:(g + 1) * H])
        return out

    def pad_rows(w, rows_p):
        return jnp.zeros((rows_p, w.shape[1]), w.dtype).at[:w.shape[0], :].set(w)

    assert len(raw["layers"]) == 2, "kernel is specialized to num_layers=2 (matches the module)"
    l0, l1 = raw["layers"]
    args = []
    # ---- layer 0: per direction (W_ih (E,4Hp) bf16, W_hh (Hp,4Hp) bf16, b (1,4Hp) f32) ----
    for d in ("fwd", "bwd"):
        p = l0[d]
        args.append(gate_pad_cols(p["w_ih"].T).astype(jnp.bfloat16))
        args.append(pad_rows(gate_pad_cols(p["w_hh"].T), Hp).astype(jnp.bfloat16))
        args.append(gate_pad_cols((p["b_ih"] + p["b_hh"])[None, :]))
    # ---- layer 1: per direction (W_ih fwd-half, W_ih bwd-half, W_hh, b) ----
    for d in ("fwd", "bwd"):
        p = l1[d]
        w_ih_t = gate_pad_cols(p["w_ih"].T)                     # (2H, 4Hp)
        args.append(pad_rows(w_ih_t[:H], Hp).astype(jnp.bfloat16))
        args.append(pad_rows(w_ih_t[H:], Hp).astype(jnp.bfloat16))
        args.append(pad_rows(gate_pad_cols(p["w_hh"].T), Hp).astype(jnp.bfloat16))
        args.append(gate_pad_cols((p["b_ih"] + p["b_hh"])[None, :]))
    # ---- head: W_out split into fwd/bwd halves (Hp,T) bf16, b_out (1,T) f32 ----
    w_out_t = raw["w_out"].T                                    # (2H, T)
    args.append(pad_rows(w_out_t[:H], Hp).astype(jnp.bfloat16))
    args.append(pad_rows(w_out_t[H:], Hp).astype(jnp.bfloat16))
    args.append(raw["b_out"][None, :].astype(jnp.float32))
    return tuple(args)


# -----------------------------------------------------------------------------
# Pure-JAX reference (independent of the kernel packing) for a silent correctness check.
# matmul_dtype=bfloat16 reproduces the kernel's MXU numerics; float32 is the exact module math.
# -----------------------------------------------------------------------------
def _ref_lstm_dir(x, p, reverse, mm):
    L, B, _ = x.shape
    H = p["w_hh"].shape[1]
    w_ih_t, w_hh_t = p["w_ih"].T, p["w_hh"].T
    b = (p["b_ih"] + p["b_hh"])[None, :]
    xs = x[::-1] if reverse else x

    def step(carry, x_t):
        h, c = carry
        gates = mm(x_t, w_ih_t) + mm(h, w_hh_t) + b
        i = jax.nn.sigmoid(gates[:, :H])
        f = jax.nn.sigmoid(gates[:, H:2 * H])
        g = jnp.tanh(gates[:, 2 * H:3 * H])
        o = jax.nn.sigmoid(gates[:, 3 * H:])
        c = f * c + i * g
        h = o * jnp.tanh(c)
        return (h, c), h

    init = (jnp.zeros((B, H), jnp.float32), jnp.zeros((B, H), jnp.float32))
    _, hs = jax.lax.scan(step, init, xs)
    return hs[::-1] if reverse else hs


def ref_forward(x, raw, matmul_dtype=jnp.float32):
    def mm(a, b):
        return jnp.dot(a.astype(matmul_dtype), b.astype(matmul_dtype),
                       preferred_element_type=jnp.float32)

    h = x
    for layer in raw["layers"]:
        fwd = _ref_lstm_dir(h, layer["fwd"], False, mm)
        bwd = _ref_lstm_dir(h, layer["bwd"], True, mm)
        h = jnp.concatenate([fwd, bwd], axis=-1)
    logits = mm(h, raw["w_out"].T) + raw["b_out"][None, None, :]
    return jax.nn.log_softmax(logits, axis=1)       # dim=1 == batch axis, as in the module


if __name__ == "__main__":
    seq_len, batch = 16, 8              # batch = 8 -> full f32 sublane occupancy
    embedding_dim, hidden_dim, tagset_size = 16, 32, 8

    key = jax.random.PRNGKey(0)
    key, xkey = jax.random.split(key)
    x = jax.random.normal(xkey, (seq_len, batch, embedding_dim), jnp.float32)

    raw = init_raw_params(key, embedding_dim, hidden_dim, tagset_size)
    packed = pack_params(raw)

    out = jax.block_until_ready(lstm_tagger_forward(x, packed))
    ref_matched = jax.block_until_ready(ref_forward(x, raw, matmul_dtype=jnp.bfloat16))
    ref_f32 = jax.block_until_ready(ref_forward(x, raw, matmul_dtype=jnp.float32))

    assert out.shape == (seq_len, batch, tagset_size)
    # Strict check against a reference using the same bf16-input / f32-accumulate matmuls.
    assert jnp.allclose(out, ref_matched, atol=2e-3, rtol=2e-3)
    # Looser check against full-f32 math (difference = bf16 weight/activation quantization).
    assert jnp.allclose(out, ref_f32, atol=2e-2, rtol=2e-2)
    print("KERNEL_OK")
</pallas_src>

<mosaic_0001>
module attributes {stable_mosaic.version = 11 : i64} {
  func.func @_fused_bilstm_tagger_kernel(%arg0: memref<16x8x16xf32, #tpu.memory_space<vmem>>, %arg1: memref<16x512xbf16, #tpu.memory_space<vmem>>, %arg2: memref<128x512xbf16, #tpu.memory_space<vmem>>, %arg3: memref<1x512xf32, #tpu.memory_space<vmem>>, %arg4: memref<16x512xbf16, #tpu.memory_space<vmem>>, %arg5: memref<128x512xbf16, #tpu.memory_space<vmem>>, %arg6: memref<1x512xf32, #tpu.memory_space<vmem>>, %arg7: memref<128x512xbf16, #tpu.memory_space<vmem>>, %arg8: memref<128x512xbf16, #tpu.memory_space<vmem>>, %arg9: memref<128x512xbf16, #tpu.memory_space<vmem>>, %arg10: memref<1x512xf32, #tpu.memory_space<vmem>>, %arg11: memref<128x512xbf16, #tpu.memory_space<vmem>>, %arg12: memref<128x512xbf16, #tpu.memory_space<vmem>>, %arg13: memref<128x512xbf16, #tpu.memory_space<vmem>>, %arg14: memref<1x512xf32, #tpu.memory_space<vmem>>, %arg15: memref<128x8xbf16, #tpu.memory_space<vmem>>, %arg16: memref<128x8xbf16, #tpu.memory_space<vmem>>, %arg17: memref<1x8xf32, #tpu.memory_space<vmem>>, %arg18: memref<16x8x8xf32, #tpu.memory_space<vmem>>, %arg19: memref<16x8x512xf32, #tpu.memory_space<vmem>>, %arg20: memref<16x8x128xf32, #tpu.memory_space<vmem>>, %arg21: memref<16x8x128xf32, #tpu.memory_space<vmem>>, %arg22: memref<16x8x128xf32, #tpu.memory_space<vmem>>, %arg23: memref<16x8x128xf32, #tpu.memory_space<vmem>>) attributes {dimension_semantics = [], scalar_prefetch = 0 : i64, scratch_operands = 5 : i64, tpu.core_type = #tpu.core_type<tc>} {
    %c0 = arith.constant 0 : index
    %c0_0 = arith.constant 0 : index
    %c0_1 = arith.constant 0 : index
    %0 = vector.load %arg0[%c0, %c0_0, %c0_1] : memref<16x8x16xf32, #tpu.memory_space<vmem>>, vector<16x8x16xf32>
    %1 = vector.shape_cast %0 : vector<16x8x16xf32> to vector<128x16xf32>
    %2 = arith.truncf %1 : vector<128x16xf32> to vector<128x16xbf16>
    %c0_2 = arith.constant 0 : index
    %c0_3 = arith.constant 0 : index
    %3 = vector.load %arg1[%c0_2, %c0_3] : memref<16x512xbf16, #tpu.memory_space<vmem>>, vector<16x512xbf16>
    %cst = arith.constant dense<0.000000e+00> : vector<128x512xf32>
    %4 = tpu.matmul %2, %3, %cst {dimension_numbers = #tpu.dot_dimension_numbers<[1], [0], [0], [1], [0, 0, 1, 1], [], []>} : vector<128x16xbf16>, vector<16x512xbf16>, vector<128x512xf32> -> vector<128x512xf32>
    %c0_4 = arith.constant 0 : index
    %c0_5 = arith.constant 0 : index
    %5 = vector.load %arg3[%c0_4, %c0_5] : memref<1x512xf32, #tpu.memory_space<vmem>>, vector<1x512xf32>
    %6 = vector.broadcast %5 : vector<1x512xf32> to vector<128x512xf32>
    %7 = arith.addf %4, %6 : vector<128x512xf32>
    %8 = vector.shape_cast %7 : vector<128x512xf32> to vector<16x8x512xf32>
    %c0_6 = arith.constant 0 : index
    %c0_7 = arith.constant 0 : index
    %c0_8 = arith.constant 0 : index
    %9 = vector.load %arg19[%c0_6, %c0_7, %c0_8] : memref<16x8x512xf32, #tpu.memory_space<vmem>>, vector<16x8x512xf32>
    tpu.vector_store %arg19[%c0_6, %c0_7, %c0_8], %8 {strides = array<i32>} : memref<16x8x512xf32, #tpu.memory_space<vmem>>, vector<16x8x512xf32>,
    %c0_9 = arith.constant 0 : index
    %c0_10 = arith.constant 0 : index
    %10 = vector.load %arg2[%c0_9, %c0_10] : memref<128x512xbf16, #tpu.memory_space<vmem>>, vector<128x512xbf16>
    %cst_11 = arith.constant 0.000000e+00 : f32
    %11 = vector.broadcast %cst_11 : f32 to vector<8x128xf32>
    %c0_i32 = arith.constant 0 : i32
    %c16_i32 = arith.constant 16 : i32
    %12 = arith.addi %c0_i32, %c16_i32 : i32
    %c1_i32 = arith.constant 1 : i32
    %13:2 = scf.for %arg24 = %c0_i32 to %12 step %c1_i32 iter_args(%arg25 = %11, %arg26 = %11) -> (vector<8x128xf32>, vector<8x128xf32>)  : i32 {
      %85 = arith.index_cast %arg24 : i32 to index
      %c0_89 = arith.constant 0 : index
      %c0_90 = arith.constant 0 : index
      %86 = vector.load %arg19[%85, %c0_89, %c0_90] : memref<16x8x512xf32, #tpu.memory_space<vmem>>, vector<1x8x512xf32>
      %87 = vector.shape_cast %86 : vector<1x8x512xf32> to vector<8x512xf32>
      %88 = arith.truncf %arg25 : vector<8x128xf32> to vector<8x128xbf16>
      %cst_91 = arith.constant dense<0.000000e+00> : vector<8x512xf32>
      %89 = tpu.matmul %88, %10, %cst_91 {dimension_numbers = #tpu.dot_dimension_numbers<[1], [0], [0], [1], [0, 0, 1, 1], [], []>} : vector<8x128xbf16>, vector<128x512xbf16>, vector<8x512xf32> -> vector<8x512xf32>
      %90 = arith.addf %87, %89 : vector<8x512xf32>
      %91 = vector.extract_strided_slice %90 {offsets = [0, 0], sizes = [8, 128], strides = [1, 1]} : vector<8x512xf32> to vector<8x128xf32>
      %92 = arith.negf %91 : vector<8x128xf32>
      %93 = math.exp %92 : vector<8x128xf32>
      %cst_92 = arith.constant 1.000000e+00 : f32
      %94 = vector.broadcast %cst_92 : f32 to vector<8x128xf32>
      %95 = arith.addf %94, %93 : vector<8x128xf32>
      %96 = arith.divf %94, %95 : vector<8x128xf32>
      %97 = vector.extract_strided_slice %90 {offsets = [0, 128], sizes = [8, 128], strides = [1, 1]} : vector<8x512xf32> to vector<8x128xf32>
      %98 = arith.negf %97 : vector<8x128xf32>
      %99 = math.exp %98 : vector<8x128xf32>
      %cst_93 = arith.constant 1.000000e+00 : f32
      %100 = vector.broadcast %cst_93 : f32 to vector<8x128xf32>
      %101 = arith.addf %100, %99 : vector<8x128xf32>
      %102 = arith.divf %100, %101 : vector<8x128xf32>
      %103 = vector.extract_strided_slice %90 {offsets = [0, 256], sizes = [8, 128], strides = [1, 1]} : vector<8x512xf32> to vector<8x128xf32>
      %104 = math.tanh %103 : vector<8x128xf32>
      %105 = vector.extract_strided_slice %90 {offsets = [0, 384], sizes = [8, 128], strides = [1, 1]} : vector<8x512xf32> to vector<8x128xf32>
      %106 = arith.negf %105 : vector<8x128xf32>
      %107 = math.exp %106 : vector<8x128xf32>
      %cst_94 = arith.constant 1.000000e+00 : f32
      %108 = vector.broadcast %cst_94 : f32 to vector<8x128xf32>
      %109 = arith.addf %108, %107 : vector<8x128xf32>
      %110 = arith.divf %108, %109 : vector<8x128xf32>
      %111 = arith.mulf %102, %arg26 : vector<8x128xf32>
      %112 = arith.mulf %96, %104 : vector<8x128xf32>
      %113 = arith.addf %111, %112 : vector<8x128xf32>
      %114 = math.tanh %113 : vector<8x128xf32>
      %115 = arith.mulf %110, %114 : vector<8x128xf32>
      %116 = arith.index_cast %arg24 : i32 to index
      %c0_95 = arith.constant 0 : index
      %c0_96 = arith.constant 0 : index
      %117 = vector.load %arg20[%116, %c0_95, %c0_96] : memref<16x8x128xf32, #tpu.memory_space<vmem>>, vector<1x8x128xf32>
      %118 = vector.shape_cast %117 : vector<1x8x128xf32> to vector<8x128xf32>
      %119 = vector.shape_cast %115 : vector<8x128xf32> to vector<1x8x128xf32>
      tpu.vector_store %arg20[%116, %c0_95, %c0_96], %119 {strides = array<i32>} : memref<16x8x128xf32, #tpu.memory_space<vmem>>, vector<1x8x128xf32>,
      scf.yield %115, %113 : vector<8x128xf32>, vector<8x128xf32>
    }
    %c16_i32_12 = arith.constant 16 : i32
    %c0_13 = arith.constant 0 : index
    %c0_14 = arith.constant 0 : index
    %14 = vector.load %arg4[%c0_13, %c0_14] : memref<16x512xbf16, #tpu.memory_space<vmem>>, vector<16x512xbf16>
    %cst_15 = arith.constant dense<0.000000e+00> : vector<128x512xf32>
    %15 = tpu.matmul %2, %14, %cst_15 {dimension_numbers = #tpu.dot_dimension_numbers<[1], [0], [0], [1], [0, 0, 1, 1], [], []>} : vector<128x16xbf16>, vector<16x512xbf16>, vector<128x512xf32> -> vector<128x512xf32>
    %c0_16 = arith.constant 0 : index
    %c0_17 = arith.constant 0 : index
    %16 = vector.load %arg6[%c0_16, %c0_17] : memref<1x512xf32, #tpu.memory_space<vmem>>, vector<1x512xf32>
    %17 = vector.broadcast %16 : vector<1x512xf32> to vector<128x512xf32>
    %18 = arith.addf %15, %17 : vector<128x512xf32>
    %19 = vector.shape_cast %18 : vector<128x512xf32> to vector<16x8x512xf32>
    %c0_18 = arith.constant 0 : index
    %c0_19 = arith.constant 0 : index
    %c0_20 = arith.constant 0 : index
    %20 = vector.load %arg19[%c0_18, %c0_19, %c0_20] : memref<16x8x512xf32, #tpu.memory_space<vmem>>, vector<16x8x512xf32>
    tpu.vector_store %arg19[%c0_18, %c0_19, %c0_20], %19 {strides = array<i32>} : memref<16x8x512xf32, #tpu.memory_space<vmem>>, vector<16x8x512xf32>,
    %c0_21 = arith.constant 0 : index
    %c0_22 = arith.constant 0 : index
    %21 = vector.load %arg5[%c0_21, %c0_22] : memref<128x512xbf16, #tpu.memory_space<vmem>>, vector<128x512xbf16>
    %cst_23 = arith.constant 0.000000e+00 : f32
    %22 = vector.broadcast %cst_23 : f32 to vector<8x128xf32>
    %c0_i32_24 = arith.constant 0 : i32
    %c16_i32_25 = arith.constant 16 : i32
    %23 = arith.addi %c0_i32_24, %c16_i32_25 : i32
    %c1_i32_26 = arith.constant 1 : i32
    %24:2 = scf.for %arg24 = %c0_i32_24 to %23 step %c1_i32_26 iter_args(%arg25 = %22, %arg26 = %22) -> (vector<8x128xf32>, vector<8x128xf32>)  : i32 {
      %c15_i32 = arith.constant 15 : i32
      %85 = arith.subi %c15_i32, %arg24 : i32
      %86 = arith.index_cast %85 : i32 to index
      %c0_89 = arith.constant 0 : index
      %c0_90 = arith.constant 0 : index
      %87 = vector.load %arg19[%86, %c0_89, %c0_90] : memref<16x8x512xf32, #tpu.memory_space<vmem>>, vector<1x8x512xf32>
      %88 = vector.shape_cast %87 : vector<1x8x512xf32> to vector<8x512xf32>
      %89 = arith.truncf %arg25 : vector<8x128xf32> to vector<8x128xbf16>
      %cst_91 = arith.constant dense<0.000000e+00> : vector<8x512xf32>
      %90 = tpu.matmul %89, %21, %cst_91 {dimension_numbers = #tpu.dot_dimension_numbers<[1], [0], [0], [1], [0, 0, 1, 1], [], []>} : vector<8x128xbf16>, vector<128x512xbf16>, vector<8x512xf32> -> vector<8x512xf32>
      %91 = arith.addf %88, %90 : vector<8x512xf32>
      %92 = vector.extract_strided_slice %91 {offsets = [0, 0], sizes = [8, 128], strides = [1, 1]} : vector<8x512xf32> to vector<8x128xf32>
      %93 = arith.negf %92 : vector<8x128xf32>
      %94 = math.exp %93 : vector<8x128xf32>
      %cst_92 = arith.constant 1.000000e+00 : f32
      %95 = vector.broadcast %cst_92 : f32 to vector<8x128xf32>
      %96 = arith.addf %95, %94 : vector<8x128xf32>
      %97 = arith.divf %95, %96 : vector<8x128xf32>
      %98 = vector.extract_strided_slice %91 {offsets = [0, 128], sizes = [8, 128], strides = [1, 1]} : vector<8x512xf32> to vector<8x128xf32>
      %99 = arith.negf %98 : vector<8x128xf32>
      %100 = math.exp %99 : vector<8x128xf32>
      %cst_93 = arith.constant 1.000000e+00 : f32
      %101 = vector.broadcast %cst_93 : f32 to vector<8x128xf32>
      %102 = arith.addf %101, %100 : vector<8x128xf32>
      %103 = arith.divf %101, %102 : vector<8x128xf32>
      %104 = vector.extract_strided_slice %91 {offsets = [0, 256], sizes = [8, 128], strides = [1, 1]} : vector<8x512xf32> to vector<8x128xf32>
      %105 = math.tanh %104 : vector<8x128xf32>
      %106 = vector.extract_strided_slice %91 {offsets = [0, 384], sizes = [8, 128], strides = [1, 1]} : vector<8x512xf32> to vector<8x128xf32>
      %107 = arith.negf %106 : vector<8x128xf32>
      %108 = math.exp %107 : vector<8x128xf32>
      %cst_94 = arith.constant 1.000000e+00 : f32
      %109 = vector.broadcast %cst_94 : f32 to vector<8x128xf32>
      %110 = arith.addf %109, %108 : vector<8x128xf32>
      %111 = arith.divf %109, %110 : vector<8x128xf32>
      %112 = arith.mulf %103, %arg26 : vector<8x128xf32>
      %113 = arith.mulf %97, %105 : vector<8x128xf32>
      %114 = arith.addf %112, %113 : vector<8x128xf32>
      %115 = math.tanh %114 : vector<8x128xf32>
      %116 = arith.mulf %111, %115 : vector<8x128xf32>
      %117 = arith.index_cast %85 : i32 to index
      %c0_95 = arith.constant 0 : index
      %c0_96 = arith.constant 0 : index
      %118 = vector.load %arg21[%117, %c0_95, %c0_96] : memref<16x8x128xf32, #tpu.memory_space<vmem>>, vector<1x8x128xf32>
      %119 = vector.shape_cast %118 : vector<1x8x128xf32> to vector<8x128xf32>
      %120 = vector.shape_cast %116 : vector<8x128xf32> to vector<1x8x128xf32>
      tpu.vector_store %arg21[%117, %c0_95, %c0_96], %120 {strides = array<i32>} : memref<16x8x128xf32, #tpu.memory_space<vmem>>, vector<1x8x128xf32>,
      scf.yield %116, %114 : vector<8x128xf32>, vector<8x128xf32>
    }
    %c16_i32_27 = arith.constant 16 : i32
    %c0_28 = arith.constant 0 : index
    %c0_29 = arith.constant 0 : index
    %c0_30 = arith.constant 0 : index
    %25 = vector.load %arg20[%c0_28, %c0_29, %c0_30] : memref<16x8x128xf32, #tpu.memory_space<vmem>>, vector<16x8x128xf32>
    %26 = vector.shape_cast %25 : vector<16x8x128xf32> to vector<128x128xf32>
    %27 = arith.truncf %26 : vector<128x128xf32> to vector<128x128xbf16>
    %c0_31 = arith.constant 0 : index
    %c0_32 = arith.constant 0 : index
    %c0_33 = arith.constant 0 : index
    %28 = vector.load %arg21[%c0_31, %c0_32, %c0_33] : memref<16x8x128xf32, #tpu.memory_space<vmem>>, vector<16x8x128xf32>
    %29 = vector.shape_cast %28 : vector<16x8x128xf32> to vector<128x128xf32>
    %30 = arith.truncf %29 : vector<128x128xf32> to vector<128x128xbf16>
    %c0_34 = arith.constant 0 : index
    %c0_35 = arith.constant 0 : index
    %31 = vector.load %arg7[%c0_34, %c0_35] : memref<128x512xbf16, #tpu.memory_space<vmem>>, vector<128x512xbf16>
    %cst_36 = arith.constant dense<0.000000e+00> : vector<128x512xf32>
    %32 = tpu.matmul %27, %31, %cst_36 {dimension_numbers = #tpu.dot_dimension_numbers<[1], [0], [0], [1], [0, 0, 1, 1], [], []>} : vector<128x128xbf16>, vector<128x512xbf16>, vector<128x512xf32> -> vector<128x512xf32>
    %c0_37 = arith.constant 0 : index
    %c0_38 = arith.constant 0 : index
    %33 = vector.load %arg8[%c0_37, %c0_38] : memref<128x512xbf16, #tpu.memory_space<vmem>>, vector<128x512xbf16>
    %cst_39 = arith.constant dense<0.000000e+00> : vector<128x512xf32>
    %34 = tpu.matmul %30, %33, %cst_39 {dimension_numbers = #tpu.dot_dimension_numbers<[1], [0], [0], [1], [0, 0, 1, 1], [], []>} : vector<128x128xbf16>, vector<128x512xbf16>, vector<128x512xf32> -> vector<128x512xf32>
    %35 = arith.addf %32, %34 : vector<128x512xf32>
    %c0_40 = arith.constant 0 : index
    %c0_41 = arith.constant 0 : index
    %36 = vector.load %arg10[%c0_40, %c0_41] : memref<1x512xf32, #tpu.memory_space<vmem>>, vector<1x512xf32>
    %37 = vector.broadcast %36 : vector<1x512xf32> to vector<128x512xf32>
    %38 = arith.addf %35, %37 : vector<128x512xf32>
    %39 = vector.shape_cast %38 : vector<128x512xf32> to vector<16x8x512xf32>
    %c0_42 = arith.constant 0 : index
    %c0_43 = arith.constant 0 : index
    %c0_44 = arith.constant 0 : index
    %40 = vector.load %arg19[%c0_42, %c0_43, %c0_44] : memref<16x8x512xf32, #tpu.memory_space<vmem>>, vector<16x8x512xf32>
    tpu.vector_store %arg19[%c0_42, %c0_43, %c0_44], %39 {strides = array<i32>} : memref<16x8x512xf32, #tpu.memory_space<vmem>>, vector<16x8x512xf32>,
    %c0_45 = arith.constant 0 : index
    %c0_46 = arith.constant 0 : index
    %41 = vector.load %arg9[%c0_45, %c0_46] : memref<128x512xbf16, #tpu.memory_space<vmem>>, vector<128x512xbf16>
    %cst_47 = arith.constant 0.000000e+00 : f32
    %42 = vector.broadcast %cst_47 : f32 to vector<8x128xf32>
    %c0_i32_48 = arith.constant 0 : i32
    %c16_i32_49 = arith.constant 16 : i32
    %43 = arith.addi %c0_i32_48, %c16_i32_49 : i32
    %c1_i32_50 = arith.constant 1 : i32
    %44:2 = scf.for %arg24 = %c0_i32_48 to %43 step %c1_i32_50 iter_args(%arg25 = %42, %arg26 = %42) -> (vector<8x128xf32>, vector<8x128xf32>)  : i32 {
      %85 = arith.index_cast %arg24 : i32 to index
      %c0_89 = arith.constant 0 : index
      %c0_90 = arith.constant 0 : index
      %86 = vector.load %arg19[%85, %c0_89, %c0_90] : memref<16x8x512xf32, #tpu.memory_space<vmem>>, vector<1x8x512xf32>
      %87 = vector.shape_cast %86 : vector<1x8x512xf32> to vector<8x512xf32>
      %88 = arith.truncf %arg25 : vector<8x128xf32> to vector<8x128xbf16>
      %cst_91 = arith.constant dense<0.000000e+00> : vector<8x512xf32>
      %89 = tpu.matmul %88, %41, %cst_91 {dimension_numbers = #tpu.dot_dimension_numbers<[1], [0], [0], [1], [0, 0, 1, 1], [], []>} : vector<8x128xbf16>, vector<128x512xbf16>, vector<8x512xf32> -> vector<8x512xf32>
      %90 = arith.addf %87, %89 : vector<8x512xf32>
      %91 = vector.extract_strided_slice %90 {offsets = [0, 0], sizes = [8, 128], strides = [1, 1]} : vector<8x512xf32> to vector<8x128xf32>
      %92 = arith.negf %91 : vector<8x128xf32>
      %93 = math.exp %92 : vector<8x128xf32>
      %cst_92 = arith.constant 1.000000e+00 : f32
      %94 = vector.broadcast %cst_92 : f32 to vector<8x128xf32>
      %95 = arith.addf %94, %93 : vector<8x128xf32>
      %96 = arith.divf %94, %95 : vector<8x128xf32>
      %97 = vector.extract_strided_slice %90 {offsets = [0, 128], sizes = [8, 128], strides = [1, 1]} : vector<8x512xf32> to vector<8x128xf32>
      %98 = arith.negf %97 : vector<8x128xf32>
      %99 = math.exp %98 : vector<8x128xf32>
      %cst_93 = arith.constant 1.000000e+00 : f32
      %100 = vector.broadcast %cst_93 : f32 to vector<8x128xf32>
      %101 = arith.addf %100, %99 : vector<8x128xf32>
      %102 = arith.divf %100, %101 : vector<8x128xf32>
      %103 = vector.extract_strided_slice %90 {offsets = [0, 256], sizes = [8, 128], strides = [1, 1]} : vector<8x512xf32> to vector<8x128xf32>
      %104 = math.tanh %103 : vector<8x128xf32>
      %105 = vector.extract_strided_slice %90 {offsets = [0, 384], sizes = [8, 128], strides = [1, 1]} : vector<8x512xf32> to vector<8x128xf32>
      %106 = arith.negf %105 : vector<8x128xf32>
      %107 = math.exp %106 : vector<8x128xf32>
      %cst_94 = arith.constant 1.000000e+00 : f32
      %108 = vector.broadcast %cst_94 : f32 to vector<8x128xf32>
      %109 = arith.addf %108, %107 : vector<8x128xf32>
      %110 = arith.divf %108, %109 : vector<8x128xf32>
      %111 = arith.mulf %102, %arg26 : vector<8x128xf32>
      %112 = arith.mulf %96, %104 : vector<8x128xf32>
      %113 = arith.addf %111, %112 : vector<8x128xf32>
      %114 = math.tanh %113 : vector<8x128xf32>
      %115 = arith.mulf %110, %114 : vector<8x128xf32>
      %116 = arith.index_cast %arg24 : i32 to index
      %c0_95 = arith.constant 0 : index
      %c0_96 = arith.constant 0 : index
      %117 = vector.load %arg22[%116, %c0_95, %c0_96] : memref<16x8x128xf32, #tpu.memory_space<vmem>>, vector<1x8x128xf32>
      %118 = vector.shape_cast %117 : vector<1x8x128xf32> to vector<8x128xf32>
      %119 = vector.shape_cast %115 : vector<8x128xf32> to vector<1x8x128xf32>
      tpu.vector_store %arg22[%116, %c0_95, %c0_96], %119 {strides = array<i32>} : memref<16x8x128xf32, #tpu.memory_space<vmem>>, vector<1x8x128xf32>,
      scf.yield %115, %113 : vector<8x128xf32>, vector<8x128xf32>
    }
    %c16_i32_51 = arith.constant 16 : i32
    %c0_52 = arith.constant 0 : index
    %c0_53 = arith.constant 0 : index
    %45 = vector.load %arg11[%c0_52, %c0_53] : memref<128x512xbf16, #tpu.memory_space<vmem>>, vector<128x512xbf16>
    %cst_54 = arith.constant dense<0.000000e+00> : vector<128x512xf32>
    %46 = tpu.matmul %27, %45, %cst_54 {dimension_numbers = #tpu.dot_dimension_numbers<[1], [0], [0], [1], [0, 0, 1, 1], [], []>} : vector<128x128xbf16>, vector<128x512xbf16>, vector<128x512xf32> -> vector<128x512xf32>
    %c0_55 = arith.constant 0 : index
    %c0_56 = arith.constant 0 : index
    %47 = vector.load %arg12[%c0_55, %c0_56] : memref<128x512xbf16, #tpu.memory_space<vmem>>, vector<128x512xbf16>
    %cst_57 = arith.constant dense<0.000000e+00> : vector<128x512xf32>
    %48 = tpu.matmul %30, %47, %cst_57 {dimension_numbers = #tpu.dot_dimension_numbers<[1], [0], [0], [1], [0, 0, 1, 1], [], []>} : vector<128x128xbf16>, vector<128x512xbf16>, vector<128x512xf32> -> vector<128x512xf32>
    %49 = arith.addf %46, %48 : vector<128x512xf32>
    %c0_58 = arith.constant 0 : index
    %c0_59 = arith.constant 0 : index
    %50 = vector.load %arg14[%c0_58, %c0_59] : memref<1x512xf32, #tpu.memory_space<vmem>>, vector<1x512xf32>
    %51 = vector.broadcast %50 : vector<1x512xf32> to vector<128x512xf32>
    %52 = arith.addf %49, %51 : vector<128x512xf32>
    %53 = vector.shape_cast %52 : vector<128x512xf32> to vector<16x8x512xf32>
    %c0_60 = arith.constant 0 : index
    %c0_61 = arith.constant 0 : index
    %c0_62 = arith.constant 0 : index
    %54 = vector.load %arg19[%c0_60, %c0_61, %c0_62] : memref<16x8x512xf32, #tpu.memory_space<vmem>>, vector<16x8x512xf32>
    tpu.vector_store %arg19[%c0_60, %c0_61, %c0_62], %53 {strides = array<i32>} : memref<16x8x512xf32, #tpu.memory_space<vmem>>, vector<16x8x512xf32>,
    %c0_63 = arith.constant 0 : index
    %c0_64 = arith.constant 0 : index
    %55 = vector.load %arg13[%c0_63, %c0_64] : memref<128x512xbf16, #tpu.memory_space<vmem>>, vector<128x512xbf16>
    %cst_65 = arith.constant 0.000000e+00 : f32
    %56 = vector.broadcast %cst_65 : f32 to vector<8x128xf32>
    %c0_i32_66 = arith.constant 0 : i32
    %c16_i32_67 = arith.constant 16 : i32
    %57 = arith.addi %c0_i32_66, %c16_i32_67 : i32
    %c1_i32_68 = arith.constant 1 : i32
    %58:2 = scf.for %arg24 = %c0_i32_66 to %57 step %c1_i32_68 iter_args(%arg25 = %56, %arg26 = %56) -> (vector<8x128xf32>, vector<8x128xf32>)  : i32 {
      %c15_i32 = arith.constant 15 : i32
      %85 = arith.subi %c15_i32, %arg24 : i32
      %86 = arith.index_cast %85 : i32 to index
      %c0_89 = arith.constant 0 : index
      %c0_90 = arith.constant 0 : index
      %87 = vector.load %arg19[%86, %c0_89, %c0_90] : memref<16x8x512xf32, #tpu.memory_space<vmem>>, vector<1x8x512xf32>
      %88 = vector.shape_cast %87 : vector<1x8x512xf32> to vector<8x512xf32>
      %89 = arith.truncf %arg25 : vector<8x128xf32> to vector<8x128xbf16>
      %cst_91 = arith.constant dense<0.000000e+00> : vector<8x512xf32>
      %90 = tpu.matmul %89, %55, %cst_91 {dimension_numbers = #tpu.dot_dimension_numbers<[1], [0], [0], [1], [0, 0, 1, 1], [], []>} : vector<8x128xbf16>, vector<128x512xbf16>, vector<8x512xf32> -> vector<8x512xf32>
      %91 = arith.addf %88, %90 : vector<8x512xf32>
      %92 = vector.extract_strided_slice %91 {offsets = [0, 0], sizes = [8, 128], strides = [1, 1]} : vector<8x512xf32> to vector<8x128xf32>
      %93 = arith.negf %92 : vector<8x128xf32>
      %94 = math.exp %93 : vector<8x128xf32>
      %cst_92 = arith.constant 1.000000e+00 : f32
      %95 = vector.broadcast %cst_92 : f32 to vector<8x128xf32>
      %96 = arith.addf %95, %94 : vector<8x128xf32>
      %97 = arith.divf %95, %96 : vector<8x128xf32>
      %98 = vector.extract_strided_slice %91 {offsets = [0, 128], sizes = [8, 128], strides = [1, 1]} : vector<8x512xf32> to vector<8x128xf32>
      %99 = arith.negf %98 : vector<8x128xf32>
      %100 = math.exp %99 : vector<8x128xf32>
      %cst_93 = arith.constant 1.000000e+00 : f32
      %101 = vector.broadcast %cst_93 : f32 to vector<8x128xf32>
      %102 = arith.addf %101, %100 : vector<8x128xf32>
      %103 = arith.divf %101, %102 : vector<8x128xf32>
      %104 = vector.extract_strided_slice %91 {offsets = [0, 256], sizes = [8, 128], strides = [1, 1]} : vector<8x512xf32> to vector<8x128xf32>
      %105 = math.tanh %104 : vector<8x128xf32>
      %106 = vector.extract_strided_slice %91 {offsets = [0, 384], sizes = [8, 128], strides = [1, 1]} : vector<8x512xf32> to vector<8x128xf32>
      %107 = arith.negf %106 : vector<8x128xf32>
      %108 = math.exp %107 : vector<8x128xf32>
      %cst_94 = arith.constant 1.000000e+00 : f32
      %109 = vector.broadcast %cst_94 : f32 to vector<8x128xf32>
      %110 = arith.addf %109, %108 : vector<8x128xf32>
      %111 = arith.divf %109, %110 : vector<8x128xf32>
      %112 = arith.mulf %103, %arg26 : vector<8x128xf32>
      %113 = arith.mulf %97, %105 : vector<8x128xf32>
      %114 = arith.addf %112, %113 : vector<8x128xf32>
      %115 = math.tanh %114 : vector<8x128xf32>
      %116 = arith.mulf %111, %115 : vector<8x128xf32>
      %117 = arith.index_cast %85 : i32 to index
      %c0_95 = arith.constant 0 : index
      %c0_96 = arith.constant 0 : index
      %118 = vector.load %arg23[%117, %c0_95, %c0_96] : memref<16x8x128xf32, #tpu.memory_space<vmem>>, vector<1x8x128xf32>
      %119 = vector.shape_cast %118 : vector<1x8x128xf32> to vector<8x128xf32>
      %120 = vector.shape_cast %116 : vector<8x128xf32> to vector<1x8x128xf32>
      tpu.vector_store %arg23[%117, %c0_95, %c0_96], %120 {strides = array<i32>} : memref<16x8x128xf32, #tpu.memory_space<vmem>>, vector<1x8x128xf32>,
      scf.yield %116, %114 : vector<8x128xf32>, vector<8x128xf32>
    }
    %c16_i32_69 = arith.constant 16 : i32
    %c0_70 = arith.constant 0 : index
    %c0_71 = arith.constant 0 : index
    %c0_72 = arith.constant 0 : index
    %59 = vector.load %arg22[%c0_70, %c0_71, %c0_72] : memref<16x8x128xf32, #tpu.memory_space<vmem>>, vector<16x8x128xf32>
    %60 = vector.shape_cast %59 : vector<16x8x128xf32> to vector<128x128xf32>
    %61 = arith.truncf %60 : vector<128x128xf32> to vector<128x128xbf16>
    %c0_73 = arith.constant 0 : index
    %c0_74 = arith.constant 0 : index
    %c0_75 = arith.constant 0 : index
    %62 = vector.load %arg23[%c0_73, %c0_74, %c0_75] : memref<16x8x128xf32, #tpu.memory_space<vmem>>, vector<16x8x128xf32>
    %63 = vector.shape_cast %62 : vector<16x8x128xf32> to vector<128x128xf32>
    %64 = arith.truncf %63 : vector<128x128xf32> to vector<128x128xbf16>
    %c0_76 = arith.constant 0 : index
    %c0_77 = arith.constant 0 : index
    %65 = vector.load %arg15[%c0_76, %c0_77] : memref<128x8xbf16, #tpu.memory_space<vmem>>, vector<128x8xbf16>
    %cst_78 = arith.constant dense<0.000000e+00> : vector<128x8xf32>
    %66 = tpu.matmul %61, %65, %cst_78 {dimension_numbers = #tpu.dot_dimension_numbers<[1], [0], [0], [1], [0, 0, 1, 1], [], []>} : vector<128x128xbf16>, vector<128x8xbf16>, vector<128x8xf32> -> vector<128x8xf32>
    %c0_79 = arith.constant 0 : index
    %c0_80 = arith.constant 0 : index
    %67 = vector.load %arg16[%c0_79, %c0_80] : memref<128x8xbf16, #tpu.memory_space<vmem>>, vector<128x8xbf16>
    %cst_81 = arith.constant dense<0.000000e+00> : vector<128x8xf32>
    %68 = tpu.matmul %64, %67, %cst_81 {dimension_numbers = #tpu.dot_dimension_numbers<[1], [0], [0], [1], [0, 0, 1, 1], [], []>} : vector<128x128xbf16>, vector<128x8xbf16>, vector<128x8xf32> -> vector<128x8xf32>
    %69 = arith.addf %66, %68 : vector<128x8xf32>
    %c0_82 = arith.constant 0 : index
    %c0_83 = arith.constant 0 : index
    %70 = vector.load %arg17[%c0_82, %c0_83] : memref<1x8xf32, #tpu.memory_space<vmem>>, vector<1x8xf32>
    %71 = vector.broadcast %70 : vector<1x8xf32> to vector<128x8xf32>
    %72 = arith.addf %69, %71 : vector<128x8xf32>
    %73 = vector.shape_cast %72 : vector<128x8xf32> to vector<16x8x8xf32>
    %cst_84 = arith.constant dense<0xFF800000> : vector<16x8xf32>
    %74 = vector.multi_reduction <maximumf>, %73, %cst_84 [1] : vector<16x8x8xf32> to vector<16x8xf32>
    %75 = vector.shape_cast %74 : vector<16x8xf32> to vector<16x1x8xf32>
    %76 = vector.broadcast %75 : vector<16x1x8xf32> to vector<16x8x8xf32>
    %77 = arith.subf %73, %76 : vector<16x8x8xf32>
    %78 = math.exp %77 : vector<16x8x8xf32>
    %cst_85 = arith.constant dense<0.000000e+00> : vector<16x8xf32>
    %79 = vector.multi_reduction <add>, %78, %cst_85 [1] : vector<16x8x8xf32> to vector<16x8xf32>
    %80 = vector.shape_cast %79 : vector<16x8xf32> to vector<16x1x8xf32>
    %81 = math.log %80 : vector<16x1x8xf32>
    %82 = vector.broadcast %81 : vector<16x1x8xf32> to vector<16x8x8xf32>
    %83 = arith.subf %77, %82 : vector<16x8x8xf32>
    %c0_86 = arith.constant 0 : index
    %c0_87 = arith.constant 0 : index
    %c0_88 = arith.constant 0 : index
    %84 = vector.load %arg18[%c0_86, %c0_87, %c0_88] : memref<16x8x8xf32, #tpu.memory_space<vmem>>, vector<16x8x8xf32>
    tpu.vector_store %arg18[%c0_86, %c0_87, %c0_88], %83 {strides = array<i32>} : memref<16x8x8xf32, #tpu.memory_space<vmem>>, vector<16x8x8xf32>,
    return
  }
}

</mosaic_0001>

<llo_original>
// kernel: lstm_tagger_forward.1
$region0: #{lstm_tagger_forward.1}
  #allocation0 [shape = 'u32[]', space=smem, size = 0x4, offset = 0x4, fixed_abs, tag = 'smem constant byte address 0x4 - core index']
  #allocation1 [shape = 'u32[144,128]{1,0:T(1,128)}', space=vmem, size = 0x12000, scoped, tag = 'internal scratch']
  #allocation2 [shape = 'f32[16,8,512]{2,1,0:T(8,128)}', space=vmem, size = 0x40000, scoped, tag = 'scratch operand']
  #allocation3 [shape = 'f32[16,8,128]{2,1,0:T(8,128)}', space=vmem, size = 0x10000, scoped, tag = 'scratch operand']
  #allocation4 [shape = 'f32[16,8,128]{2,1,0:T(8,128)}', space=vmem, size = 0x10000, scoped, tag = 'scratch operand']
  #allocation5 [shape = 'f32[16,8,128]{2,1,0:T(8,128)}', space=vmem, size = 0x10000, scoped, tag = 'scratch operand']
  #allocation6 [shape = 'f32[16,8,128]{2,1,0:T(8,128)}', space=vmem, size = 0x10000, scoped, tag = 'scratch operand']
  %s0 = inlined_call_operand.vmem [shape: f32[16,8,16], index: 0, kind: input, shape index: {}]
  %s1 = inlined_call_operand.hbm [shape: bf16[16,512], index: 1, kind: input, shape index: {}]
  %s2 = inlined_call_operand.hbm [shape: bf16[128,512], index: 2, kind: input, shape index: {}]
  %s3 = inlined_call_operand.vmem [shape: f32[1,512], index: 3, kind: input, shape index: {}]
  %s4 = inlined_call_operand.hbm [shape: bf16[16,512], index: 4, kind: input, shape index: {}]
  %s5 = inlined_call_operand.hbm [shape: bf16[128,512], index: 5, kind: input, shape index: {}]
  %s6 = inlined_call_operand.vmem [shape: f32[1,512], index: 6, kind: input, shape index: {}]
  %s7 = inlined_call_operand.hbm [shape: bf16[128,512], index: 7, kind: input, shape index: {}]
  %s8 = inlined_call_operand.hbm [shape: bf16[128,512], index: 8, kind: input, shape index: {}]
  %s9 = inlined_call_operand.hbm [shape: bf16[128,512], index: 9, kind: input, shape index: {}]
  %s10 = inlined_call_operand.vmem [shape: f32[1,512], index: 10, kind: input, shape index: {}]
  %s11 = inlined_call_operand.hbm [shape: bf16[128,512], index: 11, kind: input, shape index: {}]
  %s12 = inlined_call_operand.hbm [shape: bf16[128,512], index: 12, kind: input, shape index: {}]
  %s13 = inlined_call_operand.hbm [shape: bf16[128,512], index: 13, kind: input, shape index: {}]
  %s14 = inlined_call_operand.vmem [shape: f32[1,512], index: 14, kind: input, shape index: {}]
  %s15 = inlined_call_operand.vmem [shape: bf16[128,8], index: 15, kind: input, shape index: {}]
  %s16 = inlined_call_operand.vmem [shape: bf16[128,8], index: 16, kind: input, shape index: {}]
  %s17 = inlined_call_operand.vmem [shape: f32[1,8], index: 17, kind: input, shape index: {}]
  %s18 = inlined_call_operand.vmem [shape: f32[16,8,8], index: 18, kind: output, shape index: {}]
  %s19 = sld [smem:[#allocation0]]
  $region150: #{lstm_tagger_forward.1} parent=0
    _
  %s21 = ssub.s32 1, %s19
  %s22 = scalar_select 0, %s21, %s19
  $region1: #{lstm_tagger_forward.1} parent=0
    #allocation7 [shape = 'u8[16384]{0}', space=vmem, size = 0x4000, scoped, tag = 'input window, operand 1, single buffered']
    #allocation8 [shape = 's32[1]{0}', space=sflag, size = 0x4, scoped, tag = 'scoped memory for lstm_tagger_forward.1']
    #allocation9 [shape = 'u8[131072]{0}', space=vmem, size = 0x20000, scoped, tag = 'input window, operand 2, single buffered']
    #allocation10 [shape = 's32[1]{0}', space=sflag, size = 0x4, scoped, tag = 'scoped memory for lstm_tagger_forward.1']
    #allocation11 [shape = 'u8[16384]{0}', space=vmem, size = 0x4000, scoped, tag = 'input window, operand 4, single buffered']
    #allocation12 [shape = 'u8[131072]{0}', space=vmem, size = 0x20000, scoped, tag = 'input window, operand 5, single buffered']
    #allocation13 [shape = 's32[1]{0}', space=sflag, size = 0x4, scoped, tag = 'scoped memory for lstm_tagger_forward.1']
    #allocation14 [shape = 'u8[131072]{0}', space=vmem, size = 0x20000, scoped, tag = 'input window, operand 7, single buffered']
    #allocation15 [shape = 'u8[131072]{0}', space=vmem, size = 0x20000, scoped, tag = 'input window, operand 8, single buffered']
    #allocation16 [shape = 's32[1]{0}', space=sflag, size = 0x4, scoped, tag = 'scoped memory for lstm_tagger_forward.1']
    #allocation17 [shape = 'u8[131072]{0}', space=vmem, size = 0x20000, scoped, tag = 'input window, operand 9, single buffered']
    #allocation18 [shape = 'u8[131072]{0}', space=vmem, size = 0x20000, scoped, tag = 'input window, operand 11, single buffered']
    #allocation19 [shape = 's32[1]{0}', space=sflag, size = 0x4, scoped, tag = 'scoped memory for lstm_tagger_forward.1']
    #allocation20 [shape = 'u8[131072]{0}', space=vmem, size = 0x20000, scoped, tag = 'input window, operand 12, single buffered']
    #allocation21 [shape = 'u8[131072]{0}', space=vmem, size = 0x20000, scoped, tag = 'input window, operand 13, single buffered']
    #allocation22 [shape = 's32[1]{0}', space=sflag, size = 0x4, scoped, tag = 'scoped memory for lstm_tagger_forward.1']
    %23 = vsyncpa [#allocation8], 0
    %24 = vsyncpa [#allocation10], 0
    %25 = vsyncpa [#allocation13], 0
    %26 = vsyncpa [#allocation16], 0
    %27 = vsyncpa [#allocation19], 0
    %28 = vsyncpa [#allocation22], 0
    // Predicated region
    $region2: #{lstm_tagger_forward.1} parent=1 // pred_check
      _
    $region3: #{lstm_tagger_forward.1} parent=1 // pred_check_branch
      %30 = sbr.rel (0) target = $region5
    $region4: #{lstm_tagger_forward.1} parent=1 // pred_region
      _
    $region5: #{lstm_tagger_forward.1} parent=1 // pred_fallthru
      _
    // Predicated region
    $region6: #{lstm_tagger_forward.1} parent=1 // pred_check
      _
    $region7: #{lstm_tagger_forward.1} parent=1 // pred_check_branch
      %32 = sbr.rel (0) target = $region9
    $region8: #{lstm_tagger_forward.1} parent=1 // pred_region
      %s34 = ssub.s32 512, 512
      %35 = vsyncadd [#allocation8], %s34
      %s36 = sshll.u32 [#allocation7], 4
      %s37 = int_to_ptr.vmem [resolvable:$true] %s36
      %42 = dma.hbm_to_vmem [thread:$0]  %s1, 512, %s37, [#allocation8], 256, 256, 16
    $region9: #{lstm_tagger_forward.1} parent=1 // pred_fallthru
      _
    // Predicated region
    $region10: #{lstm_tagger_forward.1} parent=1 // pred_check
      _
    $region11: #{lstm_tagger_forward.1} parent=1 // pred_check_branch
      %44 = sbr.rel (0) target = $region13
    $region12: #{lstm_tagger_forward.1} parent=1 // pred_region
      %s46 = ssub.s32 4096, 4096
      %47 = vsyncadd [#allocation10], %s46
      %s48 = sshll.u32 [#allocation9], 4
      %s49 = int_to_ptr.vmem [resolvable:$true] %s48
      %54 = dma.hbm_to_vmem [thread:$0]  %s2, 4096, %s49, [#allocation10], 256, 256, 16
    $region13: #{lstm_tagger_forward.1} parent=1 // pred_fallthru
      _
    // Predicated region
    $region14: #{lstm_tagger_forward.1} parent=1 // pred_check
      _
    $region15: #{lstm_tagger_forward.1} parent=1 // pred_check_branch
      %56 = sbr.rel (0) target = $region17
    $region16: #{lstm_tagger_forward.1} parent=1 // pred_region
      _
    $region17: #{lstm_tagger_forward.1} parent=1 // pred_fallthru
      _
    // Predicated region
    $region18: #{lstm_tagger_forward.1} parent=1 // pred_check
      _
    $region19: #{lstm_tagger_forward.1} parent=1 // pred_check_branch
      %58 = sbr.rel (0) target = $region21
    $region20: #{lstm_tagger_forward.1} parent=1 // pred_region
      %s60 = ssub.s32 512, 512
      %61 = vsyncadd [#allocation10], %s60
      %s62 = sshll.u32 [#allocation11], 4
      %s63 = int_to_ptr.vmem [resolvable:$true] %s62
      %68 = dma.hbm_to_vmem [thread:$0]  %s4, 512, %s63, [#allocation10], 256, 256, 16
    $region21: #{lstm_tagger_forward.1} parent=1 // pred_fallthru
      _
    // Predicated region
    $region22: #{lstm_tagger_forward.1} parent=1 // pred_check
      _
    $region23: #{lstm_tagger_forward.1} parent=1 // pred_check_branch
      %70 = sbr.rel (0) target = $region25
    $region24: #{lstm_tagger_forward.1} parent=1 // pred_region
      %s72 = ssub.s32 4096, 4096
      %73 = vsyncadd [#allocation13], %s72
      %s74 = sshll.u32 [#allocation12], 4
      %s75 = int_to_ptr.vmem [resolvable:$true] %s74
      %80 = dma.hbm_to_vmem [thread:$0]  %s5, 4096, %s75, [#allocation13], 256, 256, 16
    $region25: #{lstm_tagger_forward.1} parent=1 // pred_fallthru
      _
    // Predicated region
    $region26: #{lstm_tagger_forward.1} parent=1 // pred_check
      _
    $region27: #{lstm_tagger_forward.1} parent=1 // pred_check_branch
      %82 = sbr.rel (0) target = $region29
    $region28: #{lstm_tagger_forward.1} parent=1 // pred_region
      _
    $region29: #{lstm_tagger_forward.1} parent=1 // pred_fallthru
      _
    // Predicated region
    $region30: #{lstm_tagger_forward.1} parent=1 // pred_check
      _
    $region31: #{lstm_tagger_forward.1} parent=1 // pred_check_branch
      %84 = sbr.rel (0) target = $region33
    $region32: #{lstm_tagger_forward.1} parent=1 // pred_region
      %s86 = ssub.s32 4096, 4096
      %87 = vsyncadd [#allocation13], %s86
      %s88 = sshll.u32 [#allocation14], 4
      %s89 = int_to_ptr.vmem [resolvable:$true] %s88
      %94 = dma.hbm_to_vmem [thread:$0]  %s7, 4096, %s89, [#allocation13], 256, 256, 16
    $region33: #{lstm_tagger_forward.1} parent=1 // pred_fallthru
      _
    // Predicated region
    $region34: #{lstm_tagger_forward.1} parent=1 // pred_check
      _
    $region35: #{lstm_tagger_forward.1} parent=1 // pred_check_branch
      %96 = sbr.rel (0) target = $region37
    $region36: #{lstm_tagger_forward.1} parent=1 // pred_region
      %s98 = ssub.s32 4096, 4096
      %99 = vsyncadd [#allocation16], %s98
      %s100 = sshll.u32 [#allocation15], 4
      %s101 = int_to_ptr.vmem [resolvable:$true] %s100
      %106 = dma.hbm_to_vmem [thread:$0]  %s8, 4096, %s101, [#allocation16], 256, 256, 16
    $region37: #{lstm_tagger_forward.1} parent=1 // pred_fallthru
      _
    // Predicated region
    $region38: #{lstm_tagger_forward.1} parent=1 // pred_check
      _
    $region39: #{lstm_tagger_forward.1} parent=1 // pred_check_branch
      %108 = sbr.rel (0) target = $region41
    $region40: #{lstm_tagger_forward.1} parent=1 // pred_region
      %s110 = ssub.s32 4096, 4096
      %111 = vsyncadd [#allocation16], %s110
      %s112 = sshll.u32 [#allocation17], 4
      %s113 = int_to_ptr.vmem [resolvable:$true] %s112
      %118 = dma.hbm_to_vmem [thread:$0]  %s9, 4096, %s113, [#allocation16], 256, 256, 16
    $region41: #{lstm_tagger_forward.1} parent=1 // pred_fallthru
      _
    // Predicated region
    $region42: #{lstm_tagger_forward.1} parent=1 // pred_check
      _
    $region43: #{lstm_tagger_forward.1} parent=1 // pred_check_branch
      %120 = sbr.rel (0) target = $region45
    $region44: #{lstm_tagger_forward.1} parent=1 // pred_region
      _
    $region45: #{lstm_tagger_forward.1} parent=1 // pred_fallthru
      _
    // Predicated region
    $region46: #{lstm_tagger_forward.1} parent=1 // pred_check
      _
    $region47: #{lstm_tagger_forward.1} parent=1 // pred_check_branch
      %122 = sbr.rel (0) target = $region49
    $region48: #{lstm_tagger_forward.1} parent=1 // pred_region
      %s124 = ssub.s32 4096, 4096
      %125 = vsyncadd [#allocation19], %s124
      %s126 = sshll.u32 [#allocation18], 4
      %s127 = int_to_ptr.vmem [resolvable:$true] %s126
      %132 = dma.hbm_to_vmem [thread:$0]  %s11, 4096, %s127, [#allocation19], 256, 256, 16
    $region49: #{lstm_tagger_forward.1} parent=1 // pred_fallthru
      _
    // Predicated region
    $region50: #{lstm_tagger_forward.1} parent=1 // pred_check
      _
    $region51: #{lstm_tagger_forward.1} parent=1 // pred_check_branch
      %134 = sbr.rel (0) target = $region53
    $region52: #{lstm_tagger_forward.1} parent=1 // pred_region
      %s136 = ssub.s32 4096, 4096
      %137 = vsyncadd [#allocation19], %s136
      %s138 = sshll.u32 [#allocation20], 4
      %s139 = int_to_ptr.vmem [resolvable:$true] %s138
      %144 = dma.hbm_to_vmem [thread:$0]  %s12, 4096, %s139, [#allocation19], 256, 256, 16
    $region53: #{lstm_tagger_forward.1} parent=1 // pred_fallthru
      _
    // Predicated region
    $region54: #{lstm_tagger_forward.1} parent=1 // pred_check
      _
    $region55: #{lstm_tagger_forward.1} parent=1 // pred_check_branch
      %146 = sbr.rel (0) target = $region57
    $region56: #{lstm_tagger_forward.1} parent=1 // pred_region
      %s148 = ssub.s32 4096, 4096
      %149 = vsyncadd [#allocation22], %s148
      %s150 = sshll.u32 [#allocation21], 4
      %s151 = int_to_ptr.vmem [resolvable:$true] %s150
      %156 = dma.hbm_to_vmem [thread:$0]  %s13, 4096, %s151, [#allocation22], 256, 256, 16
    $region57: #{lstm_tagger_forward.1} parent=1 // pred_fallthru
      _
    // Predicated region
    $region58: #{lstm_tagger_forward.1} parent=1 // pred_check
      _
    $region59: #{lstm_tagger_forward.1} parent=1 // pred_check_branch
      %158 = sbr.rel (0) target = $region61
    $region60: #{lstm_tagger_forward.1} parent=1 // pred_region
      _
    $region61: #{lstm_tagger_forward.1} parent=1 // pred_fallthru
      _
    // Predicated region
    $region62: #{lstm_tagger_forward.1} parent=1 // pred_check
      _
    $region63: #{lstm_tagger_forward.1} parent=1 // pred_check_branch
      %160 = sbr.rel (0) target = $region65
    $region64: #{lstm_tagger_forward.1} parent=1 // pred_region
      _
    $region65: #{lstm_tagger_forward.1} parent=1 // pred_fallthru
      _
    // Predicated region
    $region66: #{lstm_tagger_forward.1} parent=1 // pred_check
      _
    $region67: #{lstm_tagger_forward.1} parent=1 // pred_check_branch
      %162 = sbr.rel (0) target = $region69
    $region68: #{lstm_tagger_forward.1} parent=1 // pred_region
      _
    $region69: #{lstm_tagger_forward.1} parent=1 // pred_fallthru
      _
    // Predicated region
    $region70: #{lstm_tagger_forward.1} parent=1 // pred_check
      _
    $region71: #{lstm_tagger_forward.1} parent=1 // pred_check_branch
      %164 = sbr.rel (0) target = $region73
    $region72: #{lstm_tagger_forward.1} parent=1 // pred_region
      _
    $region73: #{lstm_tagger_forward.1} parent=1 // pred_fallthru
      _
    // Predicated region
    $region74: #{lstm_tagger_forward.1} parent=1 // pred_check
      _
    $region75: #{lstm_tagger_forward.1} parent=1 // pred_check_branch
      %166 = sbr.rel (0) target = $region77
    $region76: #{lstm_tagger_forward.1} parent=1 // pred_region
      %167 = dma.done [#allocation8], 512
    $region77: #{lstm_tagger_forward.1} parent=1 // pred_fallthru
      _
    // Predicated region
    $region78: #{lstm_tagger_forward.1} parent=1 // pred_check
      _
    $region79: #{lstm_tagger_forward.1} parent=1 // pred_check_branch
      %169 = sbr.rel (0) target = $region81
    $region80: #{lstm_tagger_forward.1} parent=1 // pred_region
      %170 = dma.done [#allocation10], 4096
    $region81: #{lstm_tagger_forward.1} parent=1 // pred_fallthru
      _
    // Predicated region
    $region82: #{lstm_tagger_forward.1} parent=1 // pred_check
      _
    $region83: #{lstm_tagger_forward.1} parent=1 // pred_check_branch
      %172 = sbr.rel (0) target = $region85
    $region84: #{lstm_tagger_forward.1} parent=1 // pred_region
      %173 = dma.done [#allocation10], 512
    $region85: #{lstm_tagger_forward.1} parent=1 // pred_fallthru
      _
    // Predicated region
    $region86: #{lstm_tagger_forward.1} parent=1 // pred_check
      _
    $region87: #{lstm_tagger_forward.1} parent=1 // pred_check_branch
      %175 = sbr.rel (0) target = $region89
    $region88: #{lstm_tagger_forward.1} parent=1 // pred_region
      %176 = dma.done [#allocation13], 4096
    $region89: #{lstm_tagger_forward.1} parent=1 // pred_fallthru
      _
    // Predicated region
    $region90: #{lstm_tagger_forward.1} parent=1 // pred_check
      _
    $region91: #{lstm_tagger_forward.1} parent=1 // pred_check_branch
      %178 = sbr.rel (0) target = $region93
    $region92: #{lstm_tagger_forward.1} parent=1 // pred_region
      %179 = dma.done [#allocation13], 4096
    $region93: #{lstm_tagger_forward.1} parent=1 // pred_fallthru
      _
    // Predicated region
    $region94: #{lstm_tagger_forward.1} parent=1 // pred_check
      _
    $region95: #{lstm_tagger_forward.1} parent=1 // pred_check_branch
      %181 = sbr.rel (0) target = $region97
    $region96: #{lstm_tagger_forward.1} parent=1 // pred_region
      %182 = dma.done [#allocation16], 4096
    $region97: #{lstm_tagger_forward.1} parent=1 // pred_fallthru
      _
    // Predicated region
    $region98: #{lstm_tagger_forward.1} parent=1 // pred_check
      _
    $region99: #{lstm_tagger_forward.1} parent=1 // pred_check_branch
      %184 = sbr.rel (0) target = $region101
    $region100: #{lstm_tagger_forward.1} parent=1 // pred_region
      %185 = dma.done [#allocation16], 4096
    $region101: #{lstm_tagger_forward.1} parent=1 // pred_fallthru
      _
    // Predicated region
    $region102: #{lstm_tagger_forward.1} parent=1 // pred_check
      _
    $region103: #{lstm_tagger_forward.1} parent=1 // pred_check_branch
      %187 = sbr.rel (0) target = $region105
    $region104: #{lstm_tagger_forward.1} parent=1 // pred_region
      %188 = dma.done [#allocation19], 4096
    $region105: #{lstm_tagger_forward.1} parent=1 // pred_fallthru
      _
    // Predicated region
    $region106: #{lstm_tagger_forward.1} parent=1 // pred_check
      _
    $region107: #{lstm_tagger_forward.1} parent=1 // pred_check_branch
      %190 = sbr.rel (0) target = $region109
    $region108: #{lstm_tagger_forward.1} parent=1 // pred_region
      %191 = dma.done [#allocation19], 4096
    $region109: #{lstm_tagger_forward.1} parent=1 // pred_fallthru
      _
    // Predicated region
    $region110: #{lstm_tagger_forward.1} parent=1 // pred_check
      _
    $region111: #{lstm_tagger_forward.1} parent=1 // pred_check_branch
      %193 = sbr.rel (0) target = $region113
    $region112: #{lstm_tagger_forward.1} parent=1 // pred_region
      %194 = dma.done [#allocation22], 4096
    $region113: #{lstm_tagger_forward.1} parent=1 // pred_fallthru
      _
    %v196 = vld [vmem:[%s0] sm:$0xff]
    %v197 = vld [vmem:[%s0 + $0x8] sm:$0xff]
    %v198 = vld [vmem:[%s0 + $0x10] sm:$0xff]
    %v199 = vld [vmem:[%s0 + $0x18] sm:$0xff]
    %v200 = vld [vmem:[%s0 + $0x20] sm:$0xff]
    %v201 = vld [vmem:[%s0 + $0x28] sm:$0xff]
    %v202 = vld [vmem:[%s0 + $0x30] sm:$0xff]
    %v203 = vld [vmem:[%s0 + $0x38] sm:$0xff]
    %v204 = vld [vmem:[%s0 + $0x40] sm:$0xff]
    %v205 = vld [vmem:[%s0 + $0x48] sm:$0xff]
    %v206 = vld [vmem:[%s0 + $0x50] sm:$0xff]
    %v207 = vld [vmem:[%s0 + $0x58] sm:$0xff]
    %v208 = vld [vmem:[%s0 + $0x60] sm:$0xff]
    %v209 = vld [vmem:[%s0 + $0x68] sm:$0xff]
    %v210 = vld [vmem:[%s0 + $0x70] sm:$0xff]
    %v211 = vld [vmem:[%s0 + $0x78] sm:$0xff]
    %v212 = vpack.c.bf16 %v197, %v196
    %v213 = vpack.c.bf16 %v199, %v198
    %v214 = vpack.c.bf16 %v201, %v200
    %v215 = vpack.c.bf16 %v203, %v202
    %v216 = vpack.c.bf16 %v205, %v204
    %v217 = vpack.c.bf16 %v207, %v206
    %v218 = vpack.c.bf16 %v209, %v208
    %v219 = vpack.c.bf16 %v211, %v210
    %v220 = vld [vmem:[#allocation7] sm:$0xff]
    %v221 = vld [vmem:[#allocation7 + $0x8] sm:$0xff]
    %v222 = vld [vmem:[#allocation7 + $0x10] sm:$0xff]
    %v223 = vld [vmem:[#allocation7 + $0x18] sm:$0xff]
    %v224 = vld [vmem:[%s3] sm:$0xf]
    %v226 = vlaneseq
    %v227 = vshrl.u32 %v226, 7
    %v228 = vsub.s32 0, %v227
    %v229 = vrot.slane %v224, %v228
    %v230 = vlaneseq
    %v231 = vshrl.u32 %v230, 7
    %v232 = vsub.s32 1, %v231
    %v233 = vrot.slane %v224, %v232
    %v234 = vlaneseq
    %v235 = vshrl.u32 %v234, 7
    %v236 = vsub.s32 2, %v235
    %v237 = vrot.slane %v224, %v236
    %v238 = vlaneseq
    %v239 = vshrl.u32 %v238, 7
    %v240 = vsub.s32 3, %v239
    %v241 = vrot.slane %v224, %v240
    %v250 = vunpack.c.l.b16 %v220
    %v251 = vunpack.c.h.b16 %v220
    %v252 = vunpack.c.l.b16 %v221
    %v253 = vunpack.c.h.b16 %v221
    %v254 = vunpack.c.l.b16 %v222
    %v255 = vunpack.c.h.b16 %v222
    %v256 = vunpack.c.l.b16 %v223
    %v257 = vunpack.c.h.b16 %v223
    %v258 = vpack.c.b16 %v254, %v250
    %v259 = vpack.c.b16 %v255, %v251
    %v260 = vpack.c.b16 %v256, %v252
    %v261 = vpack.c.b16 %v257, %v253
    %vm266 = vcmask 130048
    %v268 = vsel %vm266, %v212, 0
    %v271 = vsel %vm266, %v213, 0
    %v274 = vsel %vm266, %v214, 0
    %v277 = vsel %vm266, %v215, 0
    %v280 = vsel %vm266, %v216, 0
    %v283 = vsel %vm266, %v217, 0
    %v286 = vsel %vm266, %v218, 0
    %v289 = vsel %vm266, %v219, 0
    %291 = vmatprep.subr.bf16.mxu0 %v259
    %292 = vmatpush1.bf16.msra.mxu0 %v258
    %293 = vmatprep.subr.bf16.mxu0 0
    %294 = vmatpush1.bf16.msra.mxu0 0
    %295 = vmatprep.subr.bf16.mxu0 0
    %296 = vmatpush1.bf16.msra.mxu0 0
    %297 = vmatprep.subr.bf16.mxu0 0
    %298 = vmatpush1.bf16.msra.mxu0 0
    %299 = vmatprep.subr.bf16.mxu0 0
    %300 = vmatpush1.bf16.msra.mxu0 0
    %301 = vmatprep.subr.bf16.mxu0 0
    %302 = vmatpush1.bf16.msra.mxu0 0
    %303 = vmatprep.subr.bf16.mxu0 0
    %304 = vmatpush1.bf16.msra.mxu0 0
    %305 = vmatprep.subr.bf16.mxu0 0
    %306 = vmatpush1.bf16.msra.mxu0 0
    %307 = vmatprep.subr.bf16.mxu0 0
    %308 = vmatpush1.bf16.msra.mxu0 0
    %309 = vmatprep.subr.bf16.mxu0 0
    %310 = vmatpush1.bf16.msra.mxu0 0
    %311 = vmatprep.subr.bf16.mxu0 0
    %312 = vmatpush1.bf16.msra.mxu0 0
    %313 = vmatprep.subr.bf16.mxu0 0
    %314 = vmatpush1.bf16.msra.mxu0 0
    %315 = vmatprep.subr.bf16.mxu0 0
    %316 = vmatpush1.bf16.msra.mxu0 0
    %317 = vmatprep.subr.bf16.mxu0 0
    %318 = vmatpush1.bf16.msra.mxu0 0
    %319 = vmatprep.subr.bf16.mxu0 0
    %320 = vmatpush1.bf16.msra.mxu0 0
    %321 = vmatprep.subr.bf16.mxu0 0
    %322 = vmatpush1.bf16.msra.mxu0 0
    %323 = vmatprep.mubr.bf16.mxu0 0
    %324 = vmatmul.mubr.bf16.gmra.mrb[0].mxu0 %v268
    %v325 = vpop.f32.mrb[0].mxu0
    %v326 = vadd.f32 %v229, %v325
    %v327 = vpop.f32.mrb[0].mxu0
    %v328 = vadd.f32 %v233, %v327
    %v329 = vpop.f32.mrb[0].mxu0
    %v330 = vadd.f32 %v229, %v329
    %v331 = vpop.f32.mrb[0].mxu0
    %v332 = vadd.f32 %v233, %v331
    %333 = vmatprep.mubr.bf16.mxu0 0
    %334 = vmatmul.mubr.bf16.gmra.mrb[0].mxu0 %v271
    %v335 = vpop.f32.mrb[0].mxu0
    %v336 = vadd.f32 %v229, %v335
    %v337 = vpop.f32.mrb[0].mxu0
    %v338 = vadd.f32 %v233, %v337
    %v339 = vpop.f32.mrb[0].mxu0
    %v340 = vadd.f32 %v229, %v339
    %v341 = vpop.f32.mrb[0].mxu0
    %v342 = vadd.f32 %v233, %v341
    %343 = vmatprep.mubr.bf16.mxu0 0
    %344 = vmatmul.mubr.bf16.gmra.mrb[0].mxu0 %v274
    %v345 = vpop.f32.mrb[0].mxu0
    %v346 = vadd.f32 %v229, %v345
    %v347 = vpop.f32.mrb[0].mxu0
    %v348 = vadd.f32 %v233, %v347
    %v349 = vpop.f32.mrb[0].mxu0
    %v350 = vadd.f32 %v229, %v349
    %v351 = vpop.f32.mrb[0].mxu0
    %v352 = vadd.f32 %v233, %v351
    %353 = vmatprep.mubr.bf16.mxu0 0
    %354 = vmatmul.mubr.bf16.gmra.mrb[0].mxu0 %v277
    %v355 = vpop.f32.mrb[0].mxu0
    %v356 = vadd.f32 %v229, %v355
    %v357 = vpop.f32.mrb[0].mxu0
    %v358 = vadd.f32 %v233, %v357
    %v359 = vpop.f32.mrb[0].mxu0
    %v360 = vadd.f32 %v229, %v359
    %v361 = vpop.f32.mrb[0].mxu0
    %v362 = vadd.f32 %v233, %v361
    %363 = vmatprep.mubr.bf16.mxu0 0
    %364 = vmatmul.mubr.bf16.gmra.mrb[0].mxu0 %v280
    %v365 = vpop.f32.mrb[0].mxu0
    %v366 = vadd.f32 %v229, %v365
    %v367 = vpop.f32.mrb[0].mxu0
    %v368 = vadd.f32 %v233, %v367
    %v369 = vpop.f32.mrb[0].mxu0
    %v370 = vadd.f32 %v229, %v369
    %v371 = vpop.f32.mrb[0].mxu0
    %v372 = vadd.f32 %v233, %v371
    %373 = vmatprep.mubr.bf16.mxu0 0
    %374 = vmatmul.mubr.bf16.gmra.mrb[0].mxu0 %v283
    %v375 = vpop.f32.mrb[0].mxu0
    %v376 = vadd.f32 %v229, %v375
    %v377 = vpop.f32.mrb[0].mxu0
    %v378 = vadd.f32 %v233, %v377
    %v379 = vpop.f32.mrb[0].mxu0
    %v380 = vadd.f32 %v229, %v379
    %v381 = vpop.f32.mrb[0].mxu0
    %v382 = vadd.f32 %v233, %v381
    %383 = vmatprep.mubr.bf16.mxu0 0
    %384 = vmatmul.mubr.bf16.gmra.mrb[0].mxu0 %v286
    %v385 = vpop.f32.mrb[0].mxu0
    %v386 = vadd.f32 %v229, %v385
    %v387 = vpop.f32.mrb[0].mxu0
    %v388 = vadd.f32 %v233, %v387
    %v389 = vpop.f32.mrb[0].mxu0
    %v390 = vadd.f32 %v229, %v389
    %v391 = vpop.f32.mrb[0].mxu0
    %v392 = vadd.f32 %v233, %v391
    %393 = vmatprep.mubr.bf16.mxu0 0
    %394 = vmatmul.mubr.bf16.gmra.mrb[0].mxu0 %v289
    %v395 = vpop.f32.mrb[0].mxu0
    %v396 = vadd.f32 %v229, %v395
    %v397 = vpop.f32.mrb[0].mxu0
    %v398 = vadd.f32 %v233, %v397
    %v399 = vpop.f32.mrb[0].mxu0
    %v400 = vadd.f32 %v229, %v399
    %v401 = vpop.f32.mrb[0].mxu0
    %v402 = vadd.f32 %v233, %v401
    %403 = vdwg.mxu0
    %404 = vmatprep.subr.bf16.mxu0 %v261
    %405 = vmatpush1.bf16.msra.mxu0 %v260
    %406 = vmatprep.subr.bf16.mxu0 0
    %407 = vmatpush1.bf16.msra.mxu0 0
    %408 = vmatprep.subr.bf16.mxu0 0
    %409 = vmatpush1.bf16.msra.mxu0 0
    %410 = vmatprep.subr.bf16.mxu0 0
    %411 = vmatpush1.bf16.msra.mxu0 0
    %412 = vmatprep.subr.bf16.mxu0 0
    %413 = vmatpush1.bf16.msra.mxu0 0
    %414 = vmatprep.subr.bf16.mxu0 0
    %415 = vmatpush1.bf16.msra.mxu0 0
    %416 = vmatprep.subr.bf16.mxu0 0
    %417 = vmatpush1.bf16.msra.mxu0 0
    %418 = vmatprep.subr.bf16.mxu0 0
    %419 = vmatpush1.bf16.msra.mxu0 0
    %420 = vmatprep.subr.bf16.mxu0 0
    %421 = vmatpush1.bf16.msra.mxu0 0
    %422 = vmatprep.subr.bf16.mxu0 0
    %423 = vmatpush1.bf16.msra.mxu0 0
    %424 = vmatprep.subr.bf16.mxu0 0
    %425 = vmatpush1.bf16.msra.mxu0 0
    %426 = vmatprep.subr.bf16.mxu0 0
    %427 = vmatpush1.bf16.msra.mxu0 0
    %428 = vmatprep.subr.bf16.mxu0 0
    %429 = vmatpush1.bf16.msra.mxu0 0
    %430 = vmatprep.subr.bf16.mxu0 0
    %431 = vmatpush1.bf16.msra.mxu0 0
    %432 = vmatprep.subr.bf16.mxu0 0
    %433 = vmatpush1.bf16.msra.mxu0 0
    %434 = vmatprep.subr.bf16.mxu0 0
    %435 = vmatpush1.bf16.msra.mxu0 0
    %436 = vmatprep.mubr.bf16.mxu0 0
    %437 = vmatmul.mubr.bf16.gmra.mrb[0].mxu0 %v268
    %v438 = vpop.f32.mrb[0].mxu0
    %v439 = vadd.f32 %v237, %v438
    %v440 = vpop.f32.mrb[0].mxu0
    %v441 = vadd.f32 %v241, %v440
    %v442 = vpop.f32.mrb[0].mxu0
    %v443 = vadd.f32 %v237, %v442
    %v444 = vpop.f32.mrb[0].mxu0
    %v445 = vadd.f32 %v241, %v444
    %446 = vmatprep.mubr.bf16.mxu0 0
    %447 = vmatmul.mubr.bf16.gmra.mrb[0].mxu0 %v271
    %v448 = vpop.f32.mrb[0].mxu0
    %v449 = vadd.f32 %v237, %v448
    %v450 = vpop.f32.mrb[0].mxu0
    %v451 = vadd.f32 %v241, %v450
    %v452 = vpop.f32.mrb[0].mxu0
    %v453 = vadd.f32 %v237, %v452
    %v454 = vpop.f32.mrb[0].mxu0
    %v455 = vadd.f32 %v241, %v454
    %456 = vmatprep.mubr.bf16.mxu0 0
    %457 = vmatmul.mubr.bf16.gmra.mrb[0].mxu0 %v274
    %v458 = vpop.f32.mrb[0].mxu0
    %v459 = vadd.f32 %v237, %v458
    %v460 = vpop.f32.mrb[0].mxu0
    %v461 = vadd.f32 %v241, %v460
    %v462 = vpop.f32.mrb[0].mxu0
    %v463 = vadd.f32 %v237, %v462
    %v464 = vpop.f32.mrb[0].mxu0
    %v465 = vadd.f32 %v241, %v464
    %466 = vmatprep.mubr.bf16.mxu0 0
    %467 = vmatmul.mubr.bf16.gmra.mrb[0].mxu0 %v277
    %v468 = vpop.f32.mrb[0].mxu0
    %v469 = vadd.f32 %v237, %v468
    %v470 = vpop.f32.mrb[0].mxu0
    %v471 = vadd.f32 %v241, %v470
    %v472 = vpop.f32.mrb[0].mxu0
    %v473 = vadd.f32 %v237, %v472
    %v474 = vpop.f32.mrb[0].mxu0
    %v475 = vadd.f32 %v241, %v474
    %476 = vmatprep.mubr.bf16.mxu0 0
    %477 = vmatmul.mubr.bf16.gmra.mrb[0].mxu0 %v280
    %v478 = vpop.f32.mrb[0].mxu0
    %v479 = vadd.f32 %v237, %v478
    %v480 = vpop.f32.mrb[0].mxu0
    %v481 = vadd.f32 %v241, %v480
    %v482 = vpop.f32.mrb[0].mxu0
    %v483 = vadd.f32 %v237, %v482
    %v484 = vpop.f32.mrb[0].mxu0
    %v485 = vadd.f32 %v241, %v484
    %486 = vmatprep.mubr.bf16.mxu0 0
    %487 = vmatmul.mubr.bf16.gmra.mrb[0].mxu0 %v283
    %v488 = vpop.f32.mrb[0].mxu0
    %v489 = vadd.f32 %v237, %v488
    %v490 = vpop.f32.mrb[0].mxu0
    %v491 = vadd.f32 %v241, %v490
    %v492 = vpop.f32.mrb[0].mxu0
    %v493 = vadd.f32 %v237, %v492
    %v494 = vpop.f32.mrb[0].mxu0
    %v495 = vadd.f32 %v241, %v494
    %496 = vmatprep.mubr.bf16.mxu0 0
    %497 = vmatmul.mubr.bf16.gmra.mrb[0].mxu0 %v286
    %v498 = vpop.f32.mrb[0].mxu0
    %v499 = vadd.f32 %v237, %v498
    %v500 = vpop.f32.mrb[0].mxu0
    %v501 = vadd.f32 %v241, %v500
    %v502 = vpop.f32.mrb[0].mxu0
    %v503 = vadd.f32 %v237, %v502
    %v504 = vpop.f32.mrb[0].mxu0
    %v505 = vadd.f32 %v241, %v504
    %506 = vmatprep.mubr.bf16.mxu0 0
    %507 = vmatmul.mubr.bf16.gmra.mrb[0].mxu0 %v289
    %v508 = vpop.f32.mrb[0].mxu0
    %v509 = vadd.f32 %v237, %v508
    %v510 = vpop.f32.mrb[0].mxu0
    %v511 = vadd.f32 %v241, %v510
    %v512 = vpop.f32.mrb[0].mxu0
    %v513 = vadd.f32 %v237, %v512
    %v514 = vpop.f32.mrb[0].mxu0
    %v515 = vadd.f32 %v241, %v514
    %516 = vdwg.mxu0
    %517 = vst [vmem:[#allocation2] sm:$0xff] %v326
    %518 = vst [vmem:[#allocation2 + $0x8] sm:$0xff] %v328
    %519 = vst [vmem:[#allocation2 + $0x10] sm:$0xff] %v439
    %520 = vst [vmem:[#allocation2 + $0x18] sm:$0xff] %v441
    %521 = vst [vmem:[#allocation2 + $0x20] sm:$0xff] %v330
    %522 = vst [vmem:[#allocation2 + $0x28] sm:$0xff] %v332
    %523 = vst [vmem:[#allocation2 + $0x30] sm:$0xff] %v443
    %524 = vst [vmem:[#allocation2 + $0x38] sm:$0xff] %v445
    %525 = vst [vmem:[#allocation2 + $0x40] sm:$0xff] %v336
    %526 = vst [vmem:[#allocation2 + $0x48] sm:$0xff] %v338
    %527 = vst [vmem:[#allocation2 + $0x50] sm:$0xff] %v449
    %528 = vst [vmem:[#allocation2 + $0x58] sm:$0xff] %v451
    %529 = vst [vmem:[#allocation2 + $0x60] sm:$0xff] %v340
    %530 = vst [vmem:[#allocation2 + $0x68] sm:$0xff] %v342
    %531 = vst [vmem:[#allocation2 + $0x70] sm:$0xff] %v453
    %532 = vst [vmem:[#allocation2 + $0x78] sm:$0xff] %v455
    %533 = vst [vmem:[#allocation2 + $0x80] sm:$0xff] %v346
    %534 = vst [vmem:[#allocation2 + $0x88] sm:$0xff] %v348
    %535 = vst [vmem:[#allocation2 + $0x90] sm:$0xff] %v459
    %536 = vst [vmem:[#allocation2 + $0x98] sm:$0xff] %v461
    %537 = vst [vmem:[#allocation2 + $0xa0] sm:$0xff] %v350
    %538 = vst [vmem:[#allocation2 + $0xa8] sm:$0xff] %v352
    %539 = vst [vmem:[#allocation2 + $0xb0] sm:$0xff] %v463
    %540 = vst [vmem:[#allocation2 + $0xb8] sm:$0xff] %v465
    %541 = vst [vmem:[#allocation2 + $0xc0] sm:$0xff] %v356
    %542 = vst [vmem:[#allocation2 + $0xc8] sm:$0xff] %v358
    %543 = vst [vmem:[#allocation2 + $0xd0] sm:$0xff] %v469
    %544 = vst [vmem:[#allocation2 + $0xd8] sm:$0xff] %v471
    %545 = vst [vmem:[#allocation2 + $0xe0] sm:$0xff] %v360
    %546 = vst [vmem:[#allocation2 + $0xe8] sm:$0xff] %v362
    %547 = vst [vmem:[#allocation2 + $0xf0] sm:$0xff] %v473
    %548 = vst [vmem:[#allocation2 + $0xf8] sm:$0xff] %v475
    %549 = vst [vmem:[#allocation2 + $0x100] sm:$0xff] %v366
    %550 = vst [vmem:[#allocation2 + $0x108] sm:$0xff] %v368
    %551 = vst [vmem:[#allocation2 + $0x110] sm:$0xff] %v479
    %552 = vst [vmem:[#allocation2 + $0x118] sm:$0xff] %v481
    %553 = vst [vmem:[#allocation2 + $0x120] sm:$0xff] %v370
    %554 = vst [vmem:[#allocation2 + $0x128] sm:$0xff] %v372
    %555 = vst [vmem:[#allocation2 + $0x130] sm:$0xff] %v483
    %556 = vst [vmem:[#allocation2 + $0x138] sm:$0xff] %v485
    %557 = vst [vmem:[#allocation2 + $0x140] sm:$0xff] %v376
    %558 = vst [vmem:[#allocation2 + $0x148] sm:$0xff] %v378
    %559 = vst [vmem:[#allocation2 + $0x150] sm:$0xff] %v489
    %560 = vst [vmem:[#allocation2 + $0x158] sm:$0xff] %v491
    %561 = vst [vmem:[#allocation2 + $0x160] sm:$0xff] %v380
    %562 = vst [vmem:[#allocation2 + $0x168] sm:$0xff] %v382
    %563 = vst [vmem:[#allocation2 + $0x170] sm:$0xff] %v493
    %564 = vst [vmem:[#allocation2 + $0x178] sm:$0xff] %v495
    %565 = vst [vmem:[#allocation2 + $0x180] sm:$0xff] %v386
    %566 = vst [vmem:[#allocation2 + $0x188] sm:$0xff] %v388
    %567 = vst [vmem:[#allocation2 + $0x190] sm:$0xff] %v499
    %568 = vst [vmem:[#allocation2 + $0x198] sm:$0xff] %v501
    %569 = vst [vmem:[#allocation2 + $0x1a0] sm:$0xff] %v390
    %570 = vst [vmem:[#allocation2 + $0x1a8] sm:$0xff] %v392
    %571 = vst [vmem:[#allocation2 + $0x1b0] sm:$0xff] %v503
    %572 = vst [vmem:[#allocation2 + $0x1b8] sm:$0xff] %v505
    %573 = vst [vmem:[#allocation2 + $0x1c0] sm:$0xff] %v396
    %574 = vst [vmem:[#allocation2 + $0x1c8] sm:$0xff] %v398
    %575 = vst [vmem:[#allocation2 + $0x1d0] sm:$0xff] %v509
    %576 = vst [vmem:[#allocation2 + $0x1d8] sm:$0xff] %v511
    %577 = vst [vmem:[#allocation2 + $0x1e0] sm:$0xff] %v400
    %578 = vst [vmem:[#allocation2 + $0x1e8] sm:$0xff] %v402
    %579 = vst [vmem:[#allocation2 + $0x1f0] sm:$0xff] %v513
    %580 = vst [vmem:[#allocation2 + $0x1f8] sm:$0xff] %v515
    %v581 = vld [vmem:[#allocation9] sm:$0xff]
    %v582 = vld [vmem:[#allocation9 + $0x8] sm:$0xff]
    %v583 = vld [vmem:[#allocation9 + $0x10] sm:$0xff]
    %v584 = vld [vmem:[#allocation9 + $0x18] sm:$0xff]
    %v585 = vld [vmem:[#allocation9 + $0x20] sm:$0xff]
    %v586 = vld [vmem:[#allocation9 + $0x28] sm:$0xff]
    %v587 = vld [vmem:[#allocation9 + $0x30] sm:$0xff]
    %v588 = vld [vmem:[#allocation9 + $0x38] sm:$0xff]
    %v589 = vld [vmem:[#allocation9 + $0x40] sm:$0xff]
    %v590 = vld [vmem:[#allocation9 + $0x48] sm:$0xff]
    %v591 = vld [vmem:[#allocation9 + $0x50] sm:$0xff]
    %v592 = vld [vmem:[#allocation9 + $0x58] sm:$0xff]
    %v593 = vld [vmem:[#allocation9 + $0x60] sm:$0xff]
    %v594 = vld [vmem:[#allocation9 + $0x68] sm:$0xff]
    %v595 = vld [vmem:[#allocation9 + $0x70] sm:$0xff]
    %v596 = vld [vmem:[#allocation9 + $0x78] sm:$0xff]
    %v597 = vld [vmem:[#allocation9 + $0x80] sm:$0xff]
    %v598 = vld [vmem:[#allocation9 + $0x88] sm:$0xff]
    %v599 = vld [vmem:[#allocation9 + $0x90] sm:$0xff]
    %v600 = vld [vmem:[#allocation9 + $0x98] sm:$0xff]
    %v601 = vld [vmem:[#allocation9 + $0xa0] sm:$0xff]
    %v602 = vld [vmem:[#allocation9 + $0xa8] sm:$0xff]
    %v603 = vld [vmem:[#allocation9 + $0xb0] sm:$0xff]
    %v604 = vld [vmem:[#allocation9 + $0xb8] sm:$0xff]
    %v605 = vld [vmem:[#allocation9 + $0xc0] sm:$0xff]
    %v606 = vld [vmem:[#allocation9 + $0xc8] sm:$0xff]
    %v607 = vld [vmem:[#allocation9 + $0xd0] sm:$0xff]
    %v608 = vld [vmem:[#allocation9 + $0xd8] sm:$0xff]
    %v609 = vld [vmem:[#allocation9 + $0xe0] sm:$0xff]
    %v610 = vld [vmem:[#allocation9 + $0xe8] sm:$0xff]
    %v611 = vld [vmem:[#allocation9 + $0xf0] sm:$0xff]
    %v612 = vld [vmem:[#allocation9 + $0xf8] sm:$0xff]
    loop: start=0, step=1, limit=16
    $region114: #{lstm_tagger_forward.1} parent=1 // loop_pre_header
      _
    $region115: #{lstm_tagger_forward.1} parent=1 // loop_header
      %s614 = sphi 0, %s618
      %p615 = scmp.ge.s32.totalorder %s614, 16
      %v619 = vphi 0.0, %v898
      %v620 = vphi 0.0, %v896
    $region116: #{lstm_tagger_forward.1} parent=1 // loop_header_branch
      %617 = sbr.rel (%p615) target = $region120
    $region117: #{lstm_tagger_forward.1} parent=1 // loop_body
      %s621 = smul.u32 %s614, 4
      %s622 = smul.addr %s621, 8
      %s623 = scalar_lea.vmem [#allocation2], %s622
      %v624 = vld [vmem:[%s623] sm:$0xff]
      %v625 = vld [vmem:[%s623 + $0x8] sm:$0xff]
      %v626 = vld [vmem:[%s623 + $0x10] sm:$0xff]
      %v627 = vld [vmem:[%s623 + $0x18] sm:$0xff]
      %v628 = vpack.c.bf16 %v619, %v619
      %v661 = vunpack.c.l.b16 %v581
      %v662 = vunpack.c.h.b16 %v581
      %v663 = vunpack.c.l.b16 %v582
      %v664 = vunpack.c.h.b16 %v582
      %v665 = vunpack.c.l.b16 %v583
      %v666 = vunpack.c.h.b16 %v583
      %v667 = vunpack.c.l.b16 %v584
      %v668 = vunpack.c.h.b16 %v584
      %v669 = vunpack.c.l.b16 %v585
      %v670 = vunpack.c.h.b16 %v585
      %v671 = vunpack.c.l.b16 %v586
      %v672 = vunpack.c.h.b16 %v586
      %v673 = vunpack.c.l.b16 %v587
      %v674 = vunpack.c.h.b16 %v587
      %v675 = vunpack.c.l.b16 %v588
      %v676 = vunpack.c.h.b16 %v588
      %v677 = vunpack.c.l.b16 %v589
      %v678 = vunpack.c.h.b16 %v589
      %v679 = vunpack.c.l.b16 %v590
      %v680 = vunpack.c.h.b16 %v590
      %v681 = vunpack.c.l.b16 %v591
      %v682 = vunpack.c.h.b16 %v591
      %v683 = vunpack.c.l.b16 %v592
      %v684 = vunpack.c.h.b16 %v592
      %v685 = vunpack.c.l.b16 %v593
      %v686 = vunpack.c.h.b16 %v593
      %v687 = vunpack.c.l.b16 %v594
      %v688 = vunpack.c.h.b16 %v594
      %v689 = vunpack.c.l.b16 %v595
      %v690 = vunpack.c.h.b16 %v595
      %v691 = vunpack.c.l.b16 %v596
      %v692 = vunpack.c.h.b16 %v596
      %v693 = vunpack.c.l.b16 %v597
      %v694 = vunpack.c.h.b16 %v597
      %v695 = vunpack.c.l.b16 %v598
      %v696 = vunpack.c.h.b16 %v598
      %v697 = vunpack.c.l.b16 %v599
      %v698 = vunpack.c.h.b16 %v599
      %v699 = vunpack.c.l.b16 %v600
      %v700 = vunpack.c.h.b16 %v600
      %v701 = vunpack.c.l.b16 %v601
      %v702 = vunpack.c.h.b16 %v601
      %v703 = vunpack.c.l.b16 %v602
      %v704 = vunpack.c.h.b16 %v602
      %v705 = vunpack.c.l.b16 %v603
      %v706 = vunpack.c.h.b16 %v603
      %v707 = vunpack.c.l.b16 %v604
      %v708 = vunpack.c.h.b16 %v604
      %v709 = vunpack.c.l.b16 %v605
      %v710 = vunpack.c.h.b16 %v605
      %v711 = vunpack.c.l.b16 %v606
      %v712 = vunpack.c.h.b16 %v606
      %v713 = vunpack.c.l.b16 %v607
      %v714 = vunpack.c.h.b16 %v607
      %v715 = vunpack.c.l.b16 %v608
      %v716 = vunpack.c.h.b16 %v608
      %v717 = vunpack.c.l.b16 %v609
      %v718 = vunpack.c.h.b16 %v609
      %v719 = vunpack.c.l.b16 %v610
      %v720 = vunpack.c.h.b16 %v610
      %v721 = vunpack.c.l.b16 %v611
      %v722 = vunpack.c.h.b16 %v611
      %v723 = vunpack.c.l.b16 %v612
      %v724 = vunpack.c.h.b16 %v612
      %v725 = vpack.c.b16 %v665, %v661
      %v726 = vpack.c.b16 %v666, %v662
      %v727 = vpack.c.b16 %v667, %v663
      %v728 = vpack.c.b16 %v668, %v664
      %v729 = vpack.c.b16 %v673, %v669
      %v730 = vpack.c.b16 %v674, %v670
      %v731 = vpack.c.b16 %v675, %v671
      %v732 = vpack.c.b16 %v676, %v672
      %v733 = vpack.c.b16 %v681, %v677
      %v734 = vpack.c.b16 %v682, %v678
      %v735 = vpack.c.b16 %v683, %v679
      %v736 = vpack.c.b16 %v684, %v680
      %v737 = vpack.c.b16 %v689, %v685
      %v738 = vpack.c.b16 %v690, %v686
      %v739 = vpack.c.b16 %v691, %v687
      %v740 = vpack.c.b16 %v692, %v688
      %v741 = vpack.c.b16 %v697, %v693
      %v742 = vpack.c.b16 %v698, %v694
      %v743 = vpack.c.b16 %v699, %v695
      %v744 = vpack.c.b16 %v700, %v696
      %v745 = vpack.c.b16 %v705, %v701
      %v746 = vpack.c.b16 %v706, %v702
      %v747 = vpack.c.b16 %v707, %v703
      %v748 = vpack.c.b16 %v708, %v704
      %v749 = vpack.c.b16 %v713, %v709
      %v750 = vpack.c.b16 %v714, %v710
      %v751 = vpack.c.b16 %v715, %v711
      %v752 = vpack.c.b16 %v716, %v712
      %v753 = vpack.c.b16 %v721, %v717
      %v754 = vpack.c.b16 %v722, %v718
      %v755 = vpack.c.b16 %v723, %v719
      %v756 = vpack.c.b16 %v724, %v720
      %789 = vmatprep.subr.bf16.mxu0 %v726
      %790 = vmatpush1.bf16.msra.mxu0 %v725
      %791 = vmatprep.subr.bf16.mxu0 %v730
      %792 = vmatpush1.bf16.msra.mxu0 %v729
      %793 = vmatprep.subr.bf16.mxu0 %v734
      %794 = vmatpush1.bf16.msra.mxu0 %v733
      %795 = vmatprep.subr.bf16.mxu0 %v738
      %796 = vmatpush1.bf16.msra.mxu0 %v737
      %797 = vmatprep.subr.bf16.mxu0 %v742
      %798 = vmatpush1.bf16.msra.mxu0 %v741
      %799 = vmatprep.subr.bf16.mxu0 %v746
      %800 = vmatpush1.bf16.msra.mxu0 %v745
      %801 = vmatprep.subr.bf16.mxu0 %v750
      %802 = vmatpush1.bf16.msra.mxu0 %v749
      %803 = vmatprep.subr.bf16.mxu0 %v754
      %804 = vmatpush1.bf16.msra.mxu0 %v753
      %805 = vmatprep.subr.bf16.mxu0 0
      %806 = vmatpush1.bf16.msra.mxu0 0
      %807 = vmatprep.subr.bf16.mxu0 0
      %808 = vmatpush1.bf16.msra.mxu0 0
      %809 = vmatprep.subr.bf16.mxu0 0
      %810 = vmatpush1.bf16.msra.mxu0 0
      %811 = vmatprep.subr.bf16.mxu0 0
      %812 = vmatpush1.bf16.msra.mxu0 0
      %813 = vmatprep.subr.bf16.mxu0 0
      %814 = vmatpush1.bf16.msra.mxu0 0
      %815 = vmatprep.subr.bf16.mxu0 0
      %816 = vmatpush1.bf16.msra.mxu0 0
      %817 = vmatprep.subr.bf16.mxu0 0
      %818 = vmatpush1.bf16.msra.mxu0 0
      %819 = vmatprep.subr.bf16.mxu0 0
      %820 = vmatpush1.bf16.msra.mxu0 0
      %821 = vmatprep.mubr.bf16.mxu0 0
      %822 = vmatmul.mubr.bf16.gmra.mrb[0].mxu0 %v628
      %v823 = vpop.f32.mrb[0].mxu0
      %v824 = vadd.f32 0.0, %v823
      %v825 = vpop.f32.mrb[0].mxu0
      %v826 = vadd.f32 0.0, %v825
      %v827 = vpop.f32.mrb[0].mxu0
      %v828 = vpop.f32.mrb[0].mxu0
      %829 = vdwg.mxu0
      %830 = vmatprep.subr.bf16.mxu0 %v728
      %831 = vmatpush1.bf16.msra.mxu0 %v727
      %832 = vmatprep.subr.bf16.mxu0 %v732
      %833 = vmatpush1.bf16.msra.mxu0 %v731
      %834 = vmatprep.subr.bf16.mxu0 %v736
      %835 = vmatpush1.bf16.msra.mxu0 %v735
      %836 = vmatprep.subr.bf16.mxu0 %v740
      %837 = vmatpush1.bf16.msra.mxu0 %v739
      %838 = vmatprep.subr.bf16.mxu0 %v744
      %839 = vmatpush1.bf16.msra.mxu0 %v743
      %840 = vmatprep.subr.bf16.mxu0 %v748
      %841 = vmatpush1.bf16.msra.mxu0 %v747
      %842 = vmatprep.subr.bf16.mxu0 %v752
      %843 = vmatpush1.bf16.msra.mxu0 %v751
      %844 = vmatprep.subr.bf16.mxu0 %v756
      %845 = vmatpush1.bf16.msra.mxu0 %v755
      %846 = vmatprep.subr.bf16.mxu0 0
      %847 = vmatpush1.bf16.msra.mxu0 0
      %848 = vmatprep.subr.bf16.mxu0 0
      %849 = vmatpush1.bf16.msra.mxu0 0
      %850 = vmatprep.subr.bf16.mxu0 0
      %851 = vmatpush1.bf16.msra.mxu0 0
      %852 = vmatprep.subr.bf16.mxu0 0
      %853 = vmatpush1.bf16.msra.mxu0 0
      %854 = vmatprep.subr.bf16.mxu0 0
      %855 = vmatpush1.bf16.msra.mxu0 0
      %856 = vmatprep.subr.bf16.mxu0 0
      %857 = vmatpush1.bf16.msra.mxu0 0
      %858 = vmatprep.subr.bf16.mxu0 0
      %859 = vmatpush1.bf16.msra.mxu0 0
      %860 = vmatprep.subr.bf16.mxu0 0
      %861 = vmatpush1.bf16.msra.mxu0 0
      %862 = vmatprep.mubr.bf16.mxu0 0
      %863 = vmatmul.mubr.bf16.gmra.mrb[0].mxu0 %v628
      %v864 = vpop.f32.mrb[0].mxu0
      %v865 = vadd.f32 0.0, %v864
      %v866 = vpop.f32.mrb[0].mxu0
      %v867 = vadd.f32 0.0, %v866
      %v868 = vpop.f32.mrb[0].mxu0
      %v869 = vpop.f32.mrb[0].mxu0
      %870 = vdwg.mxu0
      %v871 = vadd.f32 %v624, %v824
      %v872 = vadd.f32 %v625, %v826
      %v873 = vadd.f32 %v626, %v865
      %v874 = vadd.f32 %v627, %v867
      %v875 = vxor.u32 %v871, 2147483648
      %v876 = vmul.f32 %v875, 1.442695
      %v877 = vpow.pop %v876
      %v878 = vadd.f32 %v877, 1.0
      %v879 = vrcp.pop %v878
      %v880 = vmul.f32 1.0, %v879
      %v881 = vxor.u32 %v872, 2147483648
      %v882 = vmul.f32 %v881, 1.442695
      %v883 = vpow.pop %v882
      %v884 = vadd.f32 %v883, 1.0
      %v885 = vrcp.pop %v884
      %v886 = vmul.f32 1.0, %v885
      %v887 = vtanh.pop %v873
      %v888 = vxor.u32 %v874, 2147483648
      %v889 = vmul.f32 %v888, 1.442695
      %v890 = vpow.pop %v889
      %v891 = vadd.f32 %v890, 1.0
      %v892 = vrcp.pop %v891
      %v893 = vmul.f32 1.0, %v892
      %v894 = vmul.f32 %v886, %v620
      %v895 = vmul.f32 %v880, %v887
      %v896 = vadd.f32 %v894, %v895
      %v897 = vtanh.pop %v896
      %v898 = vmul.f32 %v893, %v897
      %s899 = smul.u32 %s614, 8
      %s900 = scalar_lea.vmem [#allocation3], %s899
      %901 = vst [vmem:[%s900] sm:$0xff] %v898
    $region118: #{lstm_tagger_forward.1} parent=1 // loop_footer
      %s618 = sadd.s32 1, %s614
    $region119: #{lstm_tagger_forward.1} parent=1 // loop_footer_branch
      %613 = sbr.rel target = $region115
    $region120: #{lstm_tagger_forward.1} parent=1 // loop_exit
      _
    %v902 = vld [vmem:[#allocation11] sm:$0xff]
    %v903 = vld [vmem:[#allocation11 + $0x8] sm:$0xff]
    %v904 = vld [vmem:[#allocation11 + $0x10] sm:$0xff]
    %v905 = vld [vmem:[#allocation11 + $0x18] sm:$0xff]
    %v906 = vld [vmem:[%s6] sm:$0xf]
    %v908 = vlaneseq
    %v909 = vshrl.u32 %v908, 7
    %v910 = vsub.s32 0, %v909
    %v911 = vrot.slane %v906, %v910
    %v912 = vlaneseq
    %v913 = vshrl.u32 %v912, 7
    %v914 = vsub.s32 1, %v913
    %v915 = vrot.slane %v906, %v914
    %v916 = vlaneseq
    %v917 = vshrl.u32 %v916, 7
    %v918 = vsub.s32 2, %v917
    %v919 = vrot.slane %v906, %v918
    %v920 = vlaneseq
    %v921 = vshrl.u32 %v920, 7
    %v922 = vsub.s32 3, %v921
    %v923 = vrot.slane %v906, %v922
    %v932 = vunpack.c.l.b16 %v902
    %v933 = vunpack.c.h.b16 %v902
    %v934 = vunpack.c.l.b16 %v903
    %v935 = vunpack.c.h.b16 %v903
    %v936 = vunpack.c.l.b16 %v904
    %v937 = vunpack.c.h.b16 %v904
    %v938 = vunpack.c.l.b16 %v905
    %v939 = vunpack.c.h.b16 %v905
    %v940 = vpack.c.b16 %v936, %v932
    %v941 = vpack.c.b16 %v937, %v933
    %v942 = vpack.c.b16 %v938, %v934
    %v943 = vpack.c.b16 %v939, %v935
    %948 = vmatprep.subr.bf16.mxu0 %v941
    %949 = vmatpush1.bf16.msra.mxu0 %v940
    %950 = vmatprep.subr.bf16.mxu0 0
    %951 = vmatpush1.bf16.msra.mxu0 0
    %952 = vmatprep.subr.bf16.mxu0 0
    %953 = vmatpush1.bf16.msra.mxu0 0
    %954 = vmatprep.subr.bf16.mxu0 0
    %955 = vmatpush1.bf16.msra.mxu0 0
    %956 = vmatprep.subr.bf16.mxu0 0
    %957 = vmatpush1.bf16.msra.mxu0 0
    %958 = vmatprep.subr.bf16.mxu0 0
    %959 = vmatpush1.bf16.msra.mxu0 0
    %960 = vmatprep.subr.bf16.mxu0 0
    %961 = vmatpush1.bf16.msra.mxu0 0
    %962 = vmatprep.subr.bf16.mxu0 0
    %963 = vmatpush1.bf16.msra.mxu0 0
    %964 = vmatprep.subr.bf16.mxu0 0
    %965 = vmatpush1.bf16.msra.mxu0 0
    %966 = vmatprep.subr.bf16.mxu0 0
    %967 = vmatpush1.bf16.msra.mxu0 0
    %968 = vmatprep.subr.bf16.mxu0 0
    %969 = vmatpush1.bf16.msra.mxu0 0
    %970 = vmatprep.subr.bf16.mxu0 0
    %971 = vmatpush1.bf16.msra.mxu0 0
    %972 = vmatprep.subr.bf16.mxu0 0
    %973 = vmatpush1.bf16.msra.mxu0 0
    %974 = vmatprep.subr.bf16.mxu0 0
    %975 = vmatpush1.bf16.msra.mxu0 0
    %976 = vmatprep.subr.bf16.mxu0 0
    %977 = vmatpush1.bf16.msra.mxu0 0
    %978 = vmatprep.subr.bf16.mxu0 0
    %979 = vmatpush1.bf16.msra.mxu0 0
    %980 = vmatprep.mubr.bf16.mxu0 0
    %981 = vmatmul.mubr.bf16.gmra.mrb[0].mxu0 %v268
    %v982 = vpop.f32.mrb[0].mxu0
    %v983 = vadd.f32 %v911, %v982
    %v984 = vpop.f32.mrb[0].mxu0
    %v985 = vadd.f32 %v915, %v984
    %v986 = vpop.f32.mrb[0].mxu0
    %v987 = vadd.f32 %v911, %v986
    %v988 = vpop.f32.mrb[0].mxu0
    %v989 = vadd.f32 %v915, %v988
    %990 = vmatprep.mubr.bf16.mxu0 0
    %991 = vmatmul.mubr.bf16.gmra.mrb[0].mxu0 %v271
    %v992 = vpop.f32.mrb[0].mxu0
    %v993 = vadd.f32 %v911, %v992
    %v994 = vpop.f32.mrb[0].mxu0
    %v995 = vadd.f32 %v915, %v994
    %v996 = vpop.f32.mrb[0].mxu0
    %v997 = vadd.f32 %v911, %v996
    %v998 = vpop.f32.mrb[0].mxu0
    %v999 = vadd.f32 %v915, %v998
    %1000 = vmatprep.mubr.bf16.mxu0 0
    %1001 = vmatmul.mubr.bf16.gmra.mrb[0].mxu0 %v274
    %v1002 = vpop.f32.mrb[0].mxu0
    %v1003 = vadd.f32 %v911, %v1002
    %v1004 = vpop.f32.mrb[0].mxu0
    %v1005 = vadd.f32 %v915, %v1004
    %v1006 = vpop.f32.mrb[0].mxu0
    %v1007 = vadd.f32 %v911, %v1006
    %v1008 = vpop.f32.mrb[0].mxu0
    %v1009 = vadd.f32 %v915, %v1008
    %1010 = vmatprep.mubr.bf16.mxu0 0
    %1011 = vmatmul.mubr.bf16.gmra.mrb[0].mxu0 %v277
    %v1012 = vpop.f32.mrb[0].mxu0
    %v1013 = vadd.f32 %v911, %v1012
    %v1014 = vpop.f32.mrb[0].mxu0
    %v1015 = vadd.f32 %v915, %v1014
    %v1016 = vpop.f32.mrb[0].mxu0
    %v1017 = vadd.f32 %v911, %v1016
    %v1018 = vpop.f32.mrb[0].mxu0
    %v1019 = vadd.f32 %v915, %v1018
    %1020 = vmatprep.mubr.bf16.mxu0 0
    %1021 = vmatmul.mubr.bf16.gmra.mrb[0].mxu0 %v280
    %v1022 = vpop.f32.mrb[0].mxu0
    %v1023 = vadd.f32 %v911, %v1022
    %v1024 = vpop.f32.mrb[0].mxu0
    %v1025 = vadd.f32 %v915, %v1024
    %v1026 = vpop.f32.mrb[0].mxu0
    %v1027 = vadd.f32 %v911, %v1026
    %v1028 = vpop.f32.mrb[0].mxu0
    %v1029 = vadd.f32 %v915, %v1028
    %1030 = vmatprep.mubr.bf16.mxu0 0
    %1031 = vmatmul.mubr.bf16.gmra.mrb[0].mxu0 %v283
    %v1032 = vpop.f32.mrb[0].mxu0
    %v1033 = vadd.f32 %v911, %v1032
    %v1034 = vpop.f32.mrb[0].mxu0
    %v1035 = vadd.f32 %v915, %v1034
    %v1036 = vpop.f32.mrb[0].mxu0
    %v1037 = vadd.f32 %v911, %v1036
    %v1038 = vpop.f32.mrb[0].mxu0
    %v1039 = vadd.f32 %v915, %v1038
    %1040 = vmatprep.mubr.bf16.mxu0 0
    %1041 = vmatmul.mubr.bf16.gmra.mrb[0].mxu0 %v286
    %v1042 = vpop.f32.mrb[0].mxu0
    %v1043 = vadd.f32 %v911, %v1042
    %v1044 = vpop.f32.mrb[0].mxu0
    %v1045 = vadd.f32 %v915, %v1044
    %v1046 = vpop.f32.mrb[0].mxu0
    %v1047 = vadd.f32 %v911, %v1046
    %v1048 = vpop.f32.mrb[0].mxu0
    %v1049 = vadd.f32 %v915, %v1048
    %1050 = vmatprep.mubr.bf16.mxu0 0
    %1051 = vmatmul.mubr.bf16.gmra.mrb[0].mxu0 %v289
    %v1052 = vpop.f32.mrb[0].mxu0
    %v1053 = vadd.f32 %v911, %v1052
    %v1054 = vpop.f32.mrb[0].mxu0
    %v1055 = vadd.f32 %v915, %v1054
    %v1056 = vpop.f32.mrb[0].mxu0
    %v1057 = vadd.f32 %v911, %v1056
    %v1058 = vpop.f32.mrb[0].mxu0
    %v1059 = vadd.f32 %v915, %v1058
    %1060 = vdwg.mxu0
    %1061 = vmatprep.subr.bf16.mxu0 %v943
    %1062 = vmatpush1.bf16.msra.mxu0 %v942
    %1063 = vmatprep.subr.bf16.mxu0 0
    %1064 = vmatpush1.bf16.msra.mxu0 0
    %1065 = vmatprep.subr.bf16.mxu0 0
    %1066 = vmatpush1.bf16.msra.mxu0 0
    %1067 = vmatprep.subr.bf16.mxu0 0
    %1068 = vmatpush1.bf16.msra.mxu0 0
    %1069 = vmatprep.subr.bf16.mxu0 0
    %1070 = vmatpush1.bf16.msra.mxu0 0
    %1071 = vmatprep.subr.bf16.mxu0 0
    %1072 = vmatpush1.bf16.msra.mxu0 0
    %1073 = vmatprep.subr.bf16.mxu0 0
    %1074 = vmatpush1.bf16.msra.mxu0 0
    %1075 = vmatprep.subr.bf16.mxu0 0
    %1076 = vmatpush1.bf16.msra.mxu0 0
    %1077 = vmatprep.subr.bf16.mxu0 0
    %1078 = vmatpush1.bf16.msra.mxu0 0
    %1079 = vmatprep.subr.bf16.mxu0 0
    %1080 = vmatpush1.bf16.msra.mxu0 0
    %1081 = vmatprep.subr.bf16.mxu0 0
    %1082 = vmatpush1.bf16.msra.mxu0 0
    %1083 = vmatprep.subr.bf16.mxu0 0
    %1084 = vmatpush1.bf16.msra.mxu0 0
    %1085 = vmatprep.subr.bf16.mxu0 0
    %1086 = vmatpush1.bf16.msra.mxu0 0
    %1087 = vmatprep.subr.bf16.mxu0 0
    %1088 = vmatpush1.bf16.msra.mxu0 0
    %1089 = vmatprep.subr.bf16.mxu0 0
    %1090 = vmatpush1.bf16.msra.mxu0 0
    %1091 = vmatprep.subr.bf16.mxu0 0
    %1092 = vmatpush1.bf16.msra.mxu0 0
    %1093 = vmatprep.mubr.bf16.mxu0 0
    %1094 = vmatmul.mubr.bf16.gmra.mrb[0].mxu0 %v268
    %v1095 = vpop.f32.mrb[0].mxu0
    %v1096 = vadd.f32 %v919, %v1095
    %v1097 = vpop.f32.mrb[0].mxu0
    %v1098 = vadd.f32 %v923, %v1097
    %v1099 = vpop.f32.mrb[0].mxu0
    %v1100 = vadd.f32 %v919, %v1099
    %v1101 = vpop.f32.mrb[0].mxu0
    %v1102 = vadd.f32 %v923, %v1101
    %1103 = vmatprep.mubr.bf16.mxu0 0
    %1104 = vmatmul.mubr.bf16.gmra.mrb[0].mxu0 %v271
    %v1105 = vpop.f32.mrb[0].mxu0
    %v1106 = vadd.f32 %v919, %v1105
    %v1107 = vpop.f32.mrb[0].mxu0
    %v1108 = vadd.f32 %v923, %v1107
    %v1109 = vpop.f32.mrb[0].mxu0
    %v1110 = vadd.f32 %v919, %v1109
    %v1111 = vpop.f32.mrb[0].mxu0
    %v1112 = vadd.f32 %v923, %v1111
    %1113 = vmatprep.mubr.bf16.mxu0 0
    %1114 = vmatmul.mubr.bf16.gmra.mrb[0].mxu0 %v274
    %v1115 = vpop.f32.mrb[0].mxu0
    %v1116 = vadd.f32 %v919, %v1115
    %v1117 = vpop.f32.mrb[0].mxu0
    %v1118 = vadd.f32 %v923, %v1117
    %v1119 = vpop.f32.mrb[0].mxu0
    %v1120 = vadd.f32 %v919, %v1119
    %v1121 = vpop.f32.mrb[0].mxu0
    %v1122 = vadd.f32 %v923, %v1121
    %1123 = vmatprep.mubr.bf16.mxu0 0
    %1124 = vmatmul.mubr.bf16.gmra.mrb[0].mxu0 %v277
    %v1125 = vpop.f32.mrb[0].mxu0
    %v1126 = vadd.f32 %v919, %v1125
    %v1127 = vpop.f32.mrb[0].mxu0
    %v1128 = vadd.f32 %v923, %v1127
    %v1129 = vpop.f32.mrb[0].mxu0
    %v1130 = vadd.f32 %v919, %v1129
    %v1131 = vpop.f32.mrb[0].mxu0
    %v1132 = vadd.f32 %v923, %v1131
    %1133 = vmatprep.mubr.bf16.mxu0 0
    %1134 = vmatmul.mubr.bf16.gmra.mrb[0].mxu0 %v280
    %v1135 = vpop.f32.mrb[0].mxu0
    %v1136 = vadd.f32 %v919, %v1135
    %v1137 = vpop.f32.mrb[0].mxu0
    %v1138 = vadd.f32 %v923, %v1137
    %v1139 = vpop.f32.mrb[0].mxu0
    %v1140 = vadd.f32 %v919, %v1139
    %v1141 = vpop.f32.mrb[0].mxu0
    %v1142 = vadd.f32 %v923, %v1141
    %1143 = vmatprep.mubr.bf16.mxu0 0
    %1144 = vmatmul.mubr.bf16.gmra.mrb[0].mxu0 %v283
    %v1145 = vpop.f32.mrb[0].mxu0
    %v1146 = vadd.f32 %v919, %v1145
    %v1147 = vpop.f32.mrb[0].mxu0
    %v1148 = vadd.f32 %v923, %v1147
    %v1149 = vpop.f32.mrb[0].mxu0
    %v1150 = vadd.f32 %v919, %v1149
    %v1151 = vpop.f32.mrb[0].mxu0
    %v1152 = vadd.f32 %v923, %v1151
    %1153 = vmatprep.mubr.bf16.mxu0 0
    %1154 = vmatmul.mubr.bf16.gmra.mrb[0].mxu0 %v286
    %v1155 = vpop.f32.mrb[0].mxu0
    %v1156 = vadd.f32 %v919, %v1155
    %v1157 = vpop.f32.mrb[0].mxu0
    %v1158 = vadd.f32 %v923, %v1157
    %v1159 = vpop.f32.mrb[0].mxu0
    %v1160 = vadd.f32 %v919, %v1159
    %v1161 = vpop.f32.mrb[0].mxu0
    %v1162 = vadd.f32 %v923, %v1161
    %1163 = vmatprep.mubr.bf16.mxu0 0
    %1164 = vmatmul.mubr.bf16.gmra.mrb[0].mxu0 %v289
    %v1165 = vpop.f32.mrb[0].mxu0
    %v1166 = vadd.f32 %v919, %v1165
    %v1167 = vpop.f32.mrb[0].mxu0
    %v1168 = vadd.f32 %v923, %v1167
    %v1169 = vpop.f32.mrb[0].mxu0
    %v1170 = vadd.f32 %v919, %v1169
    %v1171 = vpop.f32.mrb[0].mxu0
    %v1172 = vadd.f32 %v923, %v1171
    %1173 = vdwg.mxu0
    %1174 = vst [vmem:[#allocation2] sm:$0xff] %v983
    %1175 = vst [vmem:[#allocation2 + $0x8] sm:$0xff] %v985
    %1176 = vst [vmem:[#allocation2 + $0x10] sm:$0xff] %v1096
    %1177 = vst [vmem:[#allocation2 + $0x18] sm:$0xff] %v1098
    %1178 = vst [vmem:[#allocation2 + $0x20] sm:$0xff] %v987
    %1179 = vst [vmem:[#allocation2 + $0x28] sm:$0xff] %v989
    %1180 = vst [vmem:[#allocation2 + $0x30] sm:$0xff] %v1100
    %1181 = vst [vmem:[#allocation2 + $0x38] sm:$0xff] %v1102
    %1182 = vst [vmem:[#allocation2 + $0x40] sm:$0xff] %v993
    %1183 = vst [vmem:[#allocation2 + $0x48] sm:$0xff] %v995
    %1184 = vst [vmem:[#allocation2 + $0x50] sm:$0xff] %v1106
    %1185 = vst [vmem:[#allocation2 + $0x58] sm:$0xff] %v1108
    %1186 = vst [vmem:[#allocation2 + $0x60] sm:$0xff] %v997
    %1187 = vst [vmem:[#allocation2 + $0x68] sm:$0xff] %v999
    %1188 = vst [vmem:[#allocation2 + $0x70] sm:$0xff] %v1110
    %1189 = vst [vmem:[#allocation2 + $0x78] sm:$0xff] %v1112
    %1190 = vst [vmem:[#allocation2 + $0x80] sm:$0xff] %v1003
    %1191 = vst [vmem:[#allocation2 + $0x88] sm:$0xff] %v1005
    %1192 = vst [vmem:[#allocation2 + $0x90] sm:$0xff] %v1116
    %1193 = vst [vmem:[#allocation2 + $0x98] sm:$0xff] %v1118
    %1194 = vst [vmem:[#allocation2 + $0xa0] sm:$0xff] %v1007
    %1195 = vst [vmem:[#allocation2 + $0xa8] sm:$0xff] %v1009
    %1196 = vst [vmem:[#allocation2 + $0xb0] sm:$0xff] %v1120
    %1197 = vst [vmem:[#allocation2 + $0xb8] sm:$0xff] %v1122
    %1198 = vst [vmem:[#allocation2 + $0xc0] sm:$0xff] %v1013
    %1199 = vst [vmem:[#allocation2 + $0xc8] sm:$0xff] %v1015
    %1200 = vst [vmem:[#allocation2 + $0xd0] sm:$0xff] %v1126
    %1201 = vst [vmem:[#allocation2 + $0xd8] sm:$0xff] %v1128
    %1202 = vst [vmem:[#allocation2 + $0xe0] sm:$0xff] %v1017
    %1203 = vst [vmem:[#allocation2 + $0xe8] sm:$0xff] %v1019
    %1204 = vst [vmem:[#allocation2 + $0xf0] sm:$0xff] %v1130
    %1205 = vst [vmem:[#allocation2 + $0xf8] sm:$0xff] %v1132
    %1206 = vst [vmem:[#allocation2 + $0x100] sm:$0xff] %v1023
    %1207 = vst [vmem:[#allocation2 + $0x108] sm:$0xff] %v1025
    %1208 = vst [vmem:[#allocation2 + $0x110] sm:$0xff] %v1136
    %1209 = vst [vmem:[#allocation2 + $0x118] sm:$0xff] %v1138
    %1210 = vst [vmem:[#allocation2 + $0x120] sm:$0xff] %v1027
    %1211 = vst [vmem:[#allocation2 + $0x128] sm:$0xff] %v1029
    %1212 = vst [vmem:[#allocation2 + $0x130] sm:$0xff] %v1140
    %1213 = vst [vmem:[#allocation2 + $0x138] sm:$0xff] %v1142
    %1214 = vst [vmem:[#allocation2 + $0x140] sm:$0xff] %v1033
    %1215 = vst [vmem:[#allocation2 + $0x148] sm:$0xff] %v1035
    %1216 = vst [vmem:[#allocation2 + $0x150] sm:$0xff] %v1146
    %1217 = vst [vmem:[#allocation2 + $0x158] sm:$0xff] %v1148
    %1218 = vst [vmem:[#allocation2 + $0x160] sm:$0xff] %v1037
    %1219 = vst [vmem:[#allocation2 + $0x168] sm:$0xff] %v1039
    %1220 = vst [vmem:[#allocation2 + $0x170] sm:$0xff] %v1150
    %1221 = vst [vmem:[#allocation2 + $0x178] sm:$0xff] %v1152
    %1222 = vst [vmem:[#allocation2 + $0x180] sm:$0xff] %v1043
    %1223 = vst [vmem:[#allocation2 + $0x188] sm:$0xff] %v1045
    %1224 = vst [vmem:[#allocation2 + $0x190] sm:$0xff] %v1156
    %1225 = vst [vmem:[#allocation2 + $0x198] sm:$0xff] %v1158
    %1226 = vst [vmem:[#allocation2 + $0x1a0] sm:$0xff] %v1047
    %1227 = vst [vmem:[#allocation2 + $0x1a8] sm:$0xff] %v1049
    %1228 = vst [vmem:[#allocation2 + $0x1b0] sm:$0xff] %v1160
    %1229 = vst [vmem:[#allocation2 + $0x1b8] sm:$0xff] %v1162
    %1230 = vst [vmem:[#allocation2 + $0x1c0] sm:$0xff] %v1053
    %1231 = vst [vmem:[#allocation2 + $0x1c8] sm:$0xff] %v1055
    %1232 = vst [vmem:[#allocation2 + $0x1d0] sm:$0xff] %v1166
    %1233 = vst [vmem:[#allocation2 + $0x1d8] sm:$0xff] %v1168
    %1234 = vst [vmem:[#allocation2 + $0x1e0] sm:$0xff] %v1057
    %1235 = vst [vmem:[#allocation2 + $0x1e8] sm:$0xff] %v1059
    %1236 = vst [vmem:[#allocation2 + $0x1f0] sm:$0xff] %v1170
    %1237 = vst [vmem:[#allocation2 + $0x1f8] sm:$0xff] %v1172
    %v1238 = vld [vmem:[#allocation12] sm:$0xff]
    %v1239 = vld [vmem:[#allocation12 + $0x8] sm:$0xff]
    %v1240 = vld [vmem:[#allocation12 + $0x10] sm:$0xff]
    %v1241 = vld [vmem:[#allocation12 + $0x18] sm:$0xff]
    %v1242 = vld [vmem:[#allocation12 + $0x20] sm:$0xff]
    %v1243 = vld [vmem:[#allocation12 + $0x28] sm:$0xff]
    %v1244 = vld [vmem:[#allocation12 + $0x30] sm:$0xff]
    %v1245 = vld [vmem:[#allocation12 + $0x38] sm:$0xff]
    %v1246 = vld [vmem:[#allocation12 + $0x40] sm:$0xff]
    %v1247 = vld [vmem:[#allocation12 + $0x48] sm:$0xff]
    %v1248 = vld [vmem:[#allocation12 + $0x50] sm:$0xff]
    %v1249 = vld [vmem:[#allocation12 + $0x58] sm:$0xff]
    %v1250 = vld [vmem:[#allocation12 + $0x60] sm:$0xff]
    %v1251 = vld [vmem:[#allocation12 + $0x68] sm:$0xff]
    %v1252 = vld [vmem:[#allocation12 + $0x70] sm:$0xff]
    %v1253 = vld [vmem:[#allocation12 + $0x78] sm:$0xff]
    %v1254 = vld [vmem:[#allocation12 + $0x80] sm:$0xff]
    %v1255 = vld [vmem:[#allocation12 + $0x88] sm:$0xff]
    %v1256 = vld [vmem:[#allocation12 + $0x90] sm:$0xff]
    %v1257 = vld [vmem:[#allocation12 + $0x98] sm:$0xff]
    %v1258 = vld [vmem:[#allocation12 + $0xa0] sm:$0xff]
    %v1259 = vld [vmem:[#allocation12 + $0xa8] sm:$0xff]
    %v1260 = vld [vmem:[#allocation12 + $0xb0] sm:$0xff]
    %v1261 = vld [vmem:[#allocation12 + $0xb8] sm:$0xff]
    %v1262 = vld [vmem:[#allocation12 + $0xc0] sm:$0xff]
    %v1263 = vld [vmem:[#allocation12 + $0xc8] sm:$0xff]
    %v1264 = vld [vmem:[#allocation12 + $0xd0] sm:$0xff]
    %v1265 = vld [vmem:[#allocation12 + $0xd8] sm:$0xff]
    %v1266 = vld [vmem:[#allocation12 + $0xe0] sm:$0xff]
    %v1267 = vld [vmem:[#allocation12 + $0xe8] sm:$0xff]
    %v1268 = vld [vmem:[#allocation12 + $0xf0] sm:$0xff]
    %v1269 = vld [vmem:[#allocation12 + $0xf8] sm:$0xff]
    loop: start=0, step=1, limit=16
    $region121: #{lstm_tagger_forward.1} parent=1 // loop_pre_header
      _
    $region122: #{lstm_tagger_forward.1} parent=1 // loop_header
      %s1271 = sphi 0, %s1275
      %p1272 = scmp.ge.s32.totalorder %s1271, 16
      %v1276 = vphi 0.0, %v1556
      %v1277 = vphi 0.0, %v1554
    $region123: #{lstm_tagger_forward.1} parent=1 // loop_header_branch
      %1274 = sbr.rel (%p1272) target = $region127
    $region124: #{lstm_tagger_forward.1} parent=1 // loop_body
      %s1278 = ssub.s32 15, %s1271
      %s1279 = smul.u32 %s1278, 4
      %s1280 = smul.addr %s1279, 8
      %s1281 = scalar_lea.vmem [#allocation2], %s1280
      %v1282 = vld [vmem:[%s1281] sm:$0xff]
      %v1283 = vld [vmem:[%s1281 + $0x8] sm:$0xff]
      %v1284 = vld [vmem:[%s1281 + $0x10] sm:$0xff]
      %v1285 = vld [vmem:[%s1281 + $0x18] sm:$0xff]
      %v1286 = vpack.c.bf16 %v1276, %v1276
      %v1319 = vunpack.c.l.b16 %v1238
      %v1320 = vunpack.c.h.b16 %v1238
      %v1321 = vunpack.c.l.b16 %v1239
      %v1322 = vunpack.c.h.b16 %v1239
      %v1323 = vunpack.c.l.b16 %v1240
      %v1324 = vunpack.c.h.b16 %v1240
      %v1325 = vunpack.c.l.b16 %v1241
      %v1326 = vunpack.c.h.b16 %v1241
      %v1327 = vunpack.c.l.b16 %v1242
      %v1328 = vunpack.c.h.b16 %v1242
      %v1329 = vunpack.c.l.b16 %v1243
      %v1330 = vunpack.c.h.b16 %v1243
      %v1331 = vunpack.c.l.b16 %v1244
      %v1332 = vunpack.c.h.b16 %v1244
      %v1333 = vunpack.c.l.b16 %v1245
      %v1334 = vunpack.c.h.b16 %v1245
      %v1335 = vunpack.c.l.b16 %v1246
      %v1336 = vunpack.c.h.b16 %v1246
      %v1337 = vunpack.c.l.b16 %v1247
      %v1338 = vunpack.c.h.b16 %v1247
      %v1339 = vunpack.c.l.b16 %v1248
      %v1340 = vunpack.c.h.b16 %v1248
      %v1341 = vunpack.c.l.b16 %v1249
      %v1342 = vunpack.c.h.b16 %v1249
      %v1343 = vunpack.c.l.b16 %v1250
      %v1344 = vunpack.c.h.b16 %v1250
      %v1345 = vunpack.c.l.b16 %v1251
      %v1346 = vunpack.c.h.b16 %v1251
      %v1347 = vunpack.c.l.b16 %v1252
      %v1348 = vunpack.c.h.b16 %v1252
      %v1349 = vunpack.c.l.b16 %v1253
      %v1350 = vunpack.c.h.b16 %v1253
      %v1351 = vunpack.c.l.b16 %v1254
      %v1352 = vunpack.c.h.b16 %v1254
      %v1353 = vunpack.c.l.b16 %v1255
      %v1354 = vunpack.c.h.b16 %v1255
      %v1355 = vunpack.c.l.b16 %v1256
      %v1356 = vunpack.c.h.b16 %v1256
      %v1357 = vunpack.c.l.b16 %v1257
      %v1358 = vunpack.c.h.b16 %v1257
      %v1359 = vunpack.c.l.b16 %v1258
      %v1360 = vunpack.c.h.b16 %v1258
      %v1361 = vunpack.c.l.b16 %v1259
      %v1362 = vunpack.c.h.b16 %v1259
      %v1363 = vunpack.c.l.b16 %v1260
      %v1364 = vunpack.c.h.b16 %v1260
      %v1365 = vunpack.c.l.b16 %v1261
      %v1366 = vunpack.c.h.b16 %v1261
      %v1367 = vunpack.c.l.b16 %v1262
      %v1368 = vunpack.c.h.b16 %v1262
      %v1369 = vunpack.c.l.b16 %v1263
      %v1370 = vunpack.c.h.b16 %v1263
      %v1371 = vunpack.c.l.b16 %v1264
      %v1372 = vunpack.c.h.b16 %v1264
      %v1373 = vunpack.c.l.b16 %v1265
      %v1374 = vunpack.c.h.b16 %v1265
      %v1375 = vunpack.c.l.b16 %v1266
      %v1376 = vunpack.c.h.b16 %v1266
      %v1377 = vunpack.c.l.b16 %v1267
      %v1378 = vunpack.c.h.b16 %v1267
      %v1379 = vunpack.c.l.b16 %v1268
      %v1380 = vunpack.c.h.b16 %v1268
      %v1381 = vunpack.c.l.b16 %v1269
      %v1382 = vunpack.c.h.b16 %v1269
      %v1383 = vpack.c.b16 %v1323, %v1319
      %v1384 = vpack.c.b16 %v1324, %v1320
      %v1385 = vpack.c.b16 %v1325, %v1321
      %v1386 = vpack.c.b16 %v1326, %v1322
      %v1387 = vpack.c.b16 %v1331, %v1327
      %v1388 = vpack.c.b16 %v1332, %v1328
      %v1389 = vpack.c.b16 %v1333, %v1329
      %v1390 = vpack.c.b16 %v1334, %v1330
      %v1391 = vpack.c.b16 %v1339, %v1335
      %v1392 = vpack.c.b16 %v1340, %v1336
      %v1393 = vpack.c.b16 %v1341, %v1337
      %v1394 = vpack.c.b16 %v1342, %v1338
      %v1395 = vpack.c.b16 %v1347, %v1343
      %v1396 = vpack.c.b16 %v1348, %v1344
      %v1397 = vpack.c.b16 %v1349, %v1345
      %v1398 = vpack.c.b16 %v1350, %v1346
      %v1399 = vpack.c.b16 %v1355, %v1351
      %v1400 = vpack.c.b16 %v1356, %v1352
      %v1401 = vpack.c.b16 %v1357, %v1353
      %v1402 = vpack.c.b16 %v1358, %v1354
      %v1403 = vpack.c.b16 %v1363, %v1359
      %v1404 = vpack.c.b16 %v1364, %v1360
      %v1405 = vpack.c.b16 %v1365, %v1361
      %v1406 = vpack.c.b16 %v1366, %v1362
      %v1407 = vpack.c.b16 %v1371, %v1367
      %v1408 = vpack.c.b16 %v1372, %v1368
      %v1409 = vpack.c.b16 %v1373, %v1369
      %v1410 = vpack.c.b16 %v1374, %v1370
      %v1411 = vpack.c.b16 %v1379, %v1375
      %v1412 = vpack.c.b16 %v1380, %v1376
      %v1413 = vpack.c.b16 %v1381, %v1377
      %v1414 = vpack.c.b16 %v1382, %v1378
      %1447 = vmatprep.subr.bf16.mxu0 %v1384
      %1448 = vmatpush1.bf16.msra.mxu0 %v1383
      %1449 = vmatprep.subr.bf16.mxu0 %v1388
      %1450 = vmatpush1.bf16.msra.mxu0 %v1387
      %1451 = vmatprep.subr.bf16.mxu0 %v1392
      %1452 = vmatpush1.bf16.msra.mxu0 %v1391
      %1453 = vmatprep.subr.bf16.mxu0 %v1396
      %1454 = vmatpush1.bf16.msra.mxu0 %v1395
      %1455 = vmatprep.subr.bf16.mxu0 %v1400
      %1456 = vmatpush1.bf16.msra.mxu0 %v1399
      %1457 = vmatprep.subr.bf16.mxu0 %v1404
      %1458 = vmatpush1.bf16.msra.mxu0 %v1403
      %1459 = vmatprep.subr.bf16.mxu0 %v1408
      %1460 = vmatpush1.bf16.msra.mxu0 %v1407
      %1461 = vmatprep.subr.bf16.mxu0 %v1412
      %1462 = vmatpush1.bf16.msra.mxu0 %v1411
      %1463 = vmatprep.subr.bf16.mxu0 0
      %1464 = vmatpush1.bf16.msra.mxu0 0
      %1465 = vmatprep.subr.bf16.mxu0 0
      %1466 = vmatpush1.bf16.msra.mxu0 0
      %1467 = vmatprep.subr.bf16.mxu0 0
      %1468 = vmatpush1.bf16.msra.mxu0 0
      %1469 = vmatprep.subr.bf16.mxu0 0
      %1470 = vmatpush1.bf16.msra.mxu0 0
      %1471 = vmatprep.subr.bf16.mxu0 0
      %1472 = vmatpush1.bf16.msra.mxu0 0
      %1473 = vmatprep.subr.bf16.mxu0 0
      %1474 = vmatpush1.bf16.msra.mxu0 0
      %1475 = vmatprep.subr.bf16.mxu0 0
      %1476 = vmatpush1.bf16.msra.mxu0 0
      %1477 = vmatprep.subr.bf16.mxu0 0
      %1478 = vmatpush1.bf16.msra.mxu0 0
      %1479 = vmatprep.mubr.bf16.mxu0 0
      %1480 = vmatmul.mubr.bf16.gmra.mrb[0].mxu0 %v1286
      %v1481 = vpop.f32.mrb[0].mxu0
      %v1482 = vadd.f32 0.0, %v1481
      %v1483 = vpop.f32.mrb[0].mxu0
      %v1484 = vadd.f32 0.0, %v1483
      %v1485 = vpop.f32.mrb[0].mxu0
      %v1486 = vpop.f32.mrb[0].mxu0
      %1487 = vdwg.mxu0
      %1488 = vmatprep.subr.bf16.mxu0 %v1386
      %1489 = vmatpush1.bf16.msra.mxu0 %v1385
      %1490 = vmatprep.subr.bf16.mxu0 %v1390
      %1491 = vmatpush1.bf16.msra.mxu0 %v1389
      %1492 = vmatprep.subr.bf16.mxu0 %v1394
      %1493 = vmatpush1.bf16.msra.mxu0 %v1393
      %1494 = vmatprep.subr.bf16.mxu0 %v1398
      %1495 = vmatpush1.bf16.msra.mxu0 %v1397
      %1496 = vmatprep.subr.bf16.mxu0 %v1402
      %1497 = vmatpush1.bf16.msra.mxu0 %v1401
      %1498 = vmatprep.subr.bf16.mxu0 %v1406
      %1499 = vmatpush1.bf16.msra.mxu0 %v1405
      %1500 = vmatprep.subr.bf16.mxu0 %v1410
      %1501 = vmatpush1.bf16.msra.mxu0 %v1409
      %1502 = vmatprep.subr.bf16.mxu0 %v1414
      %1503 = vmatpush1.bf16.msra.mxu0 %v1413
      %1504 = vmatprep.subr.bf16.mxu0 0
      %1505 = vmatpush1.bf16.msra.mxu0 0
      %1506 = vmatprep.subr.bf16.mxu0 0
      %1507 = vmatpush1.bf16.msra.mxu0 0
      %1508 = vmatprep.subr.bf16.mxu0 0
      %1509 = vmatpush1.bf16.msra.mxu0 0
      %1510 = vmatprep.subr.bf16.mxu0 0
      %1511 = vmatpush1.bf16.msra.mxu0 0
      %1512 = vmatprep.subr.bf16.mxu0 0
      %1513 = vmatpush1.bf16.msra.mxu0 0
      %1514 = vmatprep.subr.bf16.mxu0 0
      %1515 = vmatpush1.bf16.msra.mxu0 0
      %1516 = vmatprep.subr.bf16.mxu0 0
      %1517 = vmatpush1.bf16.msra.mxu0 0
      %1518 = vmatprep.subr.bf16.mxu0 0
      %1519 = vmatpush1.bf16.msra.mxu0 0
      %1520 = vmatprep.mubr.bf16.mxu0 0
      %1521 = vmatmul.mubr.bf16.gmra.mrb[0].mxu0 %v1286
      %v1522 = vpop.f32.mrb[0].mxu0
      %v1523 = vadd.f32 0.0, %v1522
      %v1524 = vpop.f32.mrb[0].mxu0
      %v1525 = vadd.f32 0.0, %v1524
      %v1526 = vpop.f32.mrb[0].mxu0
      %v1527 = vpop.f32.mrb[0].mxu0
      %1528 = vdwg.mxu0
      %v1529 = vadd.f32 %v1282, %v1482
      %v1530 = vadd.f32 %v1283, %v1484
      %v1531 = vadd.f32 %v1284, %v1523
      %v1532 = vadd.f32 %v1285, %v1525
      %v1533 = vxor.u32 %v1529, 2147483648
      %v1534 = vmul.f32 %v1533, 1.442695
      %v1535 = vpow.pop %v1534
      %v1536 = vadd.f32 %v1535, 1.0
      %v1537 = vrcp.pop %v1536
      %v1538 = vmul.f32 1.0, %v1537
      %v1539 = vxor.u32 %v1530, 2147483648
      %v1540 = vmul.f32 %v1539, 1.442695
      %v1541 = vpow.pop %v1540
      %v1542 = vadd.f32 %v1541, 1.0
      %v1543 = vrcp.pop %v1542
      %v1544 = vmul.f32 1.0, %v1543
      %v1545 = vtanh.pop %v1531
      %v1546 = vxor.u32 %v1532, 2147483648
      %v1547 = vmul.f32 %v1546, 1.442695
      %v1548 = vpow.pop %v1547
      %v1549 = vadd.f32 %v1548, 1.0
      %v1550 = vrcp.pop %v1549
      %v1551 = vmul.f32 1.0, %v1550
      %v1552 = vmul.f32 %v1544, %v1277
      %v1553 = vmul.f32 %v1538, %v1545
      %v1554 = vadd.f32 %v1552, %v1553
      %v1555 = vtanh.pop %v1554
      %v1556 = vmul.f32 %v1551, %v1555
      %s1557 = smul.u32 %s1278, 8
      %s1558 = scalar_lea.vmem [#allocation4], %s1557
      %1559 = vst [vmem:[%s1558] sm:$0xff] %v1556
    $region125: #{lstm_tagger_forward.1} parent=1 // loop_footer
      %s1275 = sadd.s32 1, %s1271
    $region126: #{lstm_tagger_forward.1} parent=1 // loop_footer_branch
      %1270 = sbr.rel target = $region122
    $region127: #{lstm_tagger_forward.1} parent=1 // loop_exit
      _
    %v1560 = vld [vmem:[#allocation3] sm:$0xff]
    %v1561 = vld [vmem:[#allocation3 + $0x8] sm:$0xff]
    %v1562 = vld [vmem:[#allocation3 + $0x10] sm:$0xff]
    %v1563 = vld [vmem:[#allocation3 + $0x18] sm:$0xff]
    %v1564 = vld [vmem:[#allocation3 + $0x20] sm:$0xff]
    %v1565 = vld [vmem:[#allocation3 + $0x28] sm:$0xff]
    %v1566 = vld [vmem:[#allocation3 + $0x30] sm:$0xff]
    %v1567 = vld [vmem:[#allocation3 + $0x38] sm:$0xff]
    %v1568 = vld [vmem:[#allocation3 + $0x40] sm:$0xff]
    %v1569 = vld [vmem:[#allocation3 + $0x48] sm:$0xff]
    %v1570 = vld [vmem:[#allocation3 + $0x50] sm:$0xff]
    %v1571 = vld [vmem:[#allocation3 + $0x58] sm:$0xff]
    %v1572 = vld [vmem:[#allocation3 + $0x60] sm:$0xff]
    %v1573 = vld [vmem:[#allocation3 + $0x68] sm:$0xff]
    %v1574 = vld [vmem:[#allocation3 + $0x70] sm:$0xff]
    %v1575 = vld [vmem:[#allocation3 + $0x78] sm:$0xff]
    %v1576 = vpack.c.bf16 %v1561, %v1560
    %v1577 = vpack.c.bf16 %v1563, %v1562
    %v1578 = vpack.c.bf16 %v1565, %v1564
    %v1579 = vpack.c.bf16 %v1567, %v1566
    %v1580 = vpack.c.bf16 %v1569, %v1568
    %v1581 = vpack.c.bf16 %v1571, %v1570
    %v1582 = vpack.c.bf16 %v1573, %v1572
    %v1583 = vpack.c.bf16 %v1575, %v1574
    %v1584 = vld [vmem:[#allocation4] sm:$0xff]
    %v1585 = vld [vmem:[#allocation4 + $0x8] sm:$0xff]
    %v1586 = vld [vmem:[#allocation4 + $0x10] sm:$0xff]
    %v1587 = vld [vmem:[#allocation4 + $0x18] sm:$0xff]
    %v1588 = vld [vmem:[#allocation4 + $0x20] sm:$0xff]
    %v1589 = vld [vmem:[#allocation4 + $0x28] sm:$0xff]
    %v1590 = vld [vmem:[#allocation4 + $0x30] sm:$0xff]
    %v1591 = vld [vmem:[#allocation4 + $0x38] sm:$0xff]
    %v1592 = vld [vmem:[#allocation4 + $0x40] sm:$0xff]
    %v1593 = vld [vmem:[#allocation4 + $0x48] sm:$0xff]
    %v1594 = vld [vmem:[#allocation4 + $0x50] sm:$0xff]
    %v1595 = vld [vmem:[#allocation4 + $0x58] sm:$0xff]
    %v1596 = vld [vmem:[#allocation4 + $0x60] sm:$0xff]
    %v1597 = vld [vmem:[#allocation4 + $0x68] sm:$0xff]
    %v1598 = vld [vmem:[#allocation4 + $0x70] sm:$0xff]
    %v1599 = vld [vmem:[#allocation4 + $0x78] sm:$0xff]
    %v1600 = vpack.c.bf16 %v1585, %v1584
    %v1601 = vpack.c.bf16 %v1587, %v1586
    %v1602 = vpack.c.bf16 %v1589, %v1588
    %v1603 = vpack.c.bf16 %v1591, %v1590
    %v1604 = vpack.c.bf16 %v1593, %v1592
    %v1605 = vpack.c.bf16 %v1595, %v1594
    %v1606 = vpack.c.bf16 %v1597, %v1596
    %v1607 = vpack.c.bf16 %v1599, %v1598
    %v1608 = vld [vmem:[#allocation14] sm:$0xff]
    %v1609 = vld [vmem:[#allocation14 + $0x8] sm:$0xff]
    %v1610 = vld [vmem:[#allocation14 + $0x10] sm:$0xff]
    %v1611 = vld [vmem:[#allocation14 + $0x18] sm:$0xff]
    %v1612 = vld [vmem:[#allocation14 + $0x20] sm:$0xff]
    %v1613 = vld [vmem:[#allocation14 + $0x28] sm:$0xff]
    %v1614 = vld [vmem:[#allocation14 + $0x30] sm:$0xff]
    %v1615 = vld [vmem:[#allocation14 + $0x38] sm:$0xff]
    %v1616 = vld [vmem:[#allocation14 + $0x40] sm:$0xff]
    %v1617 = vld [vmem:[#allocation14 + $0x48] sm:$0xff]
    %v1618 = vld [vmem:[#allocation14 + $0x50] sm:$0xff]
    %v1619 = vld [vmem:[#allocation14 + $0x58] sm:$0xff]
    %v1620 = vld [vmem:[#allocation14 + $0x60] sm:$0xff]
    %v1621 = vld [vmem:[#allocation14 + $0x68] sm:$0xff]
    %v1622 = vld [vmem:[#allocation14 + $0x70] sm:$0xff]
    %v1623 = vld [vmem:[#allocation14 + $0x78] sm:$0xff]
    %v1624 = vld [vmem:[#allocation14 + $0x80] sm:$0xff]
    %v1625 = vld [vmem:[#allocation14 + $0x88] sm:$0xff]
    %v1626 = vld [vmem:[#allocation14 + $0x90] sm:$0xff]
    %v1627 = vld [vmem:[#allocation14 + $0x98] sm:$0xff]
    %v1628 = vld [vmem:[#allocation14 + $0xa0] sm:$0xff]
    %v1629 = vld [vmem:[#allocation14 + $0xa8] sm:$0xff]
    %v1630 = vld [vmem:[#allocation14 + $0xb0] sm:$0xff]
    %v1631 = vld [vmem:[#allocation14 + $0xb8] sm:$0xff]
    %v1632 = vld [vmem:[#allocation14 + $0xc0] sm:$0xff]
    %v1633 = vld [vmem:[#allocation14 + $0xc8] sm:$0xff]
    %v1634 = vld [vmem:[#allocation14 + $0xd0] sm:$0xff]
    %v1635 = vld [vmem:[#allocation14 + $0xd8] sm:$0xff]
    %v1636 = vld [vmem:[#allocation14 + $0xe0] sm:$0xff]
    %v1637 = vld [vmem:[#allocation14 + $0xe8] sm:$0xff]
    %v1638 = vld [vmem:[#allocation14 + $0xf0] sm:$0xff]
    %v1639 = vld [vmem:[#allocation14 + $0xf8] sm:$0xff]
    %v1640 = vld [vmem:[#allocation15] sm:$0xff]
    %v1641 = vld [vmem:[#allocation15 + $0x8] sm:$0xff]
    %v1642 = vld [vmem:[#allocation15 + $0x10] sm:$0xff]
    %v1643 = vld [vmem:[#allocation15 + $0x18] sm:$0xff]
    %v1644 = vld [vmem:[#allocation15 + $0x20] sm:$0xff]
    %v1645 = vld [vmem:[#allocation15 + $0x28] sm:$0xff]
    %v1646 = vld [vmem:[#allocation15 + $0x30] sm:$0xff]
    %v1647 = vld [vmem:[#allocation15 + $0x38] sm:$0xff]
    %v1648 = vld [vmem:[#allocation15 + $0x40] sm:$0xff]
    %v1649 = vld [vmem:[#allocation15 + $0x48] sm:$0xff]
    %v1650 = vld [vmem:[#allocation15 + $0x50] sm:$0xff]
    %v1651 = vld [vmem:[#allocation15 + $0x58] sm:$0xff]
    %v1652 = vld [vmem:[#allocation15 + $0x60] sm:$0xff]
    %v1653 = vld [vmem:[#allocation15 + $0x68] sm:$0xff]
    %v1654 = vld [vmem:[#allocation15 + $0x70] sm:$0xff]
    %v1655 = vld [vmem:[#allocation15 + $0x78] sm:$0xff]
    %v1656 = vld [vmem:[#allocation15 + $0x80] sm:$0xff]
    %v1657 = vld [vmem:[#allocation15 + $0x88] sm:$0xff]
    %v1658 = vld [vmem:[#allocation15 + $0x90] sm:$0xff]
    %v1659 = vld [vmem:[#allocation15 + $0x98] sm:$0xff]
    %v1660 = vld [vmem:[#allocation15 + $0xa0] sm:$0xff]
    %v1661 = vld [vmem:[#allocation15 + $0xa8] sm:$0xff]
    %v1662 = vld [vmem:[#allocation15 + $0xb0] sm:$0xff]
    %v1663 = vld [vmem:[#allocation15 + $0xb8] sm:$0xff]
    %v1664 = vld [vmem:[#allocation15 + $0xc0] sm:$0xff]
    %v1665 = vld [vmem:[#allocation15 + $0xc8] sm:$0xff]
    %v1666 = vld [vmem:[#allocation15 + $0xd0] sm:$0xff]
    %v1667 = vld [vmem:[#allocation15 + $0xd8] sm:$0xff]
    %v1668 = vld [vmem:[#allocation15 + $0xe0] sm:$0xff]
    %v1669 = vld [vmem:[#allocation15 + $0xe8] sm:$0xff]
    %v1670 = vld [vmem:[#allocation15 + $0xf0] sm:$0xff]
    %v1671 = vld [vmem:[#allocation15 + $0xf8] sm:$0xff]
    %v1704 = vunpack.c.l.b16 %v1640
    %v1705 = vunpack.c.h.b16 %v1640
    %v1706 = vunpack.c.l.b16 %v1641
    %v1707 = vunpack.c.h.b16 %v1641
    %v1708 = vunpack.c.l.b16 %v1642
    %v1709 = vunpack.c.h.b16 %v1642
    %v1710 = vunpack.c.l.b16 %v1643
    %v1711 = vunpack.c.h.b16 %v1643
    %v1712 = vunpack.c.l.b16 %v1644
    %v1713 = vunpack.c.h.b16 %v1644
    %v1714 = vunpack.c.l.b16 %v1645
    %v1715 = vunpack.c.h.b16 %v1645
    %v1716 = vunpack.c.l.b16 %v1646
    %v1717 = vunpack.c.h.b16 %v1646
    %v1718 = vunpack.c.l.b16 %v1647
    %v1719 = vunpack.c.h.b16 %v1647
    %v1720 = vunpack.c.l.b16 %v1648
    %v1721 = vunpack.c.h.b16 %v1648
    %v1722 = vunpack.c.l.b16 %v1649
    %v1723 = vunpack.c.h.b16 %v1649
    %v1724 = vunpack.c.l.b16 %v1650
    %v1725 = vunpack.c.h.b16 %v1650
    %v1726 = vunpack.c.l.b16 %v1651
    %v1727 = vunpack.c.h.b16 %v1651
    %v1728 = vunpack.c.l.b16 %v1652
    %v1729 = vunpack.c.h.b16 %v1652
    %v1730 = vunpack.c.l.b16 %v1653
    %v1731 = vunpack.c.h.b16 %v1653
    %v1732 = vunpack.c.l.b16 %v1654
    %v1733 = vunpack.c.h.b16 %v1654
    %v1734 = vunpack.c.l.b16 %v1655
    %v1735 = vunpack.c.h.b16 %v1655
    %v1736 = vunpack.c.l.b16 %v1656
    %v1737 = vunpack.c.h.b16 %v1656
    %v1738 = vunpack.c.l.b16 %v1657
    %v1739 = vunpack.c.h.b16 %v1657
    %v1740 = vunpack.c.l.b16 %v1658
    %v1741 = vunpack.c.h.b16 %v1658
    %v1742 = vunpack.c.l.b16 %v1659
    %v1743 = vunpack.c.h.b16 %v1659
    %v1744 = vunpack.c.l.b16 %v1660
    %v1745 = vunpack.c.h.b16 %v1660
    %v1746 = vunpack.c.l.b16 %v1661
    %v1747 = vunpack.c.h.b16 %v1661
    %v1748 = vunpack.c.l.b16 %v1662
    %v1749 = vunpack.c.h.b16 %v1662
    %v1750 = vunpack.c.l.b16 %v1663
    %v1751 = vunpack.c.h.b16 %v1663
    %v1752 = vunpack.c.l.b16 %v1664
    %v1753 = vunpack.c.h.b16 %v1664
    %v1754 = vunpack.c.l.b16 %v1665
    %v1755 = vunpack.c.h.b16 %v1665
    %v1756 = vunpack.c.l.b16 %v1666
    %v1757 = vunpack.c.h.b16 %v1666
    %v1758 = vunpack.c.l.b16 %v1667
    %v1759 = vunpack.c.h.b16 %v1667
    %v1760 = vunpack.c.l.b16 %v1668
    %v1761 = vunpack.c.h.b16 %v1668
    %v1762 = vunpack.c.l.b16 %v1669
    %v1763 = vunpack.c.h.b16 %v1669
    %v1764 = vunpack.c.l.b16 %v1670
    %v1765 = vunpack.c.h.b16 %v1670
    %v1766 = vunpack.c.l.b16 %v1671
    %v1767 = vunpack.c.h.b16 %v1671
    %v1768 = vpack.c.b16 %v1708, %v1704
    %v1769 = vpack.c.b16 %v1709, %v1705
    %v1770 = vpack.c.b16 %v1710, %v1706
    %v1771 = vpack.c.b16 %v1711, %v1707
    %v1772 = vpack.c.b16 %v1716, %v1712
    %v1773 = vpack.c.b16 %v1717, %v1713
    %v1774 = vpack.c.b16 %v1718, %v1714
    %v1775 = vpack.c.b16 %v1719, %v1715
    %v1776 = vpack.c.b16 %v1724, %v1720
    %v1777 = vpack.c.b16 %v1725, %v1721
    %v1778 = vpack.c.b16 %v1726, %v1722
    %v1779 = vpack.c.b16 %v1727, %v1723
    %v1780 = vpack.c.b16 %v1732, %v1728
    %v1781 = vpack.c.b16 %v1733, %v1729
    %v1782 = vpack.c.b16 %v1734, %v1730
    %v1783 = vpack.c.b16 %v1735, %v1731
    %v1784 = vpack.c.b16 %v1740, %v1736
    %v1785 = vpack.c.b16 %v1741, %v1737
    %v1786 = vpack.c.b16 %v1742, %v1738
    %v1787 = vpack.c.b16 %v1743, %v1739
    %v1788 = vpack.c.b16 %v1748, %v1744
    %v1789 = vpack.c.b16 %v1749, %v1745
    %v1790 = vpack.c.b16 %v1750, %v1746
    %v1791 = vpack.c.b16 %v1751, %v1747
    %v1792 = vpack.c.b16 %v1756, %v1752
    %v1793 = vpack.c.b16 %v1757, %v1753
    %v1794 = vpack.c.b16 %v1758, %v1754
    %v1795 = vpack.c.b16 %v1759, %v1755
    %v1796 = vpack.c.b16 %v1764, %v1760
    %v1797 = vpack.c.b16 %v1765, %v1761
    %v1798 = vpack.c.b16 %v1766, %v1762
    %v1799 = vpack.c.b16 %v1767, %v1763
    %1832 = vmatprep.subr.bf16.mxu0 %v1769
    %1833 = vmatpush1.bf16.msra.mxu0 %v1768
    %1834 = vmatprep.subr.bf16.mxu0 %v1773
    %1835 = vmatpush1.bf16.msra.mxu0 %v1772
    %1836 = vmatprep.subr.bf16.mxu0 %v1777
    %1837 = vmatpush1.bf16.msra.mxu0 %v1776
    %1838 = vmatprep.subr.bf16.mxu0 %v1781
    %1839 = vmatpush1.bf16.msra.mxu0 %v1780
    %1840 = vmatprep.subr.bf16.mxu0 %v1785
    %1841 = vmatpush1.bf16.msra.mxu0 %v1784
    %1842 = vmatprep.subr.bf16.mxu0 %v1789
    %1843 = vmatpush1.bf16.msra.mxu0 %v1788
    %1844 = vmatprep.subr.bf16.mxu0 %v1793
    %1845 = vmatpush1.bf16.msra.mxu0 %v1792
    %1846 = vmatprep.subr.bf16.mxu0 %v1797
    %1847 = vmatpush1.bf16.msra.mxu0 %v1796
    %1848 = vmatprep.subr.bf16.mxu0 0
    %1849 = vmatpush1.bf16.msra.mxu0 0
    %1850 = vmatprep.subr.bf16.mxu0 0
    %1851 = vmatpush1.bf16.msra.mxu0 0
    %1852 = vmatprep.subr.bf16.mxu0 0
    %1853 = vmatpush1.bf16.msra.mxu0 0
    %1854 = vmatprep.subr.bf16.mxu0 0
    %1855 = vmatpush1.bf16.msra.mxu0 0
    %1856 = vmatprep.subr.bf16.mxu0 0
    %1857 = vmatpush1.bf16.msra.mxu0 0
    %1858 = vmatprep.subr.bf16.mxu0 0
    %1859 = vmatpush1.bf16.msra.mxu0 0
    %1860 = vmatprep.subr.bf16.mxu0 0
    %1861 = vmatpush1.bf16.msra.mxu0 0
    %1862 = vmatprep.subr.bf16.mxu0 0
    %1863 = vmatpush1.bf16.msra.mxu0 0
    %1864 = vmatprep.mubr.bf16.mxu0 0
    %1865 = vmatmul.mubr.bf16.gmra.mrb[0].mxu0 %v1600
    %v1866 = vpop.f32.mrb[0].mxu0
    %v1867 = vadd.f32 0.0, %v1866
    %v1868 = vpop.f32.mrb[0].mxu0
    %v1869 = vadd.f32 0.0, %v1868
    %v1870 = vpop.f32.mrb[0].mxu0
    %v1871 = vadd.f32 0.0, %v1870
    %v1872 = vpop.f32.mrb[0].mxu0
    %v1873 = vadd.f32 0.0, %v1872
    %1874 = vmatprep.mubr.bf16.mxu0 0
    %1875 = vmatmul.mubr.bf16.gmra.mrb[0].mxu0 %v1601
    %v1876 = vpop.f32.mrb[0].mxu0
    %v1877 = vadd.f32 0.0, %v1876
    %v1878 = vpop.f32.mrb[0].mxu0
    %v1879 = vadd.f32 0.0, %v1878
    %v1880 = vpop.f32.mrb[0].mxu0
    %v1881 = vadd.f32 0.0, %v1880
    %v1882 = vpop.f32.mrb[0].mxu0
    %v1883 = vadd.f32 0.0, %v1882
    %1884 = vmatprep.mubr.bf16.mxu0 0
    %1885 = vmatmul.mubr.bf16.gmra.mrb[0].mxu0 %v1602
    %v1886 = vpop.f32.mrb[0].mxu0
    %v1887 = vadd.f32 0.0, %v1886
    %v1888 = vpop.f32.mrb[0].mxu0
    %v1889 = vadd.f32 0.0, %v1888
    %v1890 = vpop.f32.mrb[0].mxu0
    %v1891 = vadd.f32 0.0, %v1890
    %v1892 = vpop.f32.mrb[0].mxu0
    %v1893 = vadd.f32 0.0, %v1892
    %1894 = vmatprep.mubr.bf16.mxu0 0
    %1895 = vmatmul.mubr.bf16.gmra.mrb[0].mxu0 %v1603
    %v1896 = vpop.f32.mrb[0].mxu0
    %v1897 = vadd.f32 0.0, %v1896
    %v1898 = vpop.f32.mrb[0].mxu0
    %v1899 = vadd.f32 0.0, %v1898
    %v1900 = vpop.f32.mrb[0].mxu0
    %v1901 = vadd.f32 0.0, %v1900
    %v1902 = vpop.f32.mrb[0].mxu0
    %v1903 = vadd.f32 0.0, %v1902
    %1904 = vmatprep.mubr.bf16.mxu0 0
    %1905 = vmatmul.mubr.bf16.gmra.mrb[0].mxu0 %v1604
    %v1906 = vpop.f32.mrb[0].mxu0
    %v1907 = vadd.f32 0.0, %v1906
    %v1908 = vpop.f32.mrb[0].mxu0
    %v1909 = vadd.f32 0.0, %v1908
    %v1910 = vpop.f32.mrb[0].mxu0
    %v1911 = vadd.f32 0.0, %v1910
    %v1912 = vpop.f32.mrb[0].mxu0
    %v1913 = vadd.f32 0.0, %v1912
    %1914 = vmatprep.mubr.bf16.mxu0 0
    %1915 = vmatmul.mubr.bf16.gmra.mrb[0].mxu0 %v1605
    %v1916 = vpop.f32.mrb[0].mxu0
    %v1917 = vadd.f32 0.0, %v1916
    %v1918 = vpop.f32.mrb[0].mxu0
    %v1919 = vadd.f32 0.0, %v1918
    %v1920 = vpop.f32.mrb[0].mxu0
    %v1921 = vadd.f32 0.0, %v1920
    %v1922 = vpop.f32.mrb[0].mxu0
    %v1923 = vadd.f32 0.0, %v1922
    %1924 = vmatprep.mubr.bf16.mxu0 0
    %1925 = vmatmul.mubr.bf16.gmra.mrb[0].mxu0 %v1606
    %v1926 = vpop.f32.mrb[0].mxu0
    %v1927 = vadd.f32 0.0, %v1926
    %v1928 = vpop.f32.mrb[0].mxu0
    %v1929 = vadd.f32 0.0, %v1928
    %v1930 = vpop.f32.mrb[0].mxu0
    %v1931 = vadd.f32 0.0, %v1930
    %v1932 = vpop.f32.mrb[0].mxu0
    %v1933 = vadd.f32 0.0, %v1932
    %1934 = vmatprep.mubr.bf16.mxu0 0
    %1935 = vmatmul.mubr.bf16.gmra.mrb[0].mxu0 %v1607
    %v1936 = vpop.f32.mrb[0].mxu0
    %v1937 = vadd.f32 0.0, %v1936
    %v1938 = vpop.f32.mrb[0].mxu0
    %v1939 = vadd.f32 0.0, %v1938
    %v1940 = vpop.f32.mrb[0].mxu0
    %v1941 = vadd.f32 0.0, %v1940
    %v1942 = vpop.f32.mrb[0].mxu0
    %v1943 = vadd.f32 0.0, %v1942
    %1944 = vdwg.mxu0
    %1945 = vmatprep.subr.bf16.mxu0 %v1771
    %1946 = vmatpush1.bf16.msra.mxu0 %v1770
    %1947 = vmatprep.subr.bf16.mxu0 %v1775
    %1948 = vmatpush1.bf16.msra.mxu0 %v1774
    %1949 = vmatprep.subr.bf16.mxu0 %v1779
    %1950 = vmatpush1.bf16.msra.mxu0 %v1778
    %1951 = vmatprep.subr.bf16.mxu0 %v1783
    %1952 = vmatpush1.bf16.msra.mxu0 %v1782
    %1953 = vmatprep.subr.bf16.mxu0 %v1787
    %1954 = vmatpush1.bf16.msra.mxu0 %v1786
    %1955 = vmatprep.subr.bf16.mxu0 %v1791
    %1956 = vmatpush1.bf16.msra.mxu0 %v1790
    %1957 = vmatprep.subr.bf16.mxu0 %v1795
    %1958 = vmatpush1.bf16.msra.mxu0 %v1794
    %1959 = vmatprep.subr.bf16.mxu0 %v1799
    %1960 = vmatpush1.bf16.msra.mxu0 %v1798
    %1961 = vmatprep.subr.bf16.mxu0 0
    %1962 = vmatpush1.bf16.msra.mxu0 0
    %1963 = vmatprep.subr.bf16.mxu0 0
    %1964 = vmatpush1.bf16.msra.mxu0 0
    %1965 = vmatprep.subr.bf16.mxu0 0
    %1966 = vmatpush1.bf16.msra.mxu0 0
    %1967 = vmatprep.subr.bf16.mxu0 0
    %1968 = vmatpush1.bf16.msra.mxu0 0
    %1969 = vmatprep.subr.bf16.mxu0 0
    %1970 = vmatpush1.bf16.msra.mxu0 0
    %1971 = vmatprep.subr.bf16.mxu0 0
    %1972 = vmatpush1.bf16.msra.mxu0 0
    %1973 = vmatprep.subr.bf16.mxu0 0
    %1974 = vmatpush1.bf16.msra.mxu0 0
    %1975 = vmatprep.subr.bf16.mxu0 0
    %1976 = vmatpush1.bf16.msra.mxu0 0
    %1977 = vmatprep.mubr.bf16.mxu0 0
    %1978 = vmatmul.mubr.bf16.gmra.mrb[0].mxu0 %v1600
    %v1979 = vpop.f32.mrb[0].mxu0
    %v1980 = vadd.f32 0.0, %v1979
    %v1981 = vpop.f32.mrb[0].mxu0
    %v1982 = vadd.f32 0.0, %v1981
    %v1983 = vpop.f32.mrb[0].mxu0
    %v1984 = vadd.f32 0.0, %v1983
    %v1985 = vpop.f32.mrb[0].mxu0
    %v1986 = vadd.f32 0.0, %v1985
    %1987 = vmatprep.mubr.bf16.mxu0 0
    %1988 = vmatmul.mubr.bf16.gmra.mrb[0].mxu0 %v1601
    %v1989 = vpop.f32.mrb[0].mxu0
    %v1990 = vadd.f32 0.0, %v1989
    %v1991 = vpop.f32.mrb[0].mxu0
    %v1992 = vadd.f32 0.0, %v1991
    %v1993 = vpop.f32.mrb[0].mxu0
    %v1994 = vadd.f32 0.0, %v1993
    %v1995 = vpop.f32.mrb[0].mxu0
    %v1996 = vadd.f32 0.0, %v1995
    %1997 = vmatprep.mubr.bf16.mxu0 0
    %1998 = vmatmul.mubr.bf16.gmra.mrb[0].mxu0 %v1602
    %v1999 = vpop.f32.mrb[0].mxu0
    %v2000 = vadd.f32 0.0, %v1999
    %v2001 = vpop.f32.mrb[0].mxu0
    %v2002 = vadd.f32 0.0, %v2001
    %v2003 = vpop.f32.mrb[0].mxu0
    %v2004 = vadd.f32 0.0, %v2003
    %v2005 = vpop.f32.mrb[0].mxu0
    %v2006 = vadd.f32 0.0, %v2005
    %2007 = vmatprep.mubr.bf16.mxu0 0
    %2008 = vmatmul.mubr.bf16.gmra.mrb[0].mxu0 %v1603
    %v2009 = vpop.f32.mrb[0].mxu0
    %v2010 = vadd.f32 0.0, %v2009
    %v2011 = vpop.f32.mrb[0].mxu0
    %v2012 = vadd.f32 0.0, %v2011
    %v2013 = vpop.f32.mrb[0].mxu0
    %v2014 = vadd.f32 0.0, %v2013
    %v2015 = vpop.f32.mrb[0].mxu0
    %v2016 = vadd.f32 0.0, %v2015
    %2017 = vmatprep.mubr.bf16.mxu0 0
    %2018 = vmatmul.mubr.bf16.gmra.mrb[0].mxu0 %v1604
    %v2019 = vpop.f32.mrb[0].mxu0
    %v2020 = vadd.f32 0.0, %v2019
    %v2021 = vpop.f32.mrb[0].mxu0
    %v2022 = vadd.f32 0.0, %v2021
    %v2023 = vpop.f32.mrb[0].mxu0
    %v2024 = vadd.f32 0.0, %v2023
    %v2025 = vpop.f32.mrb[0].mxu0
    %v2026 = vadd.f32 0.0, %v2025
    %2027 = vmatprep.mubr.bf16.mxu0 0
    %2028 = vmatmul.mubr.bf16.gmra.mrb[0].mxu0 %v1605
    %v2029 = vpop.f32.mrb[0].mxu0
    %v2030 = vadd.f32 0.0, %v2029
    %v2031 = vpop.f32.mrb[0].mxu0
    %v2032 = vadd.f32 0.0, %v2031
    %v2033 = vpop.f32.mrb[0].mxu0
    %v2034 = vadd.f32 0.0, %v2033
    %v2035 = vpop.f32.mrb[0].mxu0
    %v2036 = vadd.f32 0.0, %v2035
    %2037 = vmatprep.mubr.bf16.mxu0 0
    %2038 = vmatmul.mubr.bf16.gmra.mrb[0].mxu0 %v1606
    %v2039 = vpop.f32.mrb[0].mxu0
    %v2040 = vadd.f32 0.0, %v2039
    %v2041 = vpop.f32.mrb[0].mxu0
    %v2042 = vadd.f32 0.0, %v2041
    %v2043 = vpop.f32.mrb[0].mxu0
    %v2044 = vadd.f32 0.0, %v2043
    %v2045 = vpop.f32.mrb[0].mxu0
    %v2046 = vadd.f32 0.0, %v2045
    %2047 = vmatprep.mubr.bf16.mxu0 0
    %2048 = vmatmul.mubr.bf16.gmra.mrb[0].mxu0 %v1607
    %v2049 = vpop.f32.mrb[0].mxu0
    %v2050 = vadd.f32 0.0, %v2049
    %v2051 = vpop.f32.mrb[0].mxu0
    %v2052 = vadd.f32 0.0, %v2051
    %v2053 = vpop.f32.mrb[0].mxu0
    %v2054 = vadd.f32 0.0, %v2053
    %v2055 = vpop.f32.mrb[0].mxu0
    %v2056 = vadd.f32 0.0, %v2055
    %2057 = vdwg.mxu0
    %v2090 = vunpack.c.l.b16 %v1608
    %v2091 = vunpack.c.h.b16 %v1608
    %v2092 = vunpack.c.l.b16 %v1609
    %v2093 = vunpack.c.h.b16 %v1609
    %v2094 = vunpack.c.l.b16 %v1610
    %v2095 = vunpack.c.h.b16 %v1610
    %v2096 = vunpack.c.l.b16 %v1611
    %v2097 = vunpack.c.h.b16 %v1611
    %v2098 = vunpack.c.l.b16 %v1612
    %v2099 = vunpack.c.h.b16 %v1612
    %v2100 = vunpack.c.l.b16 %v1613
    %v2101 = vunpack.c.h.b16 %v1613
    %v2102 = vunpack.c.l.b16 %v1614
    %v2103 = vunpack.c.h.b16 %v1614
    %v2104 = vunpack.c.l.b16 %v1615
    %v2105 = vunpack.c.h.b16 %v1615
    %v2106 = vunpack.c.l.b16 %v1616
    %v2107 = vunpack.c.h.b16 %v1616
    %v2108 = vunpack.c.l.b16 %v1617
    %v2109 = vunpack.c.h.b16 %v1617
    %v2110 = vunpack.c.l.b16 %v1618
    %v2111 = vunpack.c.h.b16 %v1618
    %v2112 = vunpack.c.l.b16 %v1619
    %v2113 = vunpack.c.h.b16 %v1619
    %v2114 = vunpack.c.l.b16 %v1620
    %v2115 = vunpack.c.h.b16 %v1620
    %v2116 = vunpack.c.l.b16 %v1621
    %v2117 = vunpack.c.h.b16 %v1621
    %v2118 = vunpack.c.l.b16 %v1622
    %v2119 = vunpack.c.h.b16 %v1622
    %v2120 = vunpack.c.l.b16 %v1623
    %v2121 = vunpack.c.h.b16 %v1623
    %v2122 = vunpack.c.l.b16 %v1624
    %v2123 = vunpack.c.h.b16 %v1624
    %v2124 = vunpack.c.l.b16 %v1625
    %v2125 = vunpack.c.h.b16 %v1625
    %v2126 = vunpack.c.l.b16 %v1626
    %v2127 = vunpack.c.h.b16 %v1626
    %v2128 = vunpack.c.l.b16 %v1627
    %v2129 = vunpack.c.h.b16 %v1627
    %v2130 = vunpack.c.l.b16 %v1628
    %v2131 = vunpack.c.h.b16 %v1628
    %v2132 = vunpack.c.l.b16 %v1629
    %v2133 = vunpack.c.h.b16 %v1629
    %v2134 = vunpack.c.l.b16 %v1630
    %v2135 = vunpack.c.h.b16 %v1630
    %v2136 = vunpack.c.l.b16 %v1631
    %v2137 = vunpack.c.h.b16 %v1631
    %v2138 = vunpack.c.l.b16 %v1632
    %v2139 = vunpack.c.h.b16 %v1632
    %v2140 = vunpack.c.l.b16 %v1633
    %v2141 = vunpack.c.h.b16 %v1633
    %v2142 = vunpack.c.l.b16 %v1634
    %v2143 = vunpack.c.h.b16 %v1634
    %v2144 = vunpack.c.l.b16 %v1635
    %v2145 = vunpack.c.h.b16 %v1635
    %v2146 = vunpack.c.l.b16 %v1636
    %v2147 = vunpack.c.h.b16 %v1636
    %v2148 = vunpack.c.l.b16 %v1637
    %v2149 = vunpack.c.h.b16 %v1637
    %v2150 = vunpack.c.l.b16 %v1638
    %v2151 = vunpack.c.h.b16 %v1638
    %v2152 = vunpack.c.l.b16 %v1639
    %v2153 = vunpack.c.h.b16 %v1639
    %v2154 = vpack.c.b16 %v2094, %v2090
    %v2155 = vpack.c.b16 %v2095, %v2091
    %v2156 = vpack.c.b16 %v2096, %v2092
    %v2157 = vpack.c.b16 %v2097, %v2093
    %v2158 = vpack.c.b16 %v2102, %v2098
    %v2159 = vpack.c.b16 %v2103, %v2099
    %v2160 = vpack.c.b16 %v2104, %v2100
    %v2161 = vpack.c.b16 %v2105, %v2101
    %v2162 = vpack.c.b16 %v2110, %v2106
    %v2163 = vpack.c.b16 %v2111, %v2107
    %v2164 = vpack.c.b16 %v2112, %v2108
    %v2165 = vpack.c.b16 %v2113, %v2109
    %v2166 = vpack.c.b16 %v2118, %v2114
    %v2167 = vpack.c.b16 %v2119, %v2115
    %v2168 = vpack.c.b16 %v2120, %v2116
    %v2169 = vpack.c.b16 %v2121, %v2117
    %v2170 = vpack.c.b16 %v2126, %v2122
    %v2171 = vpack.c.b16 %v2127, %v2123
    %v2172 = vpack.c.b16 %v2128, %v2124
    %v2173 = vpack.c.b16 %v2129, %v2125
    %v2174 = vpack.c.b16 %v2134, %v2130
    %v2175 = vpack.c.b16 %v2135, %v2131
    %v2176 = vpack.c.b16 %v2136, %v2132
    %v2177 = vpack.c.b16 %v2137, %v2133
    %v2178 = vpack.c.b16 %v2142, %v2138
    %v2179 = vpack.c.b16 %v2143, %v2139
    %v2180 = vpack.c.b16 %v2144, %v2140
    %v2181 = vpack.c.b16 %v2145, %v2141
    %v2182 = vpack.c.b16 %v2150, %v2146
    %v2183 = vpack.c.b16 %v2151, %v2147
    %v2184 = vpack.c.b16 %v2152, %v2148
    %v2185 = vpack.c.b16 %v2153, %v2149
    %2218 = vmatprep.subr.bf16.mxu0 %v2155
    %2219 = vmatpush1.bf16.msra.mxu0 %v2154
    %2220 = vmatprep.subr.bf16.mxu0 %v2159
    %2221 = vmatpush1.bf16.msra.mxu0 %v2158
    %2222 = vmatprep.subr.bf16.mxu0 %v2163
    %2223 = vmatpush1.bf16.msra.mxu0 %v2162
    %2224 = vmatprep.subr.bf16.mxu0 %v2167
    %2225 = vmatpush1.bf16.msra.mxu0 %v2166
    %2226 = vmatprep.subr.bf16.mxu0 %v2171
    %2227 = vmatpush1.bf16.msra.mxu0 %v2170
    %2228 = vmatprep.subr.bf16.mxu0 %v2175
    %2229 = vmatpush1.bf16.msra.mxu0 %v2174
    %2230 = vmatprep.subr.bf16.mxu0 %v2179
    %2231 = vmatpush1.bf16.msra.mxu0 %v2178
    %2232 = vmatprep.subr.bf16.mxu0 %v2183
    %2233 = vmatpush1.bf16.msra.mxu0 %v2182
    %2234 = vmatprep.subr.bf16.mxu0 0
    %2235 = vmatpush1.bf16.msra.mxu0 0
    %2236 = vmatprep.subr.bf16.mxu0 0
    %2237 = vmatpush1.bf16.msra.mxu0 0
    %2238 = vmatprep.subr.bf16.mxu0 0
    %2239 = vmatpush1.bf16.msra.mxu0 0
    %2240 = vmatprep.subr.bf16.mxu0 0
    %2241 = vmatpush1.bf16.msra.mxu0 0
    %2242 = vmatprep.subr.bf16.mxu0 0
    %2243 = vmatpush1.bf16.msra.mxu0 0
    %2244 = vmatprep.subr.bf16.mxu0 0
    %2245 = vmatpush1.bf16.msra.mxu0 0
    %2246 = vmatprep.subr.bf16.mxu0 0
    %2247 = vmatpush1.bf16.msra.mxu0 0
    %2248 = vmatprep.subr.bf16.mxu0 0
    %2249 = vmatpush1.bf16.msra.mxu0 0
    %2250 = vmatprep.mubr.bf16.mxu0 0
    %2251 = vmatmul.mubr.bf16.gmra.mrb[0].mxu0 %v1576
    %v2252 = vpop.f32.mrb[0].mxu0
    %v2253 = vadd.f32 %v1867, %v2252
    %v2254 = vpop.f32.mrb[0].mxu0
    %v2255 = vadd.f32 %v1869, %v2254
    %v2256 = vpop.f32.mrb[0].mxu0
    %v2257 = vadd.f32 %v1871, %v2256
    %v2258 = vpop.f32.mrb[0].mxu0
    %v2259 = vadd.f32 %v1873, %v2258
    %2260 = vmatprep.mubr.bf16.mxu0 0
    %2261 = vmatmul.mubr.bf16.gmra.mrb[0].mxu0 %v1577
    %v2262 = vpop.f32.mrb[0].mxu0
    %v2263 = vadd.f32 %v1877, %v2262
    %v2264 = vpop.f32.mrb[0].mxu0
    %v2265 = vadd.f32 %v1879, %v2264
    %v2266 = vpop.f32.mrb[0].mxu0
    %v2267 = vadd.f32 %v1881, %v2266
    %v2268 = vpop.f32.mrb[0].mxu0
    %v2269 = vadd.f32 %v1883, %v2268
    %2270 = vmatprep.mubr.bf16.mxu0 0
    %2271 = vmatmul.mubr.bf16.gmra.mrb[0].mxu0 %v1578
    %v2272 = vpop.f32.mrb[0].mxu0
    %v2273 = vadd.f32 %v1887, %v2272
    %v2274 = vpop.f32.mrb[0].mxu0
    %v2275 = vadd.f32 %v1889, %v2274
    %v2276 = vpop.f32.mrb[0].mxu0
    %v2277 = vadd.f32 %v1891, %v2276
    %v2278 = vpop.f32.mrb[0].mxu0
    %v2279 = vadd.f32 %v1893, %v2278
    %2280 = vmatprep.mubr.bf16.mxu0 0
    %2281 = vmatmul.mubr.bf16.gmra.mrb[0].mxu0 %v1579
    %v2282 = vpop.f32.mrb[0].mxu0
    %v2283 = vadd.f32 %v1897, %v2282
    %v2284 = vpop.f32.mrb[0].mxu0
    %v2285 = vadd.f32 %v1899, %v2284
    %v2286 = vpop.f32.mrb[0].mxu0
    %v2287 = vadd.f32 %v1901, %v2286
    %v2288 = vpop.f32.mrb[0].mxu0
    %v2289 = vadd.f32 %v1903, %v2288
    %2290 = vmatprep.mubr.bf16.mxu0 0
    %2291 = vmatmul.mubr.bf16.gmra.mrb[0].mxu0 %v1580
    %v2292 = vpop.f32.mrb[0].mxu0
    %v2293 = vadd.f32 %v1907, %v2292
    %v2294 = vpop.f32.mrb[0].mxu0
    %v2295 = vadd.f32 %v1909, %v2294
    %v2296 = vpop.f32.mrb[0].mxu0
    %v2297 = vadd.f32 %v1911, %v2296
    %v2298 = vpop.f32.mrb[0].mxu0
    %v2299 = vadd.f32 %v1913, %v2298
    %2300 = vmatprep.mubr.bf16.mxu0 0
    %2301 = vmatmul.mubr.bf16.gmra.mrb[0].mxu0 %v1581
    %v2302 = vpop.f32.mrb[0].mxu0
    %v2303 = vadd.f32 %v1917, %v2302
    %v2304 = vpop.f32.mrb[0].mxu0
    %v2305 = vadd.f32 %v1919, %v2304
    %v2306 = vpop.f32.mrb[0].mxu0
    %v2307 = vadd.f32 %v1921, %v2306
    %v2308 = vpop.f32.mrb[0].mxu0
    %v2309 = vadd.f32 %v1923, %v2308
    %2310 = vmatprep.mubr.bf16.mxu0 0
    %2311 = vmatmul.mubr.bf16.gmra.mrb[0].mxu0 %v1582
    %v2312 = vpop.f32.mrb[0].mxu0
    %v2313 = vadd.f32 %v1927, %v2312
    %v2314 = vpop.f32.mrb[0].mxu0
    %v2315 = vadd.f32 %v1929, %v2314
    %v2316 = vpop.f32.mrb[0].mxu0
    %v2317 = vadd.f32 %v1931, %v2316
    %v2318 = vpop.f32.mrb[0].mxu0
    %v2319 = vadd.f32 %v1933, %v2318
    %2320 = vmatprep.mubr.bf16.mxu0 0
    %2321 = vmatmul.mubr.bf16.gmra.mrb[0].mxu0 %v1583
    %v2322 = vpop.f32.mrb[0].mxu0
    %v2323 = vadd.f32 %v1937, %v2322
    %v2324 = vpop.f32.mrb[0].mxu0
    %v2325 = vadd.f32 %v1939, %v2324
    %v2326 = vpop.f32.mrb[0].mxu0
    %v2327 = vadd.f32 %v1941, %v2326
    %v2328 = vpop.f32.mrb[0].mxu0
    %v2329 = vadd.f32 %v1943, %v2328
    %2330 = vdwg.mxu0
    %2331 = vmatprep.subr.bf16.mxu0 %v2157
    %2332 = vmatpush1.bf16.msra.mxu0 %v2156
    %2333 = vmatprep.subr.bf16.mxu0 %v2161
    %2334 = vmatpush1.bf16.msra.mxu0 %v2160
    %2335 = vmatprep.subr.bf16.mxu0 %v2165
    %2336 = vmatpush1.bf16.msra.mxu0 %v2164
    %2337 = vmatprep.subr.bf16.mxu0 %v2169
    %2338 = vmatpush1.bf16.msra.mxu0 %v2168
    %2339 = vmatprep.subr.bf16.mxu0 %v2173
    %2340 = vmatpush1.bf16.msra.mxu0 %v2172
    %2341 = vmatprep.subr.bf16.mxu0 %v2177
    %2342 = vmatpush1.bf16.msra.mxu0 %v2176
    %2343 = vmatprep.subr.bf16.mxu0 %v2181
    %2344 = vmatpush1.bf16.msra.mxu0 %v2180
    %2345 = vmatprep.subr.bf16.mxu0 %v2185
    %2346 = vmatpush1.bf16.msra.mxu0 %v2184
    %2347 = vmatprep.subr.bf16.mxu0 0
    %2348 = vmatpush1.bf16.msra.mxu0 0
    %2349 = vmatprep.subr.bf16.mxu0 0
    %2350 = vmatpush1.bf16.msra.mxu0 0
    %2351 = vmatprep.subr.bf16.mxu0 0
    %2352 = vmatpush1.bf16.msra.mxu0 0
    %2353 = vmatprep.subr.bf16.mxu0 0
    %2354 = vmatpush1.bf16.msra.mxu0 0
    %2355 = vmatprep.subr.bf16.mxu0 0
    %2356 = vmatpush1.bf16.msra.mxu0 0
    %2357 = vmatprep.subr.bf16.mxu0 0
    %2358 = vmatpush1.bf16.msra.mxu0 0
    %2359 = vmatprep.subr.bf16.mxu0 0
    %2360 = vmatpush1.bf16.msra.mxu0 0
    %2361 = vmatprep.subr.bf16.mxu0 0
    %2362 = vmatpush1.bf16.msra.mxu0 0
    %2363 = vmatprep.mubr.bf16.mxu0 0
    %2364 = vmatmul.mubr.bf16.gmra.mrb[0].mxu0 %v1576
    %v2365 = vpop.f32.mrb[0].mxu0
    %v2366 = vadd.f32 %v1980, %v2365
    %v2367 = vpop.f32.mrb[0].mxu0
    %v2368 = vadd.f32 %v1982, %v2367
    %v2369 = vpop.f32.mrb[0].mxu0
    %v2370 = vadd.f32 %v1984, %v2369
    %v2371 = vpop.f32.mrb[0].mxu0
    %v2372 = vadd.f32 %v1986, %v2371
    %2373 = vmatprep.mubr.bf16.mxu0 0
    %2374 = vmatmul.mubr.bf16.gmra.mrb[0].mxu0 %v1577
    %v2375 = vpop.f32.mrb[0].mxu0
    %v2376 = vadd.f32 %v1990, %v2375
    %v2377 = vpop.f32.mrb[0].mxu0
    %v2378 = vadd.f32 %v1992, %v2377
    %v2379 = vpop.f32.mrb[0].mxu0
    %v2380 = vadd.f32 %v1994, %v2379
    %v2381 = vpop.f32.mrb[0].mxu0
    %v2382 = vadd.f32 %v1996, %v2381
    %2383 = vmatprep.mubr.bf16.mxu0 0
    %2384 = vmatmul.mubr.bf16.gmra.mrb[0].mxu0 %v1578
    %v2385 = vpop.f32.mrb[0].mxu0
    %v2386 = vadd.f32 %v2000, %v2385
    %v2387 = vpop.f32.mrb[0].mxu0
    %v2388 = vadd.f32 %v2002, %v2387
    %v2389 = vpop.f32.mrb[0].mxu0
    %v2390 = vadd.f32 %v2004, %v2389
    %v2391 = vpop.f32.mrb[0].mxu0
    %v2392 = vadd.f32 %v2006, %v2391
    %2393 = vmatprep.mubr.bf16.mxu0 0
    %2394 = vmatmul.mubr.bf16.gmra.mrb[0].mxu0 %v1579
    %v2395 = vpop.f32.mrb[0].mxu0
    %v2396 = vadd.f32 %v2010, %v2395
    %v2397 = vpop.f32.mrb[0].mxu0
    %v2398 = vadd.f32 %v2012, %v2397
    %v2399 = vpop.f32.mrb[0].mxu0
    %v2400 = vadd.f32 %v2014, %v2399
    %v2401 = vpop.f32.mrb[0].mxu0
    %v2402 = vadd.f32 %v2016, %v2401
    %2403 = vmatprep.mubr.bf16.mxu0 0
    %2404 = vmatmul.mubr.bf16.gmra.mrb[0].mxu0 %v1580
    %v2405 = vpop.f32.mrb[0].mxu0
    %v2406 = vadd.f32 %v2020, %v2405
    %v2407 = vpop.f32.mrb[0].mxu0
    %v2408 = vadd.f32 %v2022, %v2407
    %v2409 = vpop.f32.mrb[0].mxu0
    %v2410 = vadd.f32 %v2024, %v2409
    %v2411 = vpop.f32.mrb[0].mxu0
    %v2412 = vadd.f32 %v2026, %v2411
    %2413 = vmatprep.mubr.bf16.mxu0 0
    %2414 = vmatmul.mubr.bf16.gmra.mrb[0].mxu0 %v1581
    %v2415 = vpop.f32.mrb[0].mxu0
    %v2416 = vadd.f32 %v2030, %v2415
    %v2417 = vpop.f32.mrb[0].mxu0
    %v2418 = vadd.f32 %v2032, %v2417
    %v2419 = vpop.f32.mrb[0].mxu0
    %v2420 = vadd.f32 %v2034, %v2419
    %v2421 = vpop.f32.mrb[0].mxu0
    %v2422 = vadd.f32 %v2036, %v2421
    %2423 = vmatprep.mubr.bf16.mxu0 0
    %2424 = vmatmul.mubr.bf16.gmra.mrb[0].mxu0 %v1582
    %v2425 = vpop.f32.mrb[0].mxu0
    %v2426 = vadd.f32 %v2040, %v2425
    %v2427 = vpop.f32.mrb[0].mxu0
    %v2428 = vadd.f32 %v2042, %v2427
    %v2429 = vpop.f32.mrb[0].mxu0
    %v2430 = vadd.f32 %v2044, %v2429
    %v2431 = vpop.f32.mrb[0].mxu0
    %v2432 = vadd.f32 %v2046, %v2431
    %2433 = vmatprep.mubr.bf16.mxu0 0
    %2434 = vmatmul.mubr.bf16.gmra.mrb[0].mxu0 %v1583
    %v2435 = vpop.f32.mrb[0].mxu0
    %v2436 = vadd.f32 %v2050, %v2435
    %v2437 = vpop.f32.mrb[0].mxu0
    %v2438 = vadd.f32 %v2052, %v2437
    %v2439 = vpop.f32.mrb[0].mxu0
    %v2440 = vadd.f32 %v2054, %v2439
    %v2441 = vpop.f32.mrb[0].mxu0
    %v2442 = vadd.f32 %v2056, %v2441
    %2443 = vdwg.mxu0
    %v2444 = vld [vmem:[%s10] sm:$0xf]
    %v2446 = vlaneseq
    %v2447 = vshrl.u32 %v2446, 7
    %v2448 = vsub.s32 0, %v2447
    %v2449 = vrot.slane %v2444, %v2448
    %v2450 = vlaneseq
    %v2451 = vshrl.u32 %v2450, 7
    %v2452 = vsub.s32 1, %v2451
    %v2453 = vrot.slane %v2444, %v2452
    %v2454 = vlaneseq
    %v2455 = vshrl.u32 %v2454, 7
    %v2456 = vsub.s32 2, %v2455
    %v2457 = vrot.slane %v2444, %v2456
    %v2458 = vlaneseq
    %v2459 = vshrl.u32 %v2458, 7
    %v2460 = vsub.s32 3, %v2459
    %v2461 = vrot.slane %v2444, %v2460
    %v2466 = vadd.f32 %v2253, %v2449
    %v2467 = vadd.f32 %v2255, %v2453
    %v2468 = vadd.f32 %v2366, %v2457
    %v2469 = vadd.f32 %v2368, %v2461
    %v2470 = vadd.f32 %v2257, %v2449
    %v2471 = vadd.f32 %v2259, %v2453
    %v2472 = vadd.f32 %v2370, %v2457
    %v2473 = vadd.f32 %v2372, %v2461
    %v2474 = vadd.f32 %v2263, %v2449
    %v2475 = vadd.f32 %v2265, %v2453
    %v2476 = vadd.f32 %v2376, %v2457
    %v2477 = vadd.f32 %v2378, %v2461
    %v2478 = vadd.f32 %v2267, %v2449
    %v2479 = vadd.f32 %v2269, %v2453
    %v2480 = vadd.f32 %v2380, %v2457
    %v2481 = vadd.f32 %v2382, %v2461
    %v2482 = vadd.f32 %v2273, %v2449
    %v2483 = vadd.f32 %v2275, %v2453
    %v2484 = vadd.f32 %v2386, %v2457
    %v2485 = vadd.f32 %v2388, %v2461
    %v2486 = vadd.f32 %v2277, %v2449
    %v2487 = vadd.f32 %v2279, %v2453
    %v2488 = vadd.f32 %v2390, %v2457
    %v2489 = vadd.f32 %v2392, %v2461
    %v2490 = vadd.f32 %v2283, %v2449
    %v2491 = vadd.f32 %v2285, %v2453
    %v2492 = vadd.f32 %v2396, %v2457
    %v2493 = vadd.f32 %v2398, %v2461
    %v2494 = vadd.f32 %v2287, %v2449
    %v2495 = vadd.f32 %v2289, %v2453
    %v2496 = vadd.f32 %v2400, %v2457
    %v2497 = vadd.f32 %v2402, %v2461
    %v2498 = vadd.f32 %v2293, %v2449
    %v2499 = vadd.f32 %v2295, %v2453
    %v2500 = vadd.f32 %v2406, %v2457
    %v2501 = vadd.f32 %v2408, %v2461
    %v2502 = vadd.f32 %v2297, %v2449
    %v2503 = vadd.f32 %v2299, %v2453
    %v2504 = vadd.f32 %v2410, %v2457
    %v2505 = vadd.f32 %v2412, %v2461
    %v2506 = vadd.f32 %v2303, %v2449
    %v2507 = vadd.f32 %v2305, %v2453
    %v2508 = vadd.f32 %v2416, %v2457
    %v2509 = vadd.f32 %v2418, %v2461
    %v2510 = vadd.f32 %v2307, %v2449
    %v2511 = vadd.f32 %v2309, %v2453
    %v2512 = vadd.f32 %v2420, %v2457
    %v2513 = vadd.f32 %v2422, %v2461
    %v2514 = vadd.f32 %v2313, %v2449
    %v2515 = vadd.f32 %v2315, %v2453
    %v2516 = vadd.f32 %v2426, %v2457
    %v2517 = vadd.f32 %v2428, %v2461
    %v2518 = vadd.f32 %v2317, %v2449
    %v2519 = vadd.f32 %v2319, %v2453
    %v2520 = vadd.f32 %v2430, %v2457
    %v2521 = vadd.f32 %v2432, %v2461
    %v2522 = vadd.f32 %v2323, %v2449
    %v2523 = vadd.f32 %v2325, %v2453
    %v2524 = vadd.f32 %v2436, %v2457
    %v2525 = vadd.f32 %v2438, %v2461
    %v2526 = vadd.f32 %v2327, %v2449
    %v2527 = vadd.f32 %v2329, %v2453
    %v2528 = vadd.f32 %v2440, %v2457
    %v2529 = vadd.f32 %v2442, %v2461
    %2530 = vst [vmem:[#allocation2] sm:$0xff] %v2466
    %2531 = vst [vmem:[#allocation2 + $0x8] sm:$0xff] %v2467
    %2532 = vst [vmem:[#allocation2 + $0x10] sm:$0xff] %v2468
    %2533 = vst [vmem:[#allocation2 + $0x18] sm:$0xff] %v2469
    %2534 = vst [vmem:[#allocation2 + $0x20] sm:$0xff] %v2470
    %2535 = vst [vmem:[#allocation2 + $0x28] sm:$0xff] %v2471
    %2536 = vst [vmem:[#allocation2 + $0x30] sm:$0xff] %v2472
    %2537 = vst [vmem:[#allocation2 + $0x38] sm:$0xff] %v2473
    %2538 = vst [vmem:[#allocation2 + $0x40] sm:$0xff] %v2474
    %2539 = vst [vmem:[#allocation2 + $0x48] sm:$0xff] %v2475
    %2540 = vst [vmem:[#allocation2 + $0x50] sm:$0xff] %v2476
    %2541 = vst [vmem:[#allocation2 + $0x58] sm:$0xff] %v2477
    %2542 = vst [vmem:[#allocation2 + $0x60] sm:$0xff] %v2478
    %2543 = vst [vmem:[#allocation2 + $0x68] sm:$0xff] %v2479
    %2544 = vst [vmem:[#allocation2 + $0x70] sm:$0xff] %v2480
    %2545 = vst [vmem:[#allocation2 + $0x78] sm:$0xff] %v2481
    %2546 = vst [vmem:[#allocation2 + $0x80] sm:$0xff] %v2482
    %2547 = vst [vmem:[#allocation2 + $0x88] sm:$0xff] %v2483
    %2548 = vst [vmem:[#allocation2 + $0x90] sm:$0xff] %v2484
    %2549 = vst [vmem:[#allocation2 + $0x98] sm:$0xff] %v2485
    %2550 = vst [vmem:[#allocation2 + $0xa0] sm:$0xff] %v2486
    %2551 = vst [vmem:[#allocation2 + $0xa8] sm:$0xff] %v2487
    %2552 = vst [vmem:[#allocation2 + $0xb0] sm:$0xff] %v2488
    %2553 = vst [vmem:[#allocation2 + $0xb8] sm:$0xff] %v2489
    %2554 = vst [vmem:[#allocation2 + $0xc0] sm:$0xff] %v2490
    %2555 = vst [vmem:[#allocation2 + $0xc8] sm:$0xff] %v2491
    %2556 = vst [vmem:[#allocation2 + $0xd0] sm:$0xff] %v2492
    %2557 = vst [vmem:[#allocation2 + $0xd8] sm:$0xff] %v2493
    %2558 = vst [vmem:[#allocation2 + $0xe0] sm:$0xff] %v2494
    %2559 = vst [vmem:[#allocation2 + $0xe8] sm:$0xff] %v2495
    %2560 = vst [vmem:[#allocation2 + $0xf0] sm:$0xff] %v2496
    %2561 = vst [vmem:[#allocation2 + $0xf8] sm:$0xff] %v2497
    %2562 = vst [vmem:[#allocation2 + $0x100] sm:$0xff] %v2498
    %2563 = vst [vmem:[#allocation2 + $0x108] sm:$0xff] %v2499
    %2564 = vst [vmem:[#allocation2 + $0x110] sm:$0xff] %v2500
    %2565 = vst [vmem:[#allocation2 + $0x118] sm:$0xff] %v2501
    %2566 = vst [vmem:[#allocation2 + $0x120] sm:$0xff] %v2502
    %2567 = vst [vmem:[#allocation2 + $0x128] sm:$0xff] %v2503
    %2568 = vst [vmem:[#allocation2 + $0x130] sm:$0xff] %v2504
    %2569 = vst [vmem:[#allocation2 + $0x138] sm:$0xff] %v2505
    %2570 = vst [vmem:[#allocation2 + $0x140] sm:$0xff] %v2506
    %2571 = vst [vmem:[#allocation2 + $0x148] sm:$0xff] %v2507
    %2572 = vst [vmem:[#allocation2 + $0x150] sm:$0xff] %v2508
    %2573 = vst [vmem:[#allocation2 + $0x158] sm:$0xff] %v2509
    %2574 = vst [vmem:[#allocation2 + $0x160] sm:$0xff] %v2510
    %2575 = vst [vmem:[#allocation2 + $0x168] sm:$0xff] %v2511
    %2576 = vst [vmem:[#allocation2 + $0x170] sm:$0xff] %v2512
    %2577 = vst [vmem:[#allocation2 + $0x178] sm:$0xff] %v2513
    %2578 = vst [vmem:[#allocation2 + $0x180] sm:$0xff] %v2514
    %2579 = vst [vmem:[#allocation2 + $0x188] sm:$0xff] %v2515
    %2580 = vst [vmem:[#allocation2 + $0x190] sm:$0xff] %v2516
    %2581 = vst [vmem:[#allocation2 + $0x198] sm:$0xff] %v2517
    %2582 = vst [vmem:[#allocation2 + $0x1a0] sm:$0xff] %v2518
    %2583 = vst [vmem:[#allocation2 + $0x1a8] sm:$0xff] %v2519
    %2584 = vst [vmem:[#allocation2 + $0x1b0] sm:$0xff] %v2520
    %2585 = vst [vmem:[#allocation2 + $0x1b8] sm:$0xff] %v2521
    %2586 = vst [vmem:[#allocation2 + $0x1c0] sm:$0xff] %v2522
    %2587 = vst [vmem:[#allocation2 + $0x1c8] sm:$0xff] %v2523
    %2588 = vst [vmem:[#allocation2 + $0x1d0] sm:$0xff] %v2524
    %2589 = vst [vmem:[#allocation2 + $0x1d8] sm:$0xff] %v2525
    %2590 = vst [vmem:[#allocation2 + $0x1e0] sm:$0xff] %v2526
    %2591 = vst [vmem:[#allocation2 + $0x1e8] sm:$0xff] %v2527
    %2592 = vst [vmem:[#allocation2 + $0x1f0] sm:$0xff] %v2528
    %2593 = vst [vmem:[#allocation2 + $0x1f8] sm:$0xff] %v2529
    %v2594 = vld [vmem:[#allocation17] sm:$0xff]
    %v2595 = vld [vmem:[#allocation17 + $0x8] sm:$0xff]
    %v2596 = vld [vmem:[#allocation17 + $0x10] sm:$0xff]
    %v2597 = vld [vmem:[#allocation17 + $0x18] sm:$0xff]
    %v2598 = vld [vmem:[#allocation17 + $0x20] sm:$0xff]
    %v2599 = vld [vmem:[#allocation17 + $0x28] sm:$0xff]
    %v2600 = vld [vmem:[#allocation17 + $0x30] sm:$0xff]
    %v2601 = vld [vmem:[#allocation17 + $0x38] sm:$0xff]
    %v2602 = vld [vmem:[#allocation17 + $0x40] sm:$0xff]
    %v2603 = vld [vmem:[#allocation17 + $0x48] sm:$0xff]
    %v2604 = vld [vmem:[#allocation17 + $0x50] sm:$0xff]
    %v2605 = vld [vmem:[#allocation17 + $0x58] sm:$0xff]
    %v2606 = vld [vmem:[#allocation17 + $0x60] sm:$0xff]
    %v2607 = vld [vmem:[#allocation17 + $0x68] sm:$0xff]
    %v2608 = vld [vmem:[#allocation17 + $0x70] sm:$0xff]
    %v2609 = vld [vmem:[#allocation17 + $0x78] sm:$0xff]
    %v2610 = vld [vmem:[#allocation17 + $0x80] sm:$0xff]
    %v2611 = vld [vmem:[#allocation17 + $0x88] sm:$0xff]
    %v2612 = vld [vmem:[#allocation17 + $0x90] sm:$0xff]
    %v2613 = vld [vmem:[#allocation17 + $0x98] sm:$0xff]
    %v2614 = vld [vmem:[#allocation17 + $0xa0] sm:$0xff]
    %v2615 = vld [vmem:[#allocation17 + $0xa8] sm:$0xff]
    %v2616 = vld [vmem:[#allocation17 + $0xb0] sm:$0xff]
    %v2617 = vld [vmem:[#allocation17 + $0xb8] sm:$0xff]
    %v2618 = vld [vmem:[#allocation17 + $0xc0] sm:$0xff]
    %v2619 = vld [vmem:[#allocation17 + $0xc8] sm:$0xff]
    %v2620 = vld [vmem:[#allocation17 + $0xd0] sm:$0xff]
    %v2621 = vld [vmem:[#allocation17 + $0xd8] sm:$0xff]
    %v2622 = vld [vmem:[#allocation17 + $0xe0] sm:$0xff]
    %v2623 = vld [vmem:[#allocation17 + $0xe8] sm:$0xff]
    %v2624 = vld [vmem:[#allocation17 + $0xf0] sm:$0xff]
    %v2625 = vld [vmem:[#allocation17 + $0xf8] sm:$0xff]
    loop: start=0, step=1, limit=16
    $region128: #{lstm_tagger_forward.1} parent=1 // loop_pre_header
      _
    $region129: #{lstm_tagger_forward.1} parent=1 // loop_header
      %s2627 = sphi 0, %s2631
      %p2628 = scmp.ge.s32.totalorder %s2627, 16
      %v2632 = vphi 0.0, %v2911
      %v2633 = vphi 0.0, %v2909
    $region130: #{lstm_tagger_forward.1} parent=1 // loop_header_branch
      %2630 = sbr.rel (%p2628) target = $region134
    $region131: #{lstm_tagger_forward.1} parent=1 // loop_body
      %s2634 = smul.u32 %s2627, 4
      %s2635 = smul.addr %s2634, 8
      %s2636 = scalar_lea.vmem [#allocation2], %s2635
      %v2637 = vld [vmem:[%s2636] sm:$0xff]
      %v2638 = vld [vmem:[%s2636 + $0x8] sm:$0xff]
      %v2639 = vld [vmem:[%s2636 + $0x10] sm:$0xff]
      %v2640 = vld [vmem:[%s2636 + $0x18] sm:$0xff]
      %v2641 = vpack.c.bf16 %v2632, %v2632
      %v2674 = vunpack.c.l.b16 %v2594
      %v2675 = vunpack.c.h.b16 %v2594
      %v2676 = vunpack.c.l.b16 %v2595
      %v2677 = vunpack.c.h.b16 %v2595
      %v2678 = vunpack.c.l.b16 %v2596
      %v2679 = vunpack.c.h.b16 %v2596
      %v2680 = vunpack.c.l.b16 %v2597
      %v2681 = vunpack.c.h.b16 %v2597
      %v2682 = vunpack.c.l.b16 %v2598
      %v2683 = vunpack.c.h.b16 %v2598
      %v2684 = vunpack.c.l.b16 %v2599
      %v2685 = vunpack.c.h.b16 %v2599
      %v2686 = vunpack.c.l.b16 %v2600
      %v2687 = vunpack.c.h.b16 %v2600
      %v2688 = vunpack.c.l.b16 %v2601
      %v2689 = vunpack.c.h.b16 %v2601
      %v2690 = vunpack.c.l.b16 %v2602
      %v2691 = vunpack.c.h.b16 %v2602
      %v2692 = vunpack.c.l.b16 %v2603
      %v2693 = vunpack.c.h.b16 %v2603
      %v2694 = vunpack.c.l.b16 %v2604
      %v2695 = vunpack.c.h.b16 %v2604
      %v2696 = vunpack.c.l.b16 %v2605
      %v2697 = vunpack.c.h.b16 %v2605
      %v2698 = vunpack.c.l.b16 %v2606
      %v2699 = vunpack.c.h.b16 %v2606
      %v2700 = vunpack.c.l.b16 %v2607
      %v2701 = vunpack.c.h.b16 %v2607
      %v2702 = vunpack.c.l.b16 %v2608
      %v2703 = vunpack.c.h.b16 %v2608
      %v2704 = vunpack.c.l.b16 %v2609
      %v2705 = vunpack.c.h.b16 %v2609
      %v2706 = vunpack.c.l.b16 %v2610
      %v2707 = vunpack.c.h.b16 %v2610
      %v2708 = vunpack.c.l.b16 %v2611
      %v2709 = vunpack.c.h.b16 %v2611
      %v2710 = vunpack.c.l.b16 %v2612
      %v2711 = vunpack.c.h.b16 %v2612
      %v2712 = vunpack.c.l.b16 %v2613
      %v2713 = vunpack.c.h.b16 %v2613
      %v2714 = vunpack.c.l.b16 %v2614
      %v2715 = vunpack.c.h.b16 %v2614
      %v2716 = vunpack.c.l.b16 %v2615
      %v2717 = vunpack.c.h.b16 %v2615
      %v2718 = vunpack.c.l.b16 %v2616
      %v2719 = vunpack.c.h.b16 %v2616
      %v2720 = vunpack.c.l.b16 %v2617
      %v2721 = vunpack.c.h.b16 %v2617
      %v2722 = vunpack.c.l.b16 %v2618
      %v2723 = vunpack.c.h.b16 %v2618
      %v2724 = vunpack.c.l.b16 %v2619
      %v2725 = vunpack.c.h.b16 %v2619
      %v2726 = vunpack.c.l.b16 %v2620
      %v2727 = vunpack.c.h.b16 %v2620
      %v2728 = vunpack.c.l.b16 %v2621
      %v2729 = vunpack.c.h.b16 %v2621
      %v2730 = vunpack.c.l.b16 %v2622
      %v2731 = vunpack.c.h.b16 %v2622
      %v2732 = vunpack.c.l.b16 %v2623
      %v2733 = vunpack.c.h.b16 %v2623
      %v2734 = vunpack.c.l.b16 %v2624
      %v2735 = vunpack.c.h.b16 %v2624
      %v2736 = vunpack.c.l.b16 %v2625
      %v2737 = vunpack.c.h.b16 %v2625
      %v2738 = vpack.c.b16 %v2678, %v2674
      %v2739 = vpack.c.b16 %v2679, %v2675
      %v2740 = vpack.c.b16 %v2680, %v2676
      %v2741 = vpack.c.b16 %v2681, %v2677
      %v2742 = vpack.c.b16 %v2686, %v2682
      %v2743 = vpack.c.b16 %v2687, %v2683
      %v2744 = vpack.c.b16 %v2688, %v2684
      %v2745 = vpack.c.b16 %v2689, %v2685
      %v2746 = vpack.c.b16 %v2694, %v2690
      %v2747 = vpack.c.b16 %v2695, %v2691
      %v2748 = vpack.c.b16 %v2696, %v2692
      %v2749 = vpack.c.b16 %v2697, %v2693
      %v2750 = vpack.c.b16 %v2702, %v2698
      %v2751 = vpack.c.b16 %v2703, %v2699
      %v2752 = vpack.c.b16 %v2704, %v2700
      %v2753 = vpack.c.b16 %v2705, %v2701
      %v2754 = vpack.c.b16 %v2710, %v2706
      %v2755 = vpack.c.b16 %v2711, %v2707
      %v2756 = vpack.c.b16 %v2712, %v2708
      %v2757 = vpack.c.b16 %v2713, %v2709
      %v2758 = vpack.c.b16 %v2718, %v2714
      %v2759 = vpack.c.b16 %v2719, %v2715
      %v2760 = vpack.c.b16 %v2720, %v2716
      %v2761 = vpack.c.b16 %v2721, %v2717
      %v2762 = vpack.c.b16 %v2726, %v2722
      %v2763 = vpack.c.b16 %v2727, %v2723
      %v2764 = vpack.c.b16 %v2728, %v2724
      %v2765 = vpack.c.b16 %v2729, %v2725
      %v2766 = vpack.c.b16 %v2734, %v2730
      %v2767 = vpack.c.b16 %v2735, %v2731
      %v2768 = vpack.c.b16 %v2736, %v2732
      %v2769 = vpack.c.b16 %v2737, %v2733
      %2802 = vmatprep.subr.bf16.mxu0 %v2739
      %2803 = vmatpush1.bf16.msra.mxu0 %v2738
      %2804 = vmatprep.subr.bf16.mxu0 %v2743
      %2805 = vmatpush1.bf16.msra.mxu0 %v2742
      %2806 = vmatprep.subr.bf16.mxu0 %v2747
      %2807 = vmatpush1.bf16.msra.mxu0 %v2746
      %2808 = vmatprep.subr.bf16.mxu0 %v2751
      %2809 = vmatpush1.bf16.msra.mxu0 %v2750
      %2810 = vmatprep.subr.bf16.mxu0 %v2755
      %2811 = vmatpush1.bf16.msra.mxu0 %v2754
      %2812 = vmatprep.subr.bf16.mxu0 %v2759
      %2813 = vmatpush1.bf16.msra.mxu0 %v2758
      %2814 = vmatprep.subr.bf16.mxu0 %v2763
      %2815 = vmatpush1.bf16.msra.mxu0 %v2762
      %2816 = vmatprep.subr.bf16.mxu0 %v2767
      %2817 = vmatpush1.bf16.msra.mxu0 %v2766
      %2818 = vmatprep.subr.bf16.mxu0 0
      %2819 = vmatpush1.bf16.msra.mxu0 0
      %2820 = vmatprep.subr.bf16.mxu0 0
      %2821 = vmatpush1.bf16.msra.mxu0 0
      %2822 = vmatprep.subr.bf16.mxu0 0
      %2823 = vmatpush1.bf16.msra.mxu0 0
      %2824 = vmatprep.subr.bf16.mxu0 0
      %2825 = vmatpush1.bf16.msra.mxu0 0
      %2826 = vmatprep.subr.bf16.mxu0 0
      %2827 = vmatpush1.bf16.msra.mxu0 0
      %2828 = vmatprep.subr.bf16.mxu0 0
      %2829 = vmatpush1.bf16.msra.mxu0 0
      %2830 = vmatprep.subr.bf16.mxu0 0
      %2831 = vmatpush1.bf16.msra.mxu0 0
      %2832 = vmatprep.subr.bf16.mxu0 0
      %2833 = vmatpush1.bf16.msra.mxu0 0
      %2834 = vmatprep.mubr.bf16.mxu0 0
      %2835 = vmatmul.mubr.bf16.gmra.mrb[0].mxu0 %v2641
      %v2836 = vpop.f32.mrb[0].mxu0
      %v2837 = vadd.f32 0.0, %v2836
      %v2838 = vpop.f32.mrb[0].mxu0
      %v2839 = vadd.f32 0.0, %v2838
      %v2840 = vpop.f32.mrb[0].mxu0
      %v2841 = vpop.f32.mrb[0].mxu0
      %2842 = vdwg.mxu0
      %2843 = vmatprep.subr.bf16.mxu0 %v2741
      %2844 = vmatpush1.bf16.msra.mxu0 %v2740
      %2845 = vmatprep.subr.bf16.mxu0 %v2745
      %2846 = vmatpush1.bf16.msra.mxu0 %v2744
      %2847 = vmatprep.subr.bf16.mxu0 %v2749
      %2848 = vmatpush1.bf16.msra.mxu0 %v2748
      %2849 = vmatprep.subr.bf16.mxu0 %v2753
      %2850 = vmatpush1.bf16.msra.mxu0 %v2752
      %2851 = vmatprep.subr.bf16.mxu0 %v2757
      %2852 = vmatpush1.bf16.msra.mxu0 %v2756
      %2853 = vmatprep.subr.bf16.mxu0 %v2761
      %2854 = vmatpush1.bf16.msra.mxu0 %v2760
      %2855 = vmatprep.subr.bf16.mxu0 %v2765
      %2856 = vmatpush1.bf16.msra.mxu0 %v2764
      %2857 = vmatprep.subr.bf16.mxu0 %v2769
      %2858 = vmatpush1.bf16.msra.mxu0 %v2768
      %2859 = vmatprep.subr.bf16.mxu0 0
      %2860 = vmatpush1.bf16.msra.mxu0 0
      %2861 = vmatprep.subr.bf16.mxu0 0
      %2862 = vmatpush1.bf16.msra.mxu0 0
      %2863 = vmatprep.subr.bf16.mxu0 0
      %2864 = vmatpush1.bf16.msra.mxu0 0
      %2865 = vmatprep.subr.bf16.mxu0 0
      %2866 = vmatpush1.bf16.msra.mxu0 0
      %2867 = vmatprep.subr.bf16.mxu0 0
      %2868 = vmatpush1.bf16.msra.mxu0 0
      %2869 = vmatprep.subr.bf16.mxu0 0
      %2870 = vmatpush1.bf16.msra.mxu0 0
      %2871 = vmatprep.subr.bf16.mxu0 0
      %2872 = vmatpush1.bf16.msra.mxu0 0
      %2873 = vmatprep.subr.bf16.mxu0 0
      %2874 = vmatpush1.bf16.msra.mxu0 0
      %2875 = vmatprep.mubr.bf16.mxu0 0
      %2876 = vmatmul.mubr.bf16.gmra.mrb[0].mxu0 %v2641
      %v2877 = vpop.f32.mrb[0].mxu0
      %v2878 = vadd.f32 0.0, %v2877
      %v2879 = vpop.f32.mrb[0].mxu0
      %v2880 = vadd.f32 0.0, %v2879
      %v2881 = vpop.f32.mrb[0].mxu0
      %v2882 = vpop.f32.mrb[0].mxu0
      %2883 = vdwg.mxu0
      %v2884 = vadd.f32 %v2637, %v2837
      %v2885 = vadd.f32 %v2638, %v2839
      %v2886 = vadd.f32 %v2639, %v2878
      %v2887 = vadd.f32 %v2640, %v2880
      %v2888 = vxor.u32 %v2884, 2147483648
      %v2889 = vmul.f32 %v2888, 1.442695
      %v2890 = vpow.pop %v2889
      %v2891 = vadd.f32 %v2890, 1.0
      %v2892 = vrcp.pop %v2891
      %v2893 = vmul.f32 1.0, %v2892
      %v2894 = vxor.u32 %v2885, 2147483648
      %v2895 = vmul.f32 %v2894, 1.442695
      %v2896 = vpow.pop %v2895
      %v2897 = vadd.f32 %v2896, 1.0
      %v2898 = vrcp.pop %v2897
      %v2899 = vmul.f32 1.0, %v2898
      %v2900 = vtanh.pop %v2886
      %v2901 = vxor.u32 %v2887, 2147483648
      %v2902 = vmul.f32 %v2901, 1.442695
      %v2903 = vpow.pop %v2902
      %v2904 = vadd.f32 %v2903, 1.0
      %v2905 = vrcp.pop %v2904
      %v2906 = vmul.f32 1.0, %v2905
      %v2907 = vmul.f32 %v2899, %v2633
      %v2908 = vmul.f32 %v2893, %v2900
      %v2909 = vadd.f32 %v2907, %v2908
      %v2910 = vtanh.pop %v2909
      %v2911 = vmul.f32 %v2906, %v2910
      %s2912 = smul.u32 %s2627, 8
      %s2913 = scalar_lea.vmem [#allocation5], %s2912
      %2914 = vst [vmem:[%s2913] sm:$0xff] %v2911
    $region132: #{lstm_tagger_forward.1} parent=1 // loop_footer
      %s2631 = sadd.s32 1, %s2627
    $region133: #{lstm_tagger_forward.1} parent=1 // loop_footer_branch
      %2626 = sbr.rel target = $region129
    $region134: #{lstm_tagger_forward.1} parent=1 // loop_exit
      _
    %v2915 = vld [vmem:[#allocation18] sm:$0xff]
    %v2916 = vld [vmem:[#allocation18 + $0x8] sm:$0xff]
    %v2917 = vld [vmem:[#allocation18 + $0x10] sm:$0xff]
    %v2918 = vld [vmem:[#allocation18 + $0x18] sm:$0xff]
    %v2919 = vld [vmem:[#allocation18 + $0x20] sm:$0xff]
    %v2920 = vld [vmem:[#allocation18 + $0x28] sm:$0xff]
    %v2921 = vld [vmem:[#allocation18 + $0x30] sm:$0xff]
    %v2922 = vld [vmem:[#allocation18 + $0x38] sm:$0xff]
    %v2923 = vld [vmem:[#allocation18 + $0x40] sm:$0xff]
    %v2924 = vld [vmem:[#allocation18 + $0x48] sm:$0xff]
    %v2925 = vld [vmem:[#allocation18 + $0x50] sm:$0xff]
    %v2926 = vld [vmem:[#allocation18 + $0x58] sm:$0xff]
    %v2927 = vld [vmem:[#allocation18 + $0x60] sm:$0xff]
    %v2928 = vld [vmem:[#allocation18 + $0x68] sm:$0xff]
    %v2929 = vld [vmem:[#allocation18 + $0x70] sm:$0xff]
    %v2930 = vld [vmem:[#allocation18 + $0x78] sm:$0xff]
    %v2931 = vld [vmem:[#allocation18 + $0x80] sm:$0xff]
    %v2932 = vld [vmem:[#allocation18 + $0x88] sm:$0xff]
    %v2933 = vld [vmem:[#allocation18 + $0x90] sm:$0xff]
    %v2934 = vld [vmem:[#allocation18 + $0x98] sm:$0xff]
    %v2935 = vld [vmem:[#allocation18 + $0xa0] sm:$0xff]
    %v2936 = vld [vmem:[#allocation18 + $0xa8] sm:$0xff]
    %v2937 = vld [vmem:[#allocation18 + $0xb0] sm:$0xff]
    %v2938 = vld [vmem:[#allocation18 + $0xb8] sm:$0xff]
    %v2939 = vld [vmem:[#allocation18 + $0xc0] sm:$0xff]
    %v2940 = vld [vmem:[#allocation18 + $0xc8] sm:$0xff]
    %v2941 = vld [vmem:[#allocation18 + $0xd0] sm:$0xff]
    %v2942 = vld [vmem:[#allocation18 + $0xd8] sm:$0xff]
    %v2943 = vld [vmem:[#allocation18 + $0xe0] sm:$0xff]
    %v2944 = vld [vmem:[#allocation18 + $0xe8] sm:$0xff]
    %v2945 = vld [vmem:[#allocation18 + $0xf0] sm:$0xff]
    %v2946 = vld [vmem:[#allocation18 + $0xf8] sm:$0xff]
    %v2947 = vld [vmem:[#allocation20] sm:$0xff]
    %v2948 = vld [vmem:[#allocation20 + $0x8] sm:$0xff]
    %v2949 = vld [vmem:[#allocation20 + $0x10] sm:$0xff]
    %v2950 = vld [vmem:[#allocation20 + $0x18] sm:$0xff]
    %v2951 = vld [vmem:[#allocation20 + $0x20] sm:$0xff]
    %v2952 = vld [vmem:[#allocation20 + $0x28] sm:$0xff]
    %v2953 = vld [vmem:[#allocation20 + $0x30] sm:$0xff]
    %v2954 = vld [vmem:[#allocation20 + $0x38] sm:$0xff]
    %v2955 = vld [vmem:[#allocation20 + $0x40] sm:$0xff]
    %v2956 = vld [vmem:[#allocation20 + $0x48] sm:$0xff]
    %v2957 = vld [vmem:[#allocation20 + $0x50] sm:$0xff]
    %v2958 = vld [vmem:[#allocation20 + $0x58] sm:$0xff]
    %v2959 = vld [vmem:[#allocation20 + $0x60] sm:$0xff]
    %v2960 = vld [vmem:[#allocation20 + $0x68] sm:$0xff]
    %v2961 = vld [vmem:[#allocation20 + $0x70] sm:$0xff]
    %v2962 = vld [vmem:[#allocation20 + $0x78] sm:$0xff]
    %v2963 = vld [vmem:[#allocation20 + $0x80] sm:$0xff]
    %v2964 = vld [vmem:[#allocation20 + $0x88] sm:$0xff]
    %v2965 = vld [vmem:[#allocation20 + $0x90] sm:$0xff]
    %v2966 = vld [vmem:[#allocation20 + $0x98] sm:$0xff]
    %v2967 = vld [vmem:[#allocation20 + $0xa0] sm:$0xff]
    %v2968 = vld [vmem:[#allocation20 + $0xa8] sm:$0xff]
    %v2969 = vld [vmem:[#allocation20 + $0xb0] sm:$0xff]
    %v2970 = vld [vmem:[#allocation20 + $0xb8] sm:$0xff]
    %v2971 = vld [vmem:[#allocation20 + $0xc0] sm:$0xff]
    %v2972 = vld [vmem:[#allocation20 + $0xc8] sm:$0xff]
    %v2973 = vld [vmem:[#allocation20 + $0xd0] sm:$0xff]
    %v2974 = vld [vmem:[#allocation20 + $0xd8] sm:$0xff]
    %v2975 = vld [vmem:[#allocation20 + $0xe0] sm:$0xff]
    %v2976 = vld [vmem:[#allocation20 + $0xe8] sm:$0xff]
    %v2977 = vld [vmem:[#allocation20 + $0xf0] sm:$0xff]
    %v2978 = vld [vmem:[#allocation20 + $0xf8] sm:$0xff]
    %v3011 = vunpack.c.l.b16 %v2947
    %v3012 = vunpack.c.h.b16 %v2947
    %v3013 = vunpack.c.l.b16 %v2948
    %v3014 = vunpack.c.h.b16 %v2948
    %v3015 = vunpack.c.l.b16 %v2949
    %v3016 = vunpack.c.h.b16 %v2949
    %v3017 = vunpack.c.l.b16 %v2950
    %v3018 = vunpack.c.h.b16 %v2950
    %v3019 = vunpack.c.l.b16 %v2951
    %v3020 = vunpack.c.h.b16 %v2951
    %v3021 = vunpack.c.l.b16 %v2952
    %v3022 = vunpack.c.h.b16 %v2952
    %v3023 = vunpack.c.l.b16 %v2953
    %v3024 = vunpack.c.h.b16 %v2953
    %v3025 = vunpack.c.l.b16 %v2954
    %v3026 = vunpack.c.h.b16 %v2954
    %v3027 = vunpack.c.l.b16 %v2955
    %v3028 = vunpack.c.h.b16 %v2955
    %v3029 = vunpack.c.l.b16 %v2956
    %v3030 = vunpack.c.h.b16 %v2956
    %v3031 = vunpack.c.l.b16 %v2957
    %v3032 = vunpack.c.h.b16 %v2957
    %v3033 = vunpack.c.l.b16 %v2958
    %v3034 = vunpack.c.h.b16 %v2958
    %v3035 = vunpack.c.l.b16 %v2959
    %v3036 = vunpack.c.h.b16 %v2959
    %v3037 = vunpack.c.l.b16 %v2960
    %v3038 = vunpack.c.h.b16 %v2960
    %v3039 = vunpack.c.l.b16 %v2961
    %v3040 = vunpack.c.h.b16 %v2961
    %v3041 = vunpack.c.l.b16 %v2962
    %v3042 = vunpack.c.h.b16 %v2962
    %v3043 = vunpack.c.l.b16 %v2963
    %v3044 = vunpack.c.h.b16 %v2963
    %v3045 = vunpack.c.l.b16 %v2964
    %v3046 = vunpack.c.h.b16 %v2964
    %v3047 = vunpack.c.l.b16 %v2965
    %v3048 = vunpack.c.h.b16 %v2965
    %v3049 = vunpack.c.l.b16 %v2966
    %v3050 = vunpack.c.h.b16 %v2966
    %v3051 = vunpack.c.l.b16 %v2967
    %v3052 = vunpack.c.h.b16 %v2967
    %v3053 = vunpack.c.l.b16 %v2968
    %v3054 = vunpack.c.h.b16 %v2968
    %v3055 = vunpack.c.l.b16 %v2969
    %v3056 = vunpack.c.h.b16 %v2969
    %v3057 = vunpack.c.l.b16 %v2970
    %v3058 = vunpack.c.h.b16 %v2970
    %v3059 = vunpack.c.l.b16 %v2971
    %v3060 = vunpack.c.h.b16 %v2971
    %v3061 = vunpack.c.l.b16 %v2972
    %v3062 = vunpack.c.h.b16 %v2972
    %v3063 = vunpack.c.l.b16 %v2973
    %v3064 = vunpack.c.h.b16 %v2973
    %v3065 = vunpack.c.l.b16 %v2974
    %v3066 = vunpack.c.h.b16 %v2974
    %v3067 = vunpack.c.l.b16 %v2975
    %v3068 = vunpack.c.h.b16 %v2975
    %v3069 = vunpack.c.l.b16 %v2976
    %v3070 = vunpack.c.h.b16 %v2976
    %v3071 = vunpack.c.l.b16 %v2977
    %v3072 = vunpack.c.h.b16 %v2977
    %v3073 = vunpack.c.l.b16 %v2978
    %v3074 = vunpack.c.h.b16 %v2978
    %v3075 = vpack.c.b16 %v3015, %v3011
    %v3076 = vpack.c.b16 %v3016, %v3012
    %v3077 = vpack.c.b16 %v3017, %v3013
    %v3078 = vpack.c.b16 %v3018, %v3014
    %v3079 = vpack.c.b16 %v3023, %v3019
    %v3080 = vpack.c.b16 %v3024, %v3020
    %v3081 = vpack.c.b16 %v3025, %v3021
    %v3082 = vpack.c.b16 %v3026, %v3022
    %v3083 = vpack.c.b16 %v3031, %v3027
    %v3084 = vpack.c.b16 %v3032, %v3028
    %v3085 = vpack.c.b16 %v3033, %v3029
    %v3086 = vpack.c.b16 %v3034, %v3030
    %v3087 = vpack.c.b16 %v3039, %v3035
    %v3088 = vpack.c.b16 %v3040, %v3036
    %v3089 = vpack.c.b16 %v3041, %v3037
    %v3090 = vpack.c.b16 %v3042, %v3038
    %v3091 = vpack.c.b16 %v3047, %v3043
    %v3092 = vpack.c.b16 %v3048, %v3044
    %v3093 = vpack.c.b16 %v3049, %v3045
    %v3094 = vpack.c.b16 %v3050, %v3046
    %v3095 = vpack.c.b16 %v3055, %v3051
    %v3096 = vpack.c.b16 %v3056, %v3052
    %v3097 = vpack.c.b16 %v3057, %v3053
    %v3098 = vpack.c.b16 %v3058, %v3054
    %v3099 = vpack.c.b16 %v3063, %v3059
    %v3100 = vpack.c.b16 %v3064, %v3060
    %v3101 = vpack.c.b16 %v3065, %v3061
    %v3102 = vpack.c.b16 %v3066, %v3062
    %v3103 = vpack.c.b16 %v3071, %v3067
    %v3104 = vpack.c.b16 %v3072, %v3068
    %v3105 = vpack.c.b16 %v3073, %v3069
    %v3106 = vpack.c.b16 %v3074, %v3070
    %3139 = vmatprep.subr.bf16.mxu0 %v3076
    %3140 = vmatpush1.bf16.msra.mxu0 %v3075
    %3141 = vmatprep.subr.bf16.mxu0 %v3080
    %3142 = vmatpush1.bf16.msra.mxu0 %v3079
    %3143 = vmatprep.subr.bf16.mxu0 %v3084
    %3144 = vmatpush1.bf16.msra.mxu0 %v3083
    %3145 = vmatprep.subr.bf16.mxu0 %v3088
    %3146 = vmatpush1.bf16.msra.mxu0 %v3087
    %3147 = vmatprep.subr.bf16.mxu0 %v3092
    %3148 = vmatpush1.bf16.msra.mxu0 %v3091
    %3149 = vmatprep.subr.bf16.mxu0 %v3096
    %3150 = vmatpush1.bf16.msra.mxu0 %v3095
    %3151 = vmatprep.subr.bf16.mxu0 %v3100
    %3152 = vmatpush1.bf16.msra.mxu0 %v3099
    %3153 = vmatprep.subr.bf16.mxu0 %v3104
    %3154 = vmatpush1.bf16.msra.mxu0 %v3103
    %3155 = vmatprep.subr.bf16.mxu0 0
    %3156 = vmatpush1.bf16.msra.mxu0 0
    %3157 = vmatprep.subr.bf16.mxu0 0
    %3158 = vmatpush1.bf16.msra.mxu0 0
    %3159 = vmatprep.subr.bf16.mxu0 0
    %3160 = vmatpush1.bf16.msra.mxu0 0
    %3161 = vmatprep.subr.bf16.mxu0 0
    %3162 = vmatpush1.bf16.msra.mxu0 0
    %3163 = vmatprep.subr.bf16.mxu0 0
    %3164 = vmatpush1.bf16.msra.mxu0 0
    %3165 = vmatprep.subr.bf16.mxu0 0
    %3166 = vmatpush1.bf16.msra.mxu0 0
    %3167 = vmatprep.subr.bf16.mxu0 0
    %3168 = vmatpush1.bf16.msra.mxu0 0
    %3169 = vmatprep.subr.bf16.mxu0 0
    %3170 = vmatpush1.bf16.msra.mxu0 0
    %3171 = vmatprep.mubr.bf16.mxu0 0
    %3172 = vmatmul.mubr.bf16.gmra.mrb[0].mxu0 %v1600
    %v3173 = vpop.f32.mrb[0].mxu0
    %v3174 = vadd.f32 0.0, %v3173
    %v3175 = vpop.f32.mrb[0].mxu0
    %v3176 = vadd.f32 0.0, %v3175
    %v3177 = vpop.f32.mrb[0].mxu0
    %v3178 = vadd.f32 0.0, %v3177
    %v3179 = vpop.f32.mrb[0].mxu0
    %v3180 = vadd.f32 0.0, %v3179
    %3181 = vmatprep.mubr.bf16.mxu0 0
    %3182 = vmatmul.mubr.bf16.gmra.mrb[0].mxu0 %v1601
    %v3183 = vpop.f32.mrb[0].mxu0
    %v3184 = vadd.f32 0.0, %v3183
    %v3185 = vpop.f32.mrb[0].mxu0
    %v3186 = vadd.f32 0.0, %v3185
    %v3187 = vpop.f32.mrb[0].mxu0
    %v3188 = vadd.f32 0.0, %v3187
    %v3189 = vpop.f32.mrb[0].mxu0
    %v3190 = vadd.f32 0.0, %v3189
    %3191 = vmatprep.mubr.bf16.mxu0 0
    %3192 = vmatmul.mubr.bf16.gmra.mrb[0].mxu0 %v1602
    %v3193 = vpop.f32.mrb[0].mxu0
    %v3194 = vadd.f32 0.0, %v3193
    %v3195 = vpop.f32.mrb[0].mxu0
    %v3196 = vadd.f32 0.0, %v3195
    %v3197 = vpop.f32.mrb[0].mxu0
    %v3198 = vadd.f32 0.0, %v3197
    %v3199 = vpop.f32.mrb[0].mxu0
    %v3200 = vadd.f32 0.0, %v3199
    %3201 = vmatprep.mubr.bf16.mxu0 0
    %3202 = vmatmul.mubr.bf16.gmra.mrb[0].mxu0 %v1603
    %v3203 = vpop.f32.mrb[0].mxu0
    %v3204 = vadd.f32 0.0, %v3203
    %v3205 = vpop.f32.mrb[0].mxu0
    %v3206 = vadd.f32 0.0, %v3205
    %v3207 = vpop.f32.mrb[0].mxu0
    %v3208 = vadd.f32 0.0, %v3207
    %v3209 = vpop.f32.mrb[0].mxu0
    %v3210 = vadd.f32 0.0, %v3209
    %3211 = vmatprep.mubr.bf16.mxu0 0
    %3212 = vmatmul.mubr.bf16.gmra.mrb[0].mxu0 %v1604
    %v3213 = vpop.f32.mrb[0].mxu0
    %v3214 = vadd.f32 0.0, %v3213
    %v3215 = vpop.f32.mrb[0].mxu0
    %v3216 = vadd.f32 0.0, %v3215
    %v3217 = vpop.f32.mrb[0].mxu0
    %v3218 = vadd.f32 0.0, %v3217
    %v3219 = vpop.f32.mrb[0].mxu0
    %v3220 = vadd.f32 0.0, %v3219
    %3221 = vmatprep.mubr.bf16.mxu0 0
    %3222 = vmatmul.mubr.bf16.gmra.mrb[0].mxu0 %v1605
    %v3223 = vpop.f32.mrb[0].mxu0
    %v3224 = vadd.f32 0.0, %v3223
    %v3225 = vpop.f32.mrb[0].mxu0
    %v3226 = vadd.f32 0.0, %v3225
    %v3227 = vpop.f32.mrb[0].mxu0
    %v3228 = vadd.f32 0.0, %v3227
    %v3229 = vpop.f32.mrb[0].mxu0
    %v3230 = vadd.f32 0.0, %v3229
    %3231 = vmatprep.mubr.bf16.mxu0 0
    %3232 = vmatmul.mubr.bf16.gmra.mrb[0].mxu0 %v1606
    %v3233 = vpop.f32.mrb[0].mxu0
    %v3234 = vadd.f32 0.0, %v3233
    %v3235 = vpop.f32.mrb[0].mxu0
    %v3236 = vadd.f32 0.0, %v3235
    %v3237 = vpop.f32.mrb[0].mxu0
    %v3238 = vadd.f32 0.0, %v3237
    %v3239 = vpop.f32.mrb[0].mxu0
    %v3240 = vadd.f32 0.0, %v3239
    %3241 = vmatprep.mubr.bf16.mxu0 0
    %3242 = vmatmul.mubr.bf16.gmra.mrb[0].mxu0 %v1607
    %v3243 = vpop.f32.mrb[0].mxu0
    %v3244 = vadd.f32 0.0, %v3243
    %v3245 = vpop.f32.mrb[0].mxu0
    %v3246 = vadd.f32 0.0, %v3245
    %v3247 = vpop.f32.mrb[0].mxu0
    %v3248 = vadd.f32 0.0, %v3247
    %v3249 = vpop.f32.mrb[0].mxu0
    %v3250 = vadd.f32 0.0, %v3249
    %3251 = vdwg.mxu0
    %3252 = vmatprep.subr.bf16.mxu0 %v3078
    %3253 = vmatpush1.bf16.msra.mxu0 %v3077
    %3254 = vmatprep.subr.bf16.mxu0 %v3082
    %3255 = vmatpush1.bf16.msra.mxu0 %v3081
    %3256 = vmatprep.subr.bf16.mxu0 %v3086
    %3257 = vmatpush1.bf16.msra.mxu0 %v3085
    %3258 = vmatprep.subr.bf16.mxu0 %v3090
    %3259 = vmatpush1.bf16.msra.mxu0 %v3089
    %3260 = vmatprep.subr.bf16.mxu0 %v3094
    %3261 = vmatpush1.bf16.msra.mxu0 %v3093
    %3262 = vmatprep.subr.bf16.mxu0 %v3098
    %3263 = vmatpush1.bf16.msra.mxu0 %v3097
    %3264 = vmatprep.subr.bf16.mxu0 %v3102
    %3265 = vmatpush1.bf16.msra.mxu0 %v3101
    %3266 = vmatprep.subr.bf16.mxu0 %v3106
    %3267 = vmatpush1.bf16.msra.mxu0 %v3105
    %3268 = vmatprep.subr.bf16.mxu0 0
    %3269 = vmatpush1.bf16.msra.mxu0 0
    %3270 = vmatprep.subr.bf16.mxu0 0
    %3271 = vmatpush1.bf16.msra.mxu0 0
    %3272 = vmatprep.subr.bf16.mxu0 0
    %3273 = vmatpush1.bf16.msra.mxu0 0
    %3274 = vmatprep.subr.bf16.mxu0 0
    %3275 = vmatpush1.bf16.msra.mxu0 0
    %3276 = vmatprep.subr.bf16.mxu0 0
    %3277 = vmatpush1.bf16.msra.mxu0 0
    %3278 = vmatprep.subr.bf16.mxu0 0
    %3279 = vmatpush1.bf16.msra.mxu0 0
    %3280 = vmatprep.subr.bf16.mxu0 0
    %3281 = vmatpush1.bf16.msra.mxu0 0
    %3282 = vmatprep.subr.bf16.mxu0 0
    %3283 = vmatpush1.bf16.msra.mxu0 0
    %3284 = vmatprep.mubr.bf16.mxu0 0
    %3285 = vmatmul.mubr.bf16.gmra.mrb[0].mxu0 %v1600
    %v3286 = vpop.f32.mrb[0].mxu0
    %v3287 = vadd.f32 0.0, %v3286
    %v3288 = vpop.f32.mrb[0].mxu0
    %v3289 = vadd.f32 0.0, %v3288
    %v3290 = vpop.f32.mrb[0].mxu0
    %v3291 = vadd.f32 0.0, %v3290
    %v3292 = vpop.f32.mrb[0].mxu0
    %v3293 = vadd.f32 0.0, %v3292
    %3294 = vmatprep.mubr.bf16.mxu0 0
    %3295 = vmatmul.mubr.bf16.gmra.mrb[0].mxu0 %v1601
    %v3296 = vpop.f32.mrb[0].mxu0
    %v3297 = vadd.f32 0.0, %v3296
    %v3298 = vpop.f32.mrb[0].mxu0
    %v3299 = vadd.f32 0.0, %v3298
    %v3300 = vpop.f32.mrb[0].mxu0
    %v3301 = vadd.f32 0.0, %v3300
    %v3302 = vpop.f32.mrb[0].mxu0
    %v3303 = vadd.f32 0.0, %v3302
    %3304 = vmatprep.mubr.bf16.mxu0 0
    %3305 = vmatmul.mubr.bf16.gmra.mrb[0].mxu0 %v1602
    %v3306 = vpop.f32.mrb[0].mxu0
    %v3307 = vadd.f32 0.0, %v3306
    %v3308 = vpop.f32.mrb[0].mxu0
    %v3309 = vadd.f32 0.0, %v3308
    %v3310 = vpop.f32.mrb[0].mxu0
    %v3311 = vadd.f32 0.0, %v3310
    %v3312 = vpop.f32.mrb[0].mxu0
    %v3313 = vadd.f32 0.0, %v3312
    %3314 = vmatprep.mubr.bf16.mxu0 0
    %3315 = vmatmul.mubr.bf16.gmra.mrb[0].mxu0 %v1603
    %v3316 = vpop.f32.mrb[0].mxu0
    %v3317 = vadd.f32 0.0, %v3316
    %v3318 = vpop.f32.mrb[0].mxu0
    %v3319 = vadd.f32 0.0, %v3318
    %v3320 = vpop.f32.mrb[0].mxu0
    %v3321 = vadd.f32 0.0, %v3320
    %v3322 = vpop.f32.mrb[0].mxu0
    %v3323 = vadd.f32 0.0, %v3322
    %3324 = vmatprep.mubr.bf16.mxu0 0
    %3325 = vmatmul.mubr.bf16.gmra.mrb[0].mxu0 %v1604
    %v3326 = vpop.f32.mrb[0].mxu0
    %v3327 = vadd.f32 0.0, %v3326
    %v3328 = vpop.f32.mrb[0].mxu0
    %v3329 = vadd.f32 0.0, %v3328
    %v3330 = vpop.f32.mrb[0].mxu0
    %v3331 = vadd.f32 0.0, %v3330
    %v3332 = vpop.f32.mrb[0].mxu0
    %v3333 = vadd.f32 0.0, %v3332
    %3334 = vmatprep.mubr.bf16.mxu0 0
    %3335 = vmatmul.mubr.bf16.gmra.mrb[0].mxu0 %v1605
    %v3336 = vpop.f32.mrb[0].mxu0
    %v3337 = vadd.f32 0.0, %v3336
    %v3338 = vpop.f32.mrb[0].mxu0
    %v3339 = vadd.f32 0.0, %v3338
    %v3340 = vpop.f32.mrb[0].mxu0
    %v3341 = vadd.f32 0.0, %v3340
    %v3342 = vpop.f32.mrb[0].mxu0
    %v3343 = vadd.f32 0.0, %v3342
    %3344 = vmatprep.mubr.bf16.mxu0 0
    %3345 = vmatmul.mubr.bf16.gmra.mrb[0].mxu0 %v1606
    %v3346 = vpop.f32.mrb[0].mxu0
    %v3347 = vadd.f32 0.0, %v3346
    %v3348 = vpop.f32.mrb[0].mxu0
    %v3349 = vadd.f32 0.0, %v3348
    %v3350 = vpop.f32.mrb[0].mxu0
    %v3351 = vadd.f32 0.0, %v3350
    %v3352 = vpop.f32.mrb[0].mxu0
    %v3353 = vadd.f32 0.0, %v3352
    %3354 = vmatprep.mubr.bf16.mxu0 0
    %3355 = vmatmul.mubr.bf16.gmra.mrb[0].mxu0 %v1607
    %v3356 = vpop.f32.mrb[0].mxu0
    %v3357 = vadd.f32 0.0, %v3356
    %v3358 = vpop.f32.mrb[0].mxu0
    %v3359 = vadd.f32 0.0, %v3358
    %v3360 = vpop.f32.mrb[0].mxu0
    %v3361 = vadd.f32 0.0, %v3360
    %v3362 = vpop.f32.mrb[0].mxu0
    %v3363 = vadd.f32 0.0, %v3362
    %3364 = vdwg.mxu0
    %v3397 = vunpack.c.l.b16 %v2915
    %v3398 = vunpack.c.h.b16 %v2915
    %v3399 = vunpack.c.l.b16 %v2916
    %v3400 = vunpack.c.h.b16 %v2916
    %v3401 = vunpack.c.l.b16 %v2917
    %v3402 = vunpack.c.h.b16 %v2917
    %v3403 = vunpack.c.l.b16 %v2918
    %v3404 = vunpack.c.h.b16 %v2918
    %v3405 = vunpack.c.l.b16 %v2919
    %v3406 = vunpack.c.h.b16 %v2919
    %v3407 = vunpack.c.l.b16 %v2920
    %v3408 = vunpack.c.h.b16 %v2920
    %v3409 = vunpack.c.l.b16 %v2921
    %v3410 = vunpack.c.h.b16 %v2921
    %v3411 = vunpack.c.l.b16 %v2922
    %v3412 = vunpack.c.h.b16 %v2922
    %v3413 = vunpack.c.l.b16 %v2923
    %v3414 = vunpack.c.h.b16 %v2923
    %v3415 = vunpack.c.l.b16 %v2924
    %v3416 = vunpack.c.h.b16 %v2924
    %v3417 = vunpack.c.l.b16 %v2925
    %v3418 = vunpack.c.h.b16 %v2925
    %v3419 = vunpack.c.l.b16 %v2926
    %v3420 = vunpack.c.h.b16 %v2926
    %v3421 = vunpack.c.l.b16 %v2927
    %v3422 = vunpack.c.h.b16 %v2927
    %v3423 = vunpack.c.l.b16 %v2928
    %v3424 = vunpack.c.h.b16 %v2928
    %v3425 = vunpack.c.l.b16 %v2929
    %v3426 = vunpack.c.h.b16 %v2929
    %v3427 = vunpack.c.l.b16 %v2930
    %v3428 = vunpack.c.h.b16 %v2930
    %v3429 = vunpack.c.l.b16 %v2931
    %v3430 = vunpack.c.h.b16 %v2931
    %v3431 = vunpack.c.l.b16 %v2932
    %v3432 = vunpack.c.h.b16 %v2932
    %v3433 = vunpack.c.l.b16 %v2933
    %v3434 = vunpack.c.h.b16 %v2933
    %v3435 = vunpack.c.l.b16 %v2934
    %v3436 = vunpack.c.h.b16 %v2934
    %v3437 = vunpack.c.l.b16 %v2935
    %v3438 = vunpack.c.h.b16 %v2935
    %v3439 = vunpack.c.l.b16 %v2936
    %v3440 = vunpack.c.h.b16 %v2936
    %v3441 = vunpack.c.l.b16 %v2937
    %v3442 = vunpack.c.h.b16 %v2937
    %v3443 = vunpack.c.l.b16 %v2938
    %v3444 = vunpack.c.h.b16 %v2938
    %v3445 = vunpack.c.l.b16 %v2939
    %v3446 = vunpack.c.h.b16 %v2939
    %v3447 = vunpack.c.l.b16 %v2940
    %v3448 = vunpack.c.h.b16 %v2940
    %v3449 = vunpack.c.l.b16 %v2941
    %v3450 = vunpack.c.h.b16 %v2941
    %v3451 = vunpack.c.l.b16 %v2942
    %v3452 = vunpack.c.h.b16 %v2942
    %v3453 = vunpack.c.l.b16 %v2943
    %v3454 = vunpack.c.h.b16 %v2943
    %v3455 = vunpack.c.l.b16 %v2944
    %v3456 = vunpack.c.h.b16 %v2944
    %v3457 = vunpack.c.l.b16 %v2945
    %v3458 = vunpack.c.h.b16 %v2945
    %v3459 = vunpack.c.l.b16 %v2946
    %v3460 = vunpack.c.h.b16 %v2946
    %v3461 = vpack.c.b16 %v3401, %v3397
    %v3462 = vpack.c.b16 %v3402, %v3398
    %v3463 = vpack.c.b16 %v3403, %v3399
    %v3464 = vpack.c.b16 %v3404, %v3400
    %v3465 = vpack.c.b16 %v3409, %v3405
    %v3466 = vpack.c.b16 %v3410, %v3406
    %v3467 = vpack.c.b16 %v3411, %v3407
    %v3468 = vpack.c.b16 %v3412, %v3408
    %v3469 = vpack.c.b16 %v3417, %v3413
    %v3470 = vpack.c.b16 %v3418, %v3414
    %v3471 = vpack.c.b16 %v3419, %v3415
    %v3472 = vpack.c.b16 %v3420, %v3416
    %v3473 = vpack.c.b16 %v3425, %v3421
    %v3474 = vpack.c.b16 %v3426, %v3422
    %v3475 = vpack.c.b16 %v3427, %v3423
    %v3476 = vpack.c.b16 %v3428, %v3424
    %v3477 = vpack.c.b16 %v3433, %v3429
    %v3478 = vpack.c.b16 %v3434, %v3430
    %v3479 = vpack.c.b16 %v3435, %v3431
    %v3480 = vpack.c.b16 %v3436, %v3432
    %v3481 = vpack.c.b16 %v3441, %v3437
    %v3482 = vpack.c.b16 %v3442, %v3438
    %v3483 = vpack.c.b16 %v3443, %v3439
    %v3484 = vpack.c.b16 %v3444, %v3440
    %v3485 = vpack.c.b16 %v3449, %v3445
    %v3486 = vpack.c.b16 %v3450, %v3446
    %v3487 = vpack.c.b16 %v3451, %v3447
    %v3488 = vpack.c.b16 %v3452, %v3448
    %v3489 = vpack.c.b16 %v3457, %v3453
    %v3490 = vpack.c.b16 %v3458, %v3454
    %v3491 = vpack.c.b16 %v3459, %v3455
    %v3492 = vpack.c.b16 %v3460, %v3456
    %3525 = vmatprep.subr.bf16.mxu0 %v3462
    %3526 = vmatpush1.bf16.msra.mxu0 %v3461
    %3527 = vmatprep.subr.bf16.mxu0 %v3466
    %3528 = vmatpush1.bf16.msra.mxu0 %v3465
    %3529 = vmatprep.subr.bf16.mxu0 %v3470
    %3530 = vmatpush1.bf16.msra.mxu0 %v3469
    %3531 = vmatprep.subr.bf16.mxu0 %v3474
    %3532 = vmatpush1.bf16.msra.mxu0 %v3473
    %3533 = vmatprep.subr.bf16.mxu0 %v3478
    %3534 = vmatpush1.bf16.msra.mxu0 %v3477
    %3535 = vmatprep.subr.bf16.mxu0 %v3482
    %3536 = vmatpush1.bf16.msra.mxu0 %v3481
    %3537 = vmatprep.subr.bf16.mxu0 %v3486
    %3538 = vmatpush1.bf16.msra.mxu0 %v3485
    %3539 = vmatprep.subr.bf16.mxu0 %v3490
    %3540 = vmatpush1.bf16.msra.mxu0 %v3489
    %3541 = vmatprep.subr.bf16.mxu0 0
    %3542 = vmatpush1.bf16.msra.mxu0 0
    %3543 = vmatprep.subr.bf16.mxu0 0
    %3544 = vmatpush1.bf16.msra.mxu0 0
    %3545 = vmatprep.subr.bf16.mxu0 0
    %3546 = vmatpush1.bf16.msra.mxu0 0
    %3547 = vmatprep.subr.bf16.mxu0 0
    %3548 = vmatpush1.bf16.msra.mxu0 0
    %3549 = vmatprep.subr.bf16.mxu0 0
    %3550 = vmatpush1.bf16.msra.mxu0 0
    %3551 = vmatprep.subr.bf16.mxu0 0
    %3552 = vmatpush1.bf16.msra.mxu0 0
    %3553 = vmatprep.subr.bf16.mxu0 0
    %3554 = vmatpush1.bf16.msra.mxu0 0
    %3555 = vmatprep.subr.bf16.mxu0 0
    %3556 = vmatpush1.bf16.msra.mxu0 0
    %3557 = vmatprep.mubr.bf16.mxu0 0
    %3558 = vmatmul.mubr.bf16.gmra.mrb[0].mxu0 %v1576
    %v3559 = vpop.f32.mrb[0].mxu0
    %v3560 = vadd.f32 %v3174, %v3559
    %v3561 = vpop.f32.mrb[0].mxu0
    %v3562 = vadd.f32 %v3176, %v3561
    %v3563 = vpop.f32.mrb[0].mxu0
    %v3564 = vadd.f32 %v3178, %v3563
    %v3565 = vpop.f32.mrb[0].mxu0
    %v3566 = vadd.f32 %v3180, %v3565
    %3567 = vmatprep.mubr.bf16.mxu0 0
    %3568 = vmatmul.mubr.bf16.gmra.mrb[0].mxu0 %v1577
    %v3569 = vpop.f32.mrb[0].mxu0
    %v3570 = vadd.f32 %v3184, %v3569
    %v3571 = vpop.f32.mrb[0].mxu0
    %v3572 = vadd.f32 %v3186, %v3571
    %v3573 = vpop.f32.mrb[0].mxu0
    %v3574 = vadd.f32 %v3188, %v3573
    %v3575 = vpop.f32.mrb[0].mxu0
    %v3576 = vadd.f32 %v3190, %v3575
    %3577 = vmatprep.mubr.bf16.mxu0 0
    %3578 = vmatmul.mubr.bf16.gmra.mrb[0].mxu0 %v1578
    %v3579 = vpop.f32.mrb[0].mxu0
    %v3580 = vadd.f32 %v3194, %v3579
    %v3581 = vpop.f32.mrb[0].mxu0
    %v3582 = vadd.f32 %v3196, %v3581
    %v3583 = vpop.f32.mrb[0].mxu0
    %v3584 = vadd.f32 %v3198, %v3583
    %v3585 = vpop.f32.mrb[0].mxu0
    %v3586 = vadd.f32 %v3200, %v3585
    %3587 = vmatprep.mubr.bf16.mxu0 0
    %3588 = vmatmul.mubr.bf16.gmra.mrb[0].mxu0 %v1579
    %v3589 = vpop.f32.mrb[0].mxu0
    %v3590 = vadd.f32 %v3204, %v3589
    %v3591 = vpop.f32.mrb[0].mxu0
    %v3592 = vadd.f32 %v3206, %v3591
    %v3593 = vpop.f32.mrb[0].mxu0
    %v3594 = vadd.f32 %v3208, %v3593
    %v3595 = vpop.f32.mrb[0].mxu0
    %v3596 = vadd.f32 %v3210, %v3595
    %3597 = vmatprep.mubr.bf16.mxu0 0
    %3598 = vmatmul.mubr.bf16.gmra.mrb[0].mxu0 %v1580
    %v3599 = vpop.f32.mrb[0].mxu0
    %v3600 = vadd.f32 %v3214, %v3599
    %v3601 = vpop.f32.mrb[0].mxu0
    %v3602 = vadd.f32 %v3216, %v3601
    %v3603 = vpop.f32.mrb[0].mxu0
    %v3604 = vadd.f32 %v3218, %v3603
    %v3605 = vpop.f32.mrb[0].mxu0
    %v3606 = vadd.f32 %v3220, %v3605
    %3607 = vmatprep.mubr.bf16.mxu0 0
    %3608 = vmatmul.mubr.bf16.gmra.mrb[0].mxu0 %v1581
    %v3609 = vpop.f32.mrb[0].mxu0
    %v3610 = vadd.f32 %v3224, %v3609
    %v3611 = vpop.f32.mrb[0].mxu0
    %v3612 = vadd.f32 %v3226, %v3611
    %v3613 = vpop.f32.mrb[0].mxu0
    %v3614 = vadd.f32 %v3228, %v3613
    %v3615 = vpop.f32.mrb[0].mxu0
    %v3616 = vadd.f32 %v3230, %v3615
    %3617 = vmatprep.mubr.bf16.mxu0 0
    %3618 = vmatmul.mubr.bf16.gmra.mrb[0].mxu0 %v1582
    %v3619 = vpop.f32.mrb[0].mxu0
    %v3620 = vadd.f32 %v3234, %v3619
    %v3621 = vpop.f32.mrb[0].mxu0
    %v3622 = vadd.f32 %v3236, %v3621
    %v3623 = vpop.f32.mrb[0].mxu0
    %v3624 = vadd.f32 %v3238, %v3623
    %v3625 = vpop.f32.mrb[0].mxu0
    %v3626 = vadd.f32 %v3240, %v3625
    %3627 = vmatprep.mubr.bf16.mxu0 0
    %3628 = vmatmul.mubr.bf16.gmra.mrb[0].mxu0 %v1583
    %v3629 = vpop.f32.mrb[0].mxu0
    %v3630 = vadd.f32 %v3244, %v3629
    %v3631 = vpop.f32.mrb[0].mxu0
    %v3632 = vadd.f32 %v3246, %v3631
    %v3633 = vpop.f32.mrb[0].mxu0
    %v3634 = vadd.f32 %v3248, %v3633
    %v3635 = vpop.f32.mrb[0].mxu0
    %v3636 = vadd.f32 %v3250, %v3635
    %3637 = vdwg.mxu0
    %3638 = vmatprep.subr.bf16.mxu0 %v3464
    %3639 = vmatpush1.bf16.msra.mxu0 %v3463
    %3640 = vmatprep.subr.bf16.mxu0 %v3468
    %3641 = vmatpush1.bf16.msra.mxu0 %v3467
    %3642 = vmatprep.subr.bf16.mxu0 %v3472
    %3643 = vmatpush1.bf16.msra.mxu0 %v3471
    %3644 = vmatprep.subr.bf16.mxu0 %v3476
    %3645 = vmatpush1.bf16.msra.mxu0 %v3475
    %3646 = vmatprep.subr.bf16.mxu0 %v3480
    %3647 = vmatpush1.bf16.msra.mxu0 %v3479
    %3648 = vmatprep.subr.bf16.mxu0 %v3484
    %3649 = vmatpush1.bf16.msra.mxu0 %v3483
    %3650 = vmatprep.subr.bf16.mxu0 %v3488
    %3651 = vmatpush1.bf16.msra.mxu0 %v3487
    %3652 = vmatprep.subr.bf16.mxu0 %v3492
    %3653 = vmatpush1.bf16.msra.mxu0 %v3491
    %3654 = vmatprep.subr.bf16.mxu0 0
    %3655 = vmatpush1.bf16.msra.mxu0 0
    %3656 = vmatprep.subr.bf16.mxu0 0
    %3657 = vmatpush1.bf16.msra.mxu0 0
    %3658 = vmatprep.subr.bf16.mxu0 0
    %3659 = vmatpush1.bf16.msra.mxu0 0
    %3660 = vmatprep.subr.bf16.mxu0 0
    %3661 = vmatpush1.bf16.msra.mxu0 0
    %3662 = vmatprep.subr.bf16.mxu0 0
    %3663 = vmatpush1.bf16.msra.mxu0 0
    %3664 = vmatprep.subr.bf16.mxu0 0
    %3665 = vmatpush1.bf16.msra.mxu0 0
    %3666 = vmatprep.subr.bf16.mxu0 0
    %3667 = vmatpush1.bf16.msra.mxu0 0
    %3668 = vmatprep.subr.bf16.mxu0 0
    %3669 = vmatpush1.bf16.msra.mxu0 0
    %3670 = vmatprep.mubr.bf16.mxu0 0
    %3671 = vmatmul.mubr.bf16.gmra.mrb[0].mxu0 %v1576
    %v3672 = vpop.f32.mrb[0].mxu0
    %v3673 = vadd.f32 %v3287, %v3672
    %v3674 = vpop.f32.mrb[0].mxu0
    %v3675 = vadd.f32 %v3289, %v3674
    %v3676 = vpop.f32.mrb[0].mxu0
    %v3677 = vadd.f32 %v3291, %v3676
    %v3678 = vpop.f32.mrb[0].mxu0
    %v3679 = vadd.f32 %v3293, %v3678
    %3680 = vmatprep.mubr.bf16.mxu0 0
    %3681 = vmatmul.mubr.bf16.gmra.mrb[0].mxu0 %v1577
    %v3682 = vpop.f32.mrb[0].mxu0
    %v3683 = vadd.f32 %v3297, %v3682
    %v3684 = vpop.f32.mrb[0].mxu0
    %v3685 = vadd.f32 %v3299, %v3684
    %v3686 = vpop.f32.mrb[0].mxu0
    %v3687 = vadd.f32 %v3301, %v3686
    %v3688 = vpop.f32.mrb[0].mxu0
    %v3689 = vadd.f32 %v3303, %v3688
    %3690 = vmatprep.mubr.bf16.mxu0 0
    %3691 = vmatmul.mubr.bf16.gmra.mrb[0].mxu0 %v1578
    %v3692 = vpop.f32.mrb[0].mxu0
    %v3693 = vadd.f32 %v3307, %v3692
    %v3694 = vpop.f32.mrb[0].mxu0
    %v3695 = vadd.f32 %v3309, %v3694
    %v3696 = vpop.f32.mrb[0].mxu0
    %v3697 = vadd.f32 %v3311, %v3696
    %v3698 = vpop.f32.mrb[0].mxu0
    %v3699 = vadd.f32 %v3313, %v3698
    %3700 = vmatprep.mubr.bf16.mxu0 0
    %3701 = vmatmul.mubr.bf16.gmra.mrb[0].mxu0 %v1579
    %v3702 = vpop.f32.mrb[0].mxu0
    %v3703 = vadd.f32 %v3317, %v3702
    %v3704 = vpop.f32.mrb[0].mxu0
    %v3705 = vadd.f32 %v3319, %v3704
    %v3706 = vpop.f32.mrb[0].mxu0
    %v3707 = vadd.f32 %v3321, %v3706
    %v3708 = vpop.f32.mrb[0].mxu0
    %v3709 = vadd.f32 %v3323, %v3708
    %3710 = vmatprep.mubr.bf16.mxu0 0
    %3711 = vmatmul.mubr.bf16.gmra.mrb[0].mxu0 %v1580
    %v3712 = vpop.f32.mrb[0].mxu0
    %v3713 = vadd.f32 %v3327, %v3712
    %v3714 = vpop.f32.mrb[0].mxu0
    %v3715 = vadd.f32 %v3329, %v3714
    %v3716 = vpop.f32.mrb[0].mxu0
    %v3717 = vadd.f32 %v3331, %v3716
    %v3718 = vpop.f32.mrb[0].mxu0
    %v3719 = vadd.f32 %v3333, %v3718
    %3720 = vmatprep.mubr.bf16.mxu0 0
    %3721 = vmatmul.mubr.bf16.gmra.mrb[0].mxu0 %v1581
    %v3722 = vpop.f32.mrb[0].mxu0
    %v3723 = vadd.f32 %v3337, %v3722
    %v3724 = vpop.f32.mrb[0].mxu0
    %v3725 = vadd.f32 %v3339, %v3724
    %v3726 = vpop.f32.mrb[0].mxu0
    %v3727 = vadd.f32 %v3341, %v3726
    %v3728 = vpop.f32.mrb[0].mxu0
    %v3729 = vadd.f32 %v3343, %v3728
    %3730 = vmatprep.mubr.bf16.mxu0 0
    %3731 = vmatmul.mubr.bf16.gmra.mrb[0].mxu0 %v1582
    %v3732 = vpop.f32.mrb[0].mxu0
    %v3733 = vadd.f32 %v3347, %v3732
    %v3734 = vpop.f32.mrb[0].mxu0
    %v3735 = vadd.f32 %v3349, %v3734
    %v3736 = vpop.f32.mrb[0].mxu0
    %v3737 = vadd.f32 %v3351, %v3736
    %v3738 = vpop.f32.mrb[0].mxu0
    %v3739 = vadd.f32 %v3353, %v3738
    %3740 = vmatprep.mubr.bf16.mxu0 0
    %3741 = vmatmul.mubr.bf16.gmra.mrb[0].mxu0 %v1583
    %v3742 = vpop.f32.mrb[0].mxu0
    %v3743 = vadd.f32 %v3357, %v3742
    %v3744 = vpop.f32.mrb[0].mxu0
    %v3745 = vadd.f32 %v3359, %v3744
    %v3746 = vpop.f32.mrb[0].mxu0
    %v3747 = vadd.f32 %v3361, %v3746
    %v3748 = vpop.f32.mrb[0].mxu0
    %v3749 = vadd.f32 %v3363, %v3748
    %3750 = vdwg.mxu0
    %v3751 = vld [vmem:[%s14] sm:$0xf]
    %v3753 = vlaneseq
    %v3754 = vshrl.u32 %v3753, 7
    %v3755 = vsub.s32 0, %v3754
    %v3756 = vrot.slane %v3751, %v3755
    %v3757 = vlaneseq
    %v3758 = vshrl.u32 %v3757, 7
    %v3759 = vsub.s32 1, %v3758
    %v3760 = vrot.slane %v3751, %v3759
    %v3761 = vlaneseq
    %v3762 = vshrl.u32 %v3761, 7
    %v3763 = vsub.s32 2, %v3762
    %v3764 = vrot.slane %v3751, %v3763
    %v3765 = vlaneseq
    %v3766 = vshrl.u32 %v3765, 7
    %v3767 = vsub.s32 3, %v3766
    %v3768 = vrot.slane %v3751, %v3767
    %v3773 = vadd.f32 %v3560, %v3756
    %v3774 = vadd.f32 %v3562, %v3760
    %v3775 = vadd.f32 %v3673, %v3764
    %v3776 = vadd.f32 %v3675, %v3768
    %v3777 = vadd.f32 %v3564, %v3756
    %v3778 = vadd.f32 %v3566, %v3760
    %v3779 = vadd.f32 %v3677, %v3764
    %v3780 = vadd.f32 %v3679, %v3768
    %v3781 = vadd.f32 %v3570, %v3756
    %v3782 = vadd.f32 %v3572, %v3760
    %v3783 = vadd.f32 %v3683, %v3764
    %v3784 = vadd.f32 %v3685, %v3768
    %v3785 = vadd.f32 %v3574, %v3756
    %v3786 = vadd.f32 %v3576, %v3760
    %v3787 = vadd.f32 %v3687, %v3764
    %v3788 = vadd.f32 %v3689, %v3768
    %v3789 = vadd.f32 %v3580, %v3756
    %v3790 = vadd.f32 %v3582, %v3760
    %v3791 = vadd.f32 %v3693, %v3764
    %v3792 = vadd.f32 %v3695, %v3768
    %v3793 = vadd.f32 %v3584, %v3756
    %v3794 = vadd.f32 %v3586, %v3760
    %v3795 = vadd.f32 %v3697, %v3764
    %v3796 = vadd.f32 %v3699, %v3768
    %v3797 = vadd.f32 %v3590, %v3756
    %v3798 = vadd.f32 %v3592, %v3760
    %v3799 = vadd.f32 %v3703, %v3764
    %v3800 = vadd.f32 %v3705, %v3768
    %v3801 = vadd.f32 %v3594, %v3756
    %v3802 = vadd.f32 %v3596, %v3760
    %v3803 = vadd.f32 %v3707, %v3764
    %v3804 = vadd.f32 %v3709, %v3768
    %v3805 = vadd.f32 %v3600, %v3756
    %v3806 = vadd.f32 %v3602, %v3760
    %v3807 = vadd.f32 %v3713, %v3764
    %v3808 = vadd.f32 %v3715, %v3768
    %v3809 = vadd.f32 %v3604, %v3756
    %v3810 = vadd.f32 %v3606, %v3760
    %v3811 = vadd.f32 %v3717, %v3764
    %v3812 = vadd.f32 %v3719, %v3768
    %v3813 = vadd.f32 %v3610, %v3756
    %v3814 = vadd.f32 %v3612, %v3760
    %v3815 = vadd.f32 %v3723, %v3764
    %v3816 = vadd.f32 %v3725, %v3768
    %v3817 = vadd.f32 %v3614, %v3756
    %v3818 = vadd.f32 %v3616, %v3760
    %v3819 = vadd.f32 %v3727, %v3764
    %v3820 = vadd.f32 %v3729, %v3768
    %v3821 = vadd.f32 %v3620, %v3756
    %v3822 = vadd.f32 %v3622, %v3760
    %v3823 = vadd.f32 %v3733, %v3764
    %v3824 = vadd.f32 %v3735, %v3768
    %v3825 = vadd.f32 %v3624, %v3756
    %v3826 = vadd.f32 %v3626, %v3760
    %v3827 = vadd.f32 %v3737, %v3764
    %v3828 = vadd.f32 %v3739, %v3768
    %v3829 = vadd.f32 %v3630, %v3756
    %v3830 = vadd.f32 %v3632, %v3760
    %v3831 = vadd.f32 %v3743, %v3764
    %v3832 = vadd.f32 %v3745, %v3768
    %v3833 = vadd.f32 %v3634, %v3756
    %v3834 = vadd.f32 %v3636, %v3760
    %v3835 = vadd.f32 %v3747, %v3764
    %v3836 = vadd.f32 %v3749, %v3768
    %3837 = vst [vmem:[#allocation2] sm:$0xff] %v3773
    %3838 = vst [vmem:[#allocation2 + $0x8] sm:$0xff] %v3774
    %3839 = vst [vmem:[#allocation2 + $0x10] sm:$0xff] %v3775
    %3840 = vst [vmem:[#allocation2 + $0x18] sm:$0xff] %v3776
    %3841 = vst [vmem:[#allocation2 + $0x20] sm:$0xff] %v3777
    %3842 = vst [vmem:[#allocation2 + $0x28] sm:$0xff] %v3778
    %3843 = vst [vmem:[#allocation2 + $0x30] sm:$0xff] %v3779
    %3844 = vst [vmem:[#allocation2 + $0x38] sm:$0xff] %v3780
    %3845 = vst [vmem:[#allocation2 + $0x40] sm:$0xff] %v3781
    %3846 = vst [vmem:[#allocation2 + $0x48] sm:$0xff] %v3782
    %3847 = vst [vmem:[#allocation2 + $0x50] sm:$0xff] %v3783
    %3848 = vst [vmem:[#allocation2 + $0x58] sm:$0xff] %v3784
    %3849 = vst [vmem:[#allocation2 + $0x60] sm:$0xff] %v3785
    %3850 = vst [vmem:[#allocation2 + $0x68] sm:$0xff] %v3786
    %3851 = vst [vmem:[#allocation2 + $0x70] sm:$0xff] %v3787
    %3852 = vst [vmem:[#allocation2 + $0x78] sm:$0xff] %v3788
    %3853 = vst [vmem:[#allocation2 + $0x80] sm:$0xff] %v3789
    %3854 = vst [vmem:[#allocation2 + $0x88] sm:$0xff] %v3790
    %3855 = vst [vmem:[#allocation2 + $0x90] sm:$0xff] %v3791
    %3856 = vst [vmem:[#allocation2 + $0x98] sm:$0xff] %v3792
    %3857 = vst [vmem:[#allocation2 + $0xa0] sm:$0xff] %v3793
    %3858 = vst [vmem:[#allocation2 + $0xa8] sm:$0xff] %v3794
    %3859 = vst [vmem:[#allocation2 + $0xb0] sm:$0xff] %v3795
    %3860 = vst [vmem:[#allocation2 + $0xb8] sm:$0xff] %v3796
    %3861 = vst [vmem:[#allocation2 + $0xc0] sm:$0xff] %v3797
    %3862 = vst [vmem:[#allocation2 + $0xc8] sm:$0xff] %v3798
    %3863 = vst [vmem:[#allocation2 + $0xd0] sm:$0xff] %v3799
    %3864 = vst [vmem:[#allocation2 + $0xd8] sm:$0xff] %v3800
    %3865 = vst [vmem:[#allocation2 + $0xe0] sm:$0xff] %v3801
    %3866 = vst [vmem:[#allocation2 + $0xe8] sm:$0xff] %v3802
    %3867 = vst [vmem:[#allocation2 + $0xf0] sm:$0xff] %v3803
    %3868 = vst [vmem:[#allocation2 + $0xf8] sm:$0xff] %v3804
    %3869 = vst [vmem:[#allocation2 + $0x100] sm:$0xff] %v3805
    %3870 = vst [vmem:[#allocation2 + $0x108] sm:$0xff] %v3806
    %3871 = vst [vmem:[#allocation2 + $0x110] sm:$0xff] %v3807
    %3872 = vst [vmem:[#allocation2 + $0x118] sm:$0xff] %v3808
    %3873 = vst [vmem:[#allocation2 + $0x120] sm:$0xff] %v3809
    %3874 = vst [vmem:[#allocation2 + $0x128] sm:$0xff] %v3810
    %3875 = vst [vmem:[#allocation2 + $0x130] sm:$0xff] %v3811
    %3876 = vst [vmem:[#allocation2 + $0x138] sm:$0xff] %v3812
    %3877 = vst [vmem:[#allocation2 + $0x140] sm:$0xff] %v3813
    %3878 = vst [vmem:[#allocation2 + $0x148] sm:$0xff] %v3814
    %3879 = vst [vmem:[#allocation2 + $0x150] sm:$0xff] %v3815
    %3880 = vst [vmem:[#allocation2 + $0x158] sm:$0xff] %v3816
    %3881 = vst [vmem:[#allocation2 + $0x160] sm:$0xff] %v3817
    %3882 = vst [vmem:[#allocation2 + $0x168] sm:$0xff] %v3818
    %3883 = vst [vmem:[#allocation2 + $0x170] sm:$0xff] %v3819
    %3884 = vst [vmem:[#allocation2 + $0x178] sm:$0xff] %v3820
    %3885 = vst [vmem:[#allocation2 + $0x180] sm:$0xff] %v3821
    %3886 = vst [vmem:[#allocation2 + $0x188] sm:$0xff] %v3822
    %3887 = vst [vmem:[#allocation2 + $0x190] sm:$0xff] %v3823
    %3888 = vst [vmem:[#allocation2 + $0x198] sm:$0xff] %v3824
    %3889 = vst [vmem:[#allocation2 + $0x1a0] sm:$0xff] %v3825
    %3890 = vst [vmem:[#allocation2 + $0x1a8] sm:$0xff] %v3826
    %3891 = vst [vmem:[#allocation2 + $0x1b0] sm:$0xff] %v3827
    %3892 = vst [vmem:[#allocation2 + $0x1b8] sm:$0xff] %v3828
    %3893 = vst [vmem:[#allocation2 + $0x1c0] sm:$0xff] %v3829
    %3894 = vst [vmem:[#allocation2 + $0x1c8] sm:$0xff] %v3830
    %3895 = vst [vmem:[#allocation2 + $0x1d0] sm:$0xff] %v3831
    %3896 = vst [vmem:[#allocation2 + $0x1d8] sm:$0xff] %v3832
    %3897 = vst [vmem:[#allocation2 + $0x1e0] sm:$0xff] %v3833
    %3898 = vst [vmem:[#allocation2 + $0x1e8] sm:$0xff] %v3834
    %3899 = vst [vmem:[#allocation2 + $0x1f0] sm:$0xff] %v3835
    %3900 = vst [vmem:[#allocation2 + $0x1f8] sm:$0xff] %v3836
    %v3901 = vld [vmem:[#allocation21] sm:$0xff]
    %v3902 = vld [vmem:[#allocation21 + $0x8] sm:$0xff]
    %v3903 = vld [vmem:[#allocation21 + $0x10] sm:$0xff]
    %v3904 = vld [vmem:[#allocation21 + $0x18] sm:$0xff]
    %v3905 = vld [vmem:[#allocation21 + $0x20] sm:$0xff]
    %v3906 = vld [vmem:[#allocation21 + $0x28] sm:$0xff]
    %v3907 = vld [vmem:[#allocation21 + $0x30] sm:$0xff]
    %v3908 = vld [vmem:[#allocation21 + $0x38] sm:$0xff]
    %v3909 = vld [vmem:[#allocation21 + $0x40] sm:$0xff]
    %v3910 = vld [vmem:[#allocation21 + $0x48] sm:$0xff]
    %v3911 = vld [vmem:[#allocation21 + $0x50] sm:$0xff]
    %v3912 = vld [vmem:[#allocation21 + $0x58] sm:$0xff]
    %v3913 = vld [vmem:[#allocation21 + $0x60] sm:$0xff]
    %v3914 = vld [vmem:[#allocation21 + $0x68] sm:$0xff]
    %v3915 = vld [vmem:[#allocation21 + $0x70] sm:$0xff]
    %v3916 = vld [vmem:[#allocation21 + $0x78] sm:$0xff]
    %v3917 = vld [vmem:[#allocation21 + $0x80] sm:$0xff]
    %v3918 = vld [vmem:[#allocation21 + $0x88] sm:$0xff]
    %v3919 = vld [vmem:[#allocation21 + $0x90] sm:$0xff]
    %v3920 = vld [vmem:[#allocation21 + $0x98] sm:$0xff]
    %v3921 = vld [vmem:[#allocation21 + $0xa0] sm:$0xff]
    %v3922 = vld [vmem:[#allocation21 + $0xa8] sm:$0xff]
    %v3923 = vld [vmem:[#allocation21 + $0xb0] sm:$0xff]
    %v3924 = vld [vmem:[#allocation21 + $0xb8] sm:$0xff]
    %v3925 = vld [vmem:[#allocation21 + $0xc0] sm:$0xff]
    %v3926 = vld [vmem:[#allocation21 + $0xc8] sm:$0xff]
    %v3927 = vld [vmem:[#allocation21 + $0xd0] sm:$0xff]
    %v3928 = vld [vmem:[#allocation21 + $0xd8] sm:$0xff]
    %v3929 = vld [vmem:[#allocation21 + $0xe0] sm:$0xff]
    %v3930 = vld [vmem:[#allocation21 + $0xe8] sm:$0xff]
    %v3931 = vld [vmem:[#allocation21 + $0xf0] sm:$0xff]
    %v3932 = vld [vmem:[#allocation21 + $0xf8] sm:$0xff]
    loop: start=0, step=1, limit=16
    $region135: #{lstm_tagger_forward.1} parent=1 // loop_pre_header
      _
    $region136: #{lstm_tagger_forward.1} parent=1 // loop_header
      %s3934 = sphi 0, %s3938
      %p3935 = scmp.ge.s32.totalorder %s3934, 16
      %v3939 = vphi 0.0, %v4219
      %v3940 = vphi 0.0, %v4217
    $region137: #{lstm_tagger_forward.1} parent=1 // loop_header_branch
      %3937 = sbr.rel (%p3935) target = $region141
    $region138: #{lstm_tagger_forward.1} parent=1 // loop_body
      %s3941 = ssub.s32 15, %s3934
      %s3942 = smul.u32 %s3941, 4
      %s3943 = smul.addr %s3942, 8
      %s3944 = scalar_lea.vmem [#allocation2], %s3943
      %v3945 = vld [vmem:[%s3944] sm:$0xff]
      %v3946 = vld [vmem:[%s3944 + $0x8] sm:$0xff]
      %v3947 = vld [vmem:[%s3944 + $0x10] sm:$0xff]
      %v3948 = vld [vmem:[%s3944 + $0x18] sm:$0xff]
      %v3949 = vpack.c.bf16 %v3939, %v3939
      %v3982 = vunpack.c.l.b16 %v3901
      %v3983 = vunpack.c.h.b16 %v3901
      %v3984 = vunpack.c.l.b16 %v3902
      %v3985 = vunpack.c.h.b16 %v3902
      %v3986 = vunpack.c.l.b16 %v3903
      %v3987 = vunpack.c.h.b16 %v3903
      %v3988 = vunpack.c.l.b16 %v3904
      %v3989 = vunpack.c.h.b16 %v3904
      %v3990 = vunpack.c.l.b16 %v3905
      %v3991 = vunpack.c.h.b16 %v3905
      %v3992 = vunpack.c.l.b16 %v3906
      %v3993 = vunpack.c.h.b16 %v3906
      %v3994 = vunpack.c.l.b16 %v3907
      %v3995 = vunpack.c.h.b16 %v3907
      %v3996 = vunpack.c.l.b16 %v3908
      %v3997 = vunpack.c.h.b16 %v3908
      %v3998 = vunpack.c.l.b16 %v3909
      %v3999 = vunpack.c.h.b16 %v3909
      %v4000 = vunpack.c.l.b16 %v3910
      %v4001 = vunpack.c.h.b16 %v3910
      %v4002 = vunpack.c.l.b16 %v3911
      %v4003 = vunpack.c.h.b16 %v3911
      %v4004 = vunpack.c.l.b16 %v3912
      %v4005 = vunpack.c.h.b16 %v3912
      %v4006 = vunpack.c.l.b16 %v3913
      %v4007 = vunpack.c.h.b16 %v3913
      %v4008 = vunpack.c.l.b16 %v3914
      %v4009 = vunpack.c.h.b16 %v3914
      %v4010 = vunpack.c.l.b16 %v3915
      %v4011 = vunpack.c.h.b16 %v3915
      %v4012 = vunpack.c.l.b16 %v3916
      %v4013 = vunpack.c.h.b16 %v3916
      %v4014 = vunpack.c.l.b16 %v3917
      %v4015 = vunpack.c.h.b16 %v3917
      %v4016 = vunpack.c.l.b16 %v3918
      %v4017 = vunpack.c.h.b16 %v3918
      %v4018 = vunpack.c.l.b16 %v3919
      %v4019 = vunpack.c.h.b16 %v3919
      %v4020 = vunpack.c.l.b16 %v3920
      %v4021 = vunpack.c.h.b16 %v3920
      %v4022 = vunpack.c.l.b16 %v3921
      %v4023 = vunpack.c.h.b16 %v3921
      %v4024 = vunpack.c.l.b16 %v3922
      %v4025 = vunpack.c.h.b16 %v3922
      %v4026 = vunpack.c.l.b16 %v3923
      %v4027 = vunpack.c.h.b16 %v3923
      %v4028 = vunpack.c.l.b16 %v3924
      %v4029 = vunpack.c.h.b16 %v3924
      %v4030 = vunpack.c.l.b16 %v3925
      %v4031 = vunpack.c.h.b16 %v3925
      %v4032 = vunpack.c.l.b16 %v3926
      %v4033 = vunpack.c.h.b16 %v3926
      %v4034 = vunpack.c.l.b16 %v3927
      %v4035 = vunpack.c.h.b16 %v3927
      %v4036 = vunpack.c.l.b16 %v3928
      %v4037 = vunpack.c.h.b16 %v3928
      %v4038 = vunpack.c.l.b16 %v3929
      %v4039 = vunpack.c.h.b16 %v3929
      %v4040 = vunpack.c.l.b16 %v3930
      %v4041 = vunpack.c.h.b16 %v3930
      %v4042 = vunpack.c.l.b16 %v3931
      %v4043 = vunpack.c.h.b16 %v3931
      %v4044 = vunpack.c.l.b16 %v3932
      %v4045 = vunpack.c.h.b16 %v3932
      %v4046 = vpack.c.b16 %v3986, %v3982
      %v4047 = vpack.c.b16 %v3987, %v3983
      %v4048 = vpack.c.b16 %v3988, %v3984
      %v4049 = vpack.c.b16 %v3989, %v3985
      %v4050 = vpack.c.b16 %v3994, %v3990
      %v4051 = vpack.c.b16 %v3995, %v3991
      %v4052 = vpack.c.b16 %v3996, %v3992
      %v4053 = vpack.c.b16 %v3997, %v3993
      %v4054 = vpack.c.b16 %v4002, %v3998
      %v4055 = vpack.c.b16 %v4003, %v3999
      %v4056 = vpack.c.b16 %v4004, %v4000
      %v4057 = vpack.c.b16 %v4005, %v4001
      %v4058 = vpack.c.b16 %v4010, %v4006
      %v4059 = vpack.c.b16 %v4011, %v4007
      %v4060 = vpack.c.b16 %v4012, %v4008
      %v4061 = vpack.c.b16 %v4013, %v4009
      %v4062 = vpack.c.b16 %v4018, %v4014
      %v4063 = vpack.c.b16 %v4019, %v4015
      %v4064 = vpack.c.b16 %v4020, %v4016
      %v4065 = vpack.c.b16 %v4021, %v4017
      %v4066 = vpack.c.b16 %v4026, %v4022
      %v4067 = vpack.c.b16 %v4027, %v4023
      %v4068 = vpack.c.b16 %v4028, %v4024
      %v4069 = vpack.c.b16 %v4029, %v4025
      %v4070 = vpack.c.b16 %v4034, %v4030
      %v4071 = vpack.c.b16 %v4035, %v4031
      %v4072 = vpack.c.b16 %v4036, %v4032
      %v4073 = vpack.c.b16 %v4037, %v4033
      %v4074 = vpack.c.b16 %v4042, %v4038
      %v4075 = vpack.c.b16 %v4043, %v4039
      %v4076 = vpack.c.b16 %v4044, %v4040
      %v4077 = vpack.c.b16 %v4045, %v4041
      %4110 = vmatprep.subr.bf16.mxu0 %v4047
      %4111 = vmatpush1.bf16.msra.mxu0 %v4046
      %4112 = vmatprep.subr.bf16.mxu0 %v4051
      %4113 = vmatpush1.bf16.msra.mxu0 %v4050
      %4114 = vmatprep.subr.bf16.mxu0 %v4055
      %4115 = vmatpush1.bf16.msra.mxu0 %v4054
      %4116 = vmatprep.subr.bf16.mxu0 %v4059
      %4117 = vmatpush1.bf16.msra.mxu0 %v4058
      %4118 = vmatprep.subr.bf16.mxu0 %v4063
      %4119 = vmatpush1.bf16.msra.mxu0 %v4062
      %4120 = vmatprep.subr.bf16.mxu0 %v4067
      %4121 = vmatpush1.bf16.msra.mxu0 %v4066
      %4122 = vmatprep.subr.bf16.mxu0 %v4071
      %4123 = vmatpush1.bf16.msra.mxu0 %v4070
      %4124 = vmatprep.subr.bf16.mxu0 %v4075
      %4125 = vmatpush1.bf16.msra.mxu0 %v4074
      %4126 = vmatprep.subr.bf16.mxu0 0
      %4127 = vmatpush1.bf16.msra.mxu0 0
      %4128 = vmatprep.subr.bf16.mxu0 0
      %4129 = vmatpush1.bf16.msra.mxu0 0
      %4130 = vmatprep.subr.bf16.mxu0 0
      %4131 = vmatpush1.bf16.msra.mxu0 0
      %4132 = vmatprep.subr.bf16.mxu0 0
      %4133 = vmatpush1.bf16.msra.mxu0 0
      %4134 = vmatprep.subr.bf16.mxu0 0
      %4135 = vmatpush1.bf16.msra.mxu0 0
      %4136 = vmatprep.subr.bf16.mxu0 0
      %4137 = vmatpush1.bf16.msra.mxu0 0
      %4138 = vmatprep.subr.bf16.mxu0 0
      %4139 = vmatpush1.bf16.msra.mxu0 0
      %4140 = vmatprep.subr.bf16.mxu0 0
      %4141 = vmatpush1.bf16.msra.mxu0 0
      %4142 = vmatprep.mubr.bf16.mxu0 0
      %4143 = vmatmul.mubr.bf16.gmra.mrb[0].mxu0 %v3949
      %v4144 = vpop.f32.mrb[0].mxu0
      %v4145 = vadd.f32 0.0, %v4144
      %v4146 = vpop.f32.mrb[0].mxu0
      %v4147 = vadd.f32 0.0, %v4146
      %v4148 = vpop.f32.mrb[0].mxu0
      %v4149 = vpop.f32.mrb[0].mxu0
      %4150 = vdwg.mxu0
      %4151 = vmatprep.subr.bf16.mxu0 %v4049
      %4152 = vmatpush1.bf16.msra.mxu0 %v4048
      %4153 = vmatprep.subr.bf16.mxu0 %v4053
      %4154 = vmatpush1.bf16.msra.mxu0 %v4052
      %4155 = vmatprep.subr.bf16.mxu0 %v4057
      %4156 = vmatpush1.bf16.msra.mxu0 %v4056
      %4157 = vmatprep.subr.bf16.mxu0 %v4061
      %4158 = vmatpush1.bf16.msra.mxu0 %v4060
      %4159 = vmatprep.subr.bf16.mxu0 %v4065
      %4160 = vmatpush1.bf16.msra.mxu0 %v4064
      %4161 = vmatprep.subr.bf16.mxu0 %v4069
      %4162 = vmatpush1.bf16.msra.mxu0 %v4068
      %4163 = vmatprep.subr.bf16.mxu0 %v4073
      %4164 = vmatpush1.bf16.msra.mxu0 %v4072
      %4165 = vmatprep.subr.bf16.mxu0 %v4077
      %4166 = vmatpush1.bf16.msra.mxu0 %v4076
      %4167 = vmatprep.subr.bf16.mxu0 0
      %4168 = vmatpush1.bf16.msra.mxu0 0
      %4169 = vmatprep.subr.bf16.mxu0 0
      %4170 = vmatpush1.bf16.msra.mxu0 0
      %4171 = vmatprep.subr.bf16.mxu0 0
      %4172 = vmatpush1.bf16.msra.mxu0 0
      %4173 = vmatprep.subr.bf16.mxu0 0
      %4174 = vmatpush1.bf16.msra.mxu0 0
      %4175 = vmatprep.subr.bf16.mxu0 0
      %4176 = vmatpush1.bf16.msra.mxu0 0
      %4177 = vmatprep.subr.bf16.mxu0 0
      %4178 = vmatpush1.bf16.msra.mxu0 0
      %4179 = vmatprep.subr.bf16.mxu0 0
      %4180 = vmatpush1.bf16.msra.mxu0 0
      %4181 = vmatprep.subr.bf16.mxu0 0
      %4182 = vmatpush1.bf16.msra.mxu0 0
      %4183 = vmatprep.mubr.bf16.mxu0 0
      %4184 = vmatmul.mubr.bf16.gmra.mrb[0].mxu0 %v3949
      %v4185 = vpop.f32.mrb[0].mxu0
      %v4186 = vadd.f32 0.0, %v4185
      %v4187 = vpop.f32.mrb[0].mxu0
      %v4188 = vadd.f32 0.0, %v4187
      %v4189 = vpop.f32.mrb[0].mxu0
      %v4190 = vpop.f32.mrb[0].mxu0
      %4191 = vdwg.mxu0
      %v4192 = vadd.f32 %v3945, %v4145
      %v4193 = vadd.f32 %v3946, %v4147
      %v4194 = vadd.f32 %v3947, %v4186
      %v4195 = vadd.f32 %v3948, %v4188
      %v4196 = vxor.u32 %v4192, 2147483648
      %v4197 = vmul.f32 %v4196, 1.442695
      %v4198 = vpow.pop %v4197
      %v4199 = vadd.f32 %v4198, 1.0
      %v4200 = vrcp.pop %v4199
      %v4201 = vmul.f32 1.0, %v4200
      %v4202 = vxor.u32 %v4193, 2147483648
      %v4203 = vmul.f32 %v4202, 1.442695
      %v4204 = vpow.pop %v4203
      %v4205 = vadd.f32 %v4204, 1.0
      %v4206 = vrcp.pop %v4205
      %v4207 = vmul.f32 1.0, %v4206
      %v4208 = vtanh.pop %v4194
      %v4209 = vxor.u32 %v4195, 2147483648
      %v4210 = vmul.f32 %v4209, 1.442695
      %v4211 = vpow.pop %v4210
      %v4212 = vadd.f32 %v4211, 1.0
      %v4213 = vrcp.pop %v4212
      %v4214 = vmul.f32 1.0, %v4213
      %v4215 = vmul.f32 %v4207, %v3940
      %v4216 = vmul.f32 %v4201, %v4208
      %v4217 = vadd.f32 %v4215, %v4216
      %v4218 = vtanh.pop %v4217
      %v4219 = vmul.f32 %v4214, %v4218
      %s4220 = smul.u32 %s3941, 8
      %s4221 = scalar_lea.vmem [#allocation6], %s4220
      %4222 = vst [vmem:[%s4221] sm:$0xff] %v4219
    $region139: #{lstm_tagger_forward.1} parent=1 // loop_footer
      %s3938 = sadd.s32 1, %s3934
    $region140: #{lstm_tagger_forward.1} parent=1 // loop_footer_branch
      %3933 = sbr.rel target = $region136
    $region141: #{lstm_tagger_forward.1} parent=1 // loop_exit
      _
    %v4223 = vld [vmem:[#allocation5] sm:$0xff]
    %v4224 = vld [vmem:[#allocation5 + $0x8] sm:$0xff]
    %v4225 = vld [vmem:[#allocation5 + $0x10] sm:$0xff]
    %v4226 = vld [vmem:[#allocation5 + $0x18] sm:$0xff]
    %v4227 = vld [vmem:[#allocation5 + $0x20] sm:$0xff]
    %v4228 = vld [vmem:[#allocation5 + $0x28] sm:$0xff]
    %v4229 = vld [vmem:[#allocation5 + $0x30] sm:$0xff]
    %v4230 = vld [vmem:[#allocation5 + $0x38] sm:$0xff]
    %v4231 = vld [vmem:[#allocation5 + $0x40] sm:$0xff]
    %v4232 = vld [vmem:[#allocation5 + $0x48] sm:$0xff]
    %v4233 = vld [vmem:[#allocation5 + $0x50] sm:$0xff]
    %v4234 = vld [vmem:[#allocation5 + $0x58] sm:$0xff]
    %v4235 = vld [vmem:[#allocation5 + $0x60] sm:$0xff]
    %v4236 = vld [vmem:[#allocation5 + $0x68] sm:$0xff]
    %v4237 = vld [vmem:[#allocation5 + $0x70] sm:$0xff]
    %v4238 = vld [vmem:[#allocation5 + $0x78] sm:$0xff]
    %v4239 = vpack.c.bf16 %v4224, %v4223
    %v4240 = vpack.c.bf16 %v4226, %v4225
    %v4241 = vpack.c.bf16 %v4228, %v4227
    %v4242 = vpack.c.bf16 %v4230, %v4229
    %v4243 = vpack.c.bf16 %v4232, %v4231
    %v4244 = vpack.c.bf16 %v4234, %v4233
    %v4245 = vpack.c.bf16 %v4236, %v4235
    %v4246 = vpack.c.bf16 %v4238, %v4237
    %v4247 = vld [vmem:[#allocation6] sm:$0xff]
    %v4248 = vld [vmem:[#allocation6 + $0x8] sm:$0xff]
    %v4249 = vld [vmem:[#allocation6 + $0x10] sm:$0xff]
    %v4250 = vld [vmem:[#allocation6 + $0x18] sm:$0xff]
    %v4251 = vld [vmem:[#allocation6 + $0x20] sm:$0xff]
    %v4252 = vld [vmem:[#allocation6 + $0x28] sm:$0xff]
    %v4253 = vld [vmem:[#allocation6 + $0x30] sm:$0xff]
    %v4254 = vld [vmem:[#allocation6 + $0x38] sm:$0xff]
    %v4255 = vld [vmem:[#allocation6 + $0x40] sm:$0xff]
    %v4256 = vld [vmem:[#allocation6 + $0x48] sm:$0xff]
    %v4257 = vld [vmem:[#allocation6 + $0x50] sm:$0xff]
    %v4258 = vld [vmem:[#allocation6 + $0x58] sm:$0xff]
    %v4259 = vld [vmem:[#allocation6 + $0x60] sm:$0xff]
    %v4260 = vld [vmem:[#allocation6 + $0x68] sm:$0xff]
    %v4261 = vld [vmem:[#allocation6 + $0x70] sm:$0xff]
    %v4262 = vld [vmem:[#allocation6 + $0x78] sm:$0xff]
    %v4263 = vpack.c.bf16 %v4248, %v4247
    %v4264 = vpack.c.bf16 %v4250, %v4249
    %v4265 = vpack.c.bf16 %v4252, %v4251
    %v4266 = vpack.c.bf16 %v4254, %v4253
    %v4267 = vpack.c.bf16 %v4256, %v4255
    %v4268 = vpack.c.bf16 %v4258, %v4257
    %v4269 = vpack.c.bf16 %v4260, %v4259
    %v4270 = vpack.c.bf16 %v4262, %v4261
    %v4271 = vld [vmem:[%s15] sm:$0xf]
    %v4272 = vld [vmem:[%s15 + $0x4] sm:$0xf]
    %v4273 = vld [vmem:[%s15 + $0x8] sm:$0xf]
    %v4274 = vld [vmem:[%s15 + $0xc] sm:$0xf]
    %v4275 = vld [vmem:[%s15 + $0x10] sm:$0xf]
    %v4276 = vld [vmem:[%s15 + $0x14] sm:$0xf]
    %v4277 = vld [vmem:[%s15 + $0x18] sm:$0xf]
    %v4278 = vld [vmem:[%s15 + $0x1c] sm:$0xf]
    %v4279 = vld [vmem:[%s15 + $0x20] sm:$0xf]
    %v4280 = vld [vmem:[%s15 + $0x24] sm:$0xf]
    %v4281 = vld [vmem:[%s15 + $0x28] sm:$0xf]
    %v4282 = vld [vmem:[%s15 + $0x2c] sm:$0xf]
    %v4283 = vld [vmem:[%s15 + $0x30] sm:$0xf]
    %v4284 = vld [vmem:[%s15 + $0x34] sm:$0xf]
    %v4285 = vld [vmem:[%s15 + $0x38] sm:$0xf]
    %v4286 = vld [vmem:[%s15 + $0x3c] sm:$0xf]
    %v4287 = vld [vmem:[%s16] sm:$0xf]
    %v4288 = vld [vmem:[%s16 + $0x4] sm:$0xf]
    %v4289 = vld [vmem:[%s16 + $0x8] sm:$0xf]
    %v4290 = vld [vmem:[%s16 + $0xc] sm:$0xf]
    %v4291 = vld [vmem:[%s16 + $0x10] sm:$0xf]
    %v4292 = vld [vmem:[%s16 + $0x14] sm:$0xf]
    %v4293 = vld [vmem:[%s16 + $0x18] sm:$0xf]
    %v4294 = vld [vmem:[%s16 + $0x1c] sm:$0xf]
    %v4295 = vld [vmem:[%s16 + $0x20] sm:$0xf]
    %v4296 = vld [vmem:[%s16 + $0x24] sm:$0xf]
    %v4297 = vld [vmem:[%s16 + $0x28] sm:$0xf]
    %v4298 = vld [vmem:[%s16 + $0x2c] sm:$0xf]
    %v4299 = vld [vmem:[%s16 + $0x30] sm:$0xf]
    %v4300 = vld [vmem:[%s16 + $0x34] sm:$0xf]
    %v4301 = vld [vmem:[%s16 + $0x38] sm:$0xf]
    %v4302 = vld [vmem:[%s16 + $0x3c] sm:$0xf]
    %v4319 = vunpack.c.l.b16 %v4287
    %v4320 = vunpack.c.l.b16 %v4288
    %v4321 = vunpack.c.l.b16 %v4289
    %v4322 = vunpack.c.l.b16 %v4290
    %v4323 = vunpack.c.l.b16 %v4291
    %v4324 = vunpack.c.l.b16 %v4292
    %v4325 = vunpack.c.l.b16 %v4293
    %v4326 = vunpack.c.l.b16 %v4294
    %v4327 = vunpack.c.l.b16 %v4295
    %v4328 = vunpack.c.l.b16 %v4296
    %v4329 = vunpack.c.l.b16 %v4297
    %v4330 = vunpack.c.l.b16 %v4298
    %v4331 = vunpack.c.l.b16 %v4299
    %v4332 = vunpack.c.l.b16 %v4300
    %v4333 = vunpack.c.l.b16 %v4301
    %v4334 = vunpack.c.l.b16 %v4302
    %v4335 = vpack.c.b16 %v4320, %v4319
    %v4336 = vpack.c.b16 %v4322, %v4321
    %v4337 = vpack.c.b16 %v4324, %v4323
    %v4338 = vpack.c.b16 %v4326, %v4325
    %v4339 = vpack.c.b16 %v4328, %v4327
    %v4340 = vpack.c.b16 %v4330, %v4329
    %v4341 = vpack.c.b16 %v4332, %v4331
    %v4342 = vpack.c.b16 %v4334, %v4333
    %4351 = vmatprep.subr.bf16.mxu0 0
    %4352 = vmatpush1.bf16.msra.mxu0 %v4335
    %4353 = vmatprep.subr.bf16.mxu0 0
    %4354 = vmatpush1.bf16.msra.mxu0 %v4336
    %4355 = vmatprep.subr.bf16.mxu0 0
    %4356 = vmatpush1.bf16.msra.mxu0 %v4337
    %4357 = vmatprep.subr.bf16.mxu0 0
    %4358 = vmatpush1.bf16.msra.mxu0 %v4338
    %4359 = vmatprep.subr.bf16.mxu0 0
    %4360 = vmatpush1.bf16.msra.mxu0 %v4339
    %4361 = vmatprep.subr.bf16.mxu0 0
    %4362 = vmatpush1.bf16.msra.mxu0 %v4340
    %4363 = vmatprep.subr.bf16.mxu0 0
    %4364 = vmatpush1.bf16.msra.mxu0 %v4341
    %4365 = vmatprep.subr.bf16.mxu0 0
    %4366 = vmatpush1.bf16.msra.mxu0 %v4342
    %4367 = vmatprep.subr.bf16.mxu0 0
    %4368 = vmatpush1.bf16.msra.mxu0 0
    %4369 = vmatprep.subr.bf16.mxu0 0
    %4370 = vmatpush1.bf16.msra.mxu0 0
    %4371 = vmatprep.subr.bf16.mxu0 0
    %4372 = vmatpush1.bf16.msra.mxu0 0
    %4373 = vmatprep.subr.bf16.mxu0 0
    %4374 = vmatpush1.bf16.msra.mxu0 0
    %4375 = vmatprep.subr.bf16.mxu0 0
    %4376 = vmatpush1.bf16.msra.mxu0 0
    %4377 = vmatprep.subr.bf16.mxu0 0
    %4378 = vmatpush1.bf16.msra.mxu0 0
    %4379 = vmatprep.subr.bf16.mxu0 0
    %4380 = vmatpush1.bf16.msra.mxu0 0
    %4381 = vmatprep.subr.bf16.mxu0 0
    %4382 = vmatpush1.bf16.msra.mxu0 0
    %4383 = vmatprep.mubr.bf16.mxu0 0
    %4384 = vmatmul.mubr.bf16.gmra.mrb[0].mxu0 %v4263
    %v4385 = vpop.f32.mrb[0].mxu0
    %v4386 = vadd.f32 0.0, %v4385
    %v4387 = vpop.f32.mrb[0].mxu0
    %v4388 = vpop.f32.mrb[0].mxu0
    %v4389 = vadd.f32 0.0, %v4388
    %v4390 = vpop.f32.mrb[0].mxu0
    %4391 = vmatprep.mubr.bf16.mxu0 0
    %4392 = vmatmul.mubr.bf16.gmra.mrb[0].mxu0 %v4264
    %v4393 = vpop.f32.mrb[0].mxu0
    %v4394 = vadd.f32 0.0, %v4393
    %v4395 = vpop.f32.mrb[0].mxu0
    %v4396 = vpop.f32.mrb[0].mxu0
    %v4397 = vadd.f32 0.0, %v4396
    %v4398 = vpop.f32.mrb[0].mxu0
    %4399 = vmatprep.mubr.bf16.mxu0 0
    %4400 = vmatmul.mubr.bf16.gmra.mrb[0].mxu0 %v4265
    %v4401 = vpop.f32.mrb[0].mxu0
    %v4402 = vadd.f32 0.0, %v4401
    %v4403 = vpop.f32.mrb[0].mxu0
    %v4404 = vpop.f32.mrb[0].mxu0
    %v4405 = vadd.f32 0.0, %v4404
    %v4406 = vpop.f32.mrb[0].mxu0
    %4407 = vmatprep.mubr.bf16.mxu0 0
    %4408 = vmatmul.mubr.bf16.gmra.mrb[0].mxu0 %v4266
    %v4409 = vpop.f32.mrb[0].mxu0
    %v4410 = vadd.f32 0.0, %v4409
    %v4411 = vpop.f32.mrb[0].mxu0
    %v4412 = vpop.f32.mrb[0].mxu0
    %v4413 = vadd.f32 0.0, %v4412
    %v4414 = vpop.f32.mrb[0].mxu0
    %4415 = vmatprep.mubr.bf16.mxu0 0
    %4416 = vmatmul.mubr.bf16.gmra.mrb[0].mxu0 %v4267
    %v4417 = vpop.f32.mrb[0].mxu0
    %v4418 = vadd.f32 0.0, %v4417
    %v4419 = vpop.f32.mrb[0].mxu0
    %v4420 = vpop.f32.mrb[0].mxu0
    %v4421 = vadd.f32 0.0, %v4420
    %v4422 = vpop.f32.mrb[0].mxu0
    %4423 = vmatprep.mubr.bf16.mxu0 0
    %4424 = vmatmul.mubr.bf16.gmra.mrb[0].mxu0 %v4268
    %v4425 = vpop.f32.mrb[0].mxu0
    %v4426 = vadd.f32 0.0, %v4425
    %v4427 = vpop.f32.mrb[0].mxu0
    %v4428 = vpop.f32.mrb[0].mxu0
    %v4429 = vadd.f32 0.0, %v4428
    %v4430 = vpop.f32.mrb[0].mxu0
    %4431 = vmatprep.mubr.bf16.mxu0 0
    %4432 = vmatmul.mubr.bf16.gmra.mrb[0].mxu0 %v4269
    %v4433 = vpop.f32.mrb[0].mxu0
    %v4434 = vadd.f32 0.0, %v4433
    %v4435 = vpop.f32.mrb[0].mxu0
    %v4436 = vpop.f32.mrb[0].mxu0
    %v4437 = vadd.f32 0.0, %v4436
    %v4438 = vpop.f32.mrb[0].mxu0
    %4439 = vmatprep.mubr.bf16.mxu0 0
    %4440 = vmatmul.mubr.bf16.gmra.mrb[0].mxu0 %v4270
    %v4441 = vpop.f32.mrb[0].mxu0
    %v4442 = vadd.f32 0.0, %v4441
    %v4443 = vpop.f32.mrb[0].mxu0
    %v4444 = vpop.f32.mrb[0].mxu0
    %v4445 = vadd.f32 0.0, %v4444
    %v4446 = vpop.f32.mrb[0].mxu0
    %4447 = vdwg.mxu0
    %v4464 = vunpack.c.l.b16 %v4271
    %v4465 = vunpack.c.l.b16 %v4272
    %v4466 = vunpack.c.l.b16 %v4273
    %v4467 = vunpack.c.l.b16 %v4274
    %v4468 = vunpack.c.l.b16 %v4275
    %v4469 = vunpack.c.l.b16 %v4276
    %v4470 = vunpack.c.l.b16 %v4277
    %v4471 = vunpack.c.l.b16 %v4278
    %v4472 = vunpack.c.l.b16 %v4279
    %v4473 = vunpack.c.l.b16 %v4280
    %v4474 = vunpack.c.l.b16 %v4281
    %v4475 = vunpack.c.l.b16 %v4282
    %v4476 = vunpack.c.l.b16 %v4283
    %v4477 = vunpack.c.l.b16 %v4284
    %v4478 = vunpack.c.l.b16 %v4285
    %v4479 = vunpack.c.l.b16 %v4286
    %v4480 = vpack.c.b16 %v4465, %v4464
    %v4481 = vpack.c.b16 %v4467, %v4466
    %v4482 = vpack.c.b16 %v4469, %v4468
    %v4483 = vpack.c.b16 %v4471, %v4470
    %v4484 = vpack.c.b16 %v4473, %v4472
    %v4485 = vpack.c.b16 %v4475, %v4474
    %v4486 = vpack.c.b16 %v4477, %v4476
    %v4487 = vpack.c.b16 %v4479, %v4478
    %4496 = vmatprep.subr.bf16.mxu0 0
    %4497 = vmatpush1.bf16.msra.mxu0 %v4480
    %4498 = vmatprep.subr.bf16.mxu0 0
    %4499 = vmatpush1.bf16.msra.mxu0 %v4481
    %4500 = vmatprep.subr.bf16.mxu0 0
    %4501 = vmatpush1.bf16.msra.mxu0 %v4482
    %4502 = vmatprep.subr.bf16.mxu0 0
    %4503 = vmatpush1.bf16.msra.mxu0 %v4483
    %4504 = vmatprep.subr.bf16.mxu0 0
    %4505 = vmatpush1.bf16.msra.mxu0 %v4484
    %4506 = vmatprep.subr.bf16.mxu0 0
    %4507 = vmatpush1.bf16.msra.mxu0 %v4485
    %4508 = vmatprep.subr.bf16.mxu0 0
    %4509 = vmatpush1.bf16.msra.mxu0 %v4486
    %4510 = vmatprep.subr.bf16.mxu0 0
    %4511 = vmatpush1.bf16.msra.mxu0 %v4487
    %4512 = vmatprep.subr.bf16.mxu0 0
    %4513 = vmatpush1.bf16.msra.mxu0 0
    %4514 = vmatprep.subr.bf16.mxu0 0
    %4515 = vmatpush1.bf16.msra.mxu0 0
    %4516 = vmatprep.subr.bf16.mxu0 0
    %4517 = vmatpush1.bf16.msra.mxu0 0
    %4518 = vmatprep.subr.bf16.mxu0 0
    %4519 = vmatpush1.bf16.msra.mxu0 0
    %4520 = vmatprep.subr.bf16.mxu0 0
    %4521 = vmatpush1.bf16.msra.mxu0 0
    %4522 = vmatprep.subr.bf16.mxu0 0
    %4523 = vmatpush1.bf16.msra.mxu0 0
    %4524 = vmatprep.subr.bf16.mxu0 0
    %4525 = vmatpush1.bf16.msra.mxu0 0
    %4526 = vmatprep.subr.bf16.mxu0 0
    %4527 = vmatpush1.bf16.msra.mxu0 0
    %4528 = vmatprep.mubr.bf16.mxu0 0
    %4529 = vmatmul.mubr.bf16.gmra.mrb[0].mxu0 %v4239
    %v4530 = vpop.f32.mrb[0].mxu0
    %v4531 = vadd.f32 %v4386, %v4530
    %v4532 = vpop.f32.mrb[0].mxu0
    %v4533 = vpop.f32.mrb[0].mxu0
    %v4534 = vadd.f32 %v4389, %v4533
    %v4535 = vpop.f32.mrb[0].mxu0
    %4536 = vmatprep.mubr.bf16.mxu0 0
    %4537 = vmatmul.mubr.bf16.gmra.mrb[0].mxu0 %v4240
    %v4538 = vpop.f32.mrb[0].mxu0
    %v4539 = vadd.f32 %v4394, %v4538
    %v4540 = vpop.f32.mrb[0].mxu0
    %v4541 = vpop.f32.mrb[0].mxu0
    %v4542 = vadd.f32 %v4397, %v4541
    %v4543 = vpop.f32.mrb[0].mxu0
    %4544 = vmatprep.mubr.bf16.mxu0 0
    %4545 = vmatmul.mubr.bf16.gmra.mrb[0].mxu0 %v4241
    %v4546 = vpop.f32.mrb[0].mxu0
    %v4547 = vadd.f32 %v4402, %v4546
    %v4548 = vpop.f32.mrb[0].mxu0
    %v4549 = vpop.f32.mrb[0].mxu0
    %v4550 = vadd.f32 %v4405, %v4549
    %v4551 = vpop.f32.mrb[0].mxu0
    %4552 = vmatprep.mubr.bf16.mxu0 0
    %4553 = vmatmul.mubr.bf16.gmra.mrb[0].mxu0 %v4242
    %v4554 = vpop.f32.mrb[0].mxu0
    %v4555 = vadd.f32 %v4410, %v4554
    %v4556 = vpop.f32.mrb[0].mxu0
    %v4557 = vpop.f32.mrb[0].mxu0
    %v4558 = vadd.f32 %v4413, %v4557
    %v4559 = vpop.f32.mrb[0].mxu0
    %4560 = vmatprep.mubr.bf16.mxu0 0
    %4561 = vmatmul.mubr.bf16.gmra.mrb[0].mxu0 %v4243
    %v4562 = vpop.f32.mrb[0].mxu0
    %v4563 = vadd.f32 %v4418, %v4562
    %v4564 = vpop.f32.mrb[0].mxu0
    %v4565 = vpop.f32.mrb[0].mxu0
    %v4566 = vadd.f32 %v4421, %v4565
    %v4567 = vpop.f32.mrb[0].mxu0
    %4568 = vmatprep.mubr.bf16.mxu0 0
    %4569 = vmatmul.mubr.bf16.gmra.mrb[0].mxu0 %v4244
    %v4570 = vpop.f32.mrb[0].mxu0
    %v4571 = vadd.f32 %v4426, %v4570
    %v4572 = vpop.f32.mrb[0].mxu0
    %v4573 = vpop.f32.mrb[0].mxu0
    %v4574 = vadd.f32 %v4429, %v4573
    %v4575 = vpop.f32.mrb[0].mxu0
    %4576 = vmatprep.mubr.bf16.mxu0 0
    %4577 = vmatmul.mubr.bf16.gmra.mrb[0].mxu0 %v4245
    %v4578 = vpop.f32.mrb[0].mxu0
    %v4579 = vadd.f32 %v4434, %v4578
    %v4580 = vpop.f32.mrb[0].mxu0
    %v4581 = vpop.f32.mrb[0].mxu0
    %v4582 = vadd.f32 %v4437, %v4581
    %v4583 = vpop.f32.mrb[0].mxu0
    %4584 = vmatprep.mubr.bf16.mxu0 0
    %4585 = vmatmul.mubr.bf16.gmra.mrb[0].mxu0 %v4246
    %v4586 = vpop.f32.mrb[0].mxu0
    %v4587 = vadd.f32 %v4442, %v4586
    %v4588 = vpop.f32.mrb[0].mxu0
    %v4589 = vpop.f32.mrb[0].mxu0
    %v4590 = vadd.f32 %v4445, %v4589
    %v4591 = vpop.f32.mrb[0].mxu0
    %4592 = vdwg.mxu0
    %v4593 = vld [vmem:[%s17] sm:$0x1]
    %v4595 = vlaneseq
    %v4596 = vshrl.u32 %v4595, 7
    %v4597 = vsub.s32 0, %v4596
    %v4598 = vrot.slane %v4593, %v4597
    %v4600 = vadd.f32 %v4531, %v4598
    %v4601 = vadd.f32 %v4534, %v4598
    %v4602 = vadd.f32 %v4539, %v4598
    %v4603 = vadd.f32 %v4542, %v4598
    %v4604 = vadd.f32 %v4547, %v4598
    %v4605 = vadd.f32 %v4550, %v4598
    %v4606 = vadd.f32 %v4555, %v4598
    %v4607 = vadd.f32 %v4558, %v4598
    %v4608 = vadd.f32 %v4563, %v4598
    %v4609 = vadd.f32 %v4566, %v4598
    %v4610 = vadd.f32 %v4571, %v4598
    %v4611 = vadd.f32 %v4574, %v4598
    %v4612 = vadd.f32 %v4579, %v4598
    %v4613 = vadd.f32 %v4582, %v4598
    %v4614 = vadd.f32 %v4587, %v4598
    %v4615 = vadd.f32 %v4590, %v4598
    %vm4616 = vcmask 64512
    %v4617 = vsel %vm4616, %v4600, -inf
    %v4618 = vrot.slane %v4617, 4
    %v4619 = vmax.f32 %v4617, %v4618
    %v4620 = vrot.slane %v4619, 2
    %v4621 = vmax.f32 %v4619, %v4620
    %v4622 = vrot.slane %v4621, 1
    %v4623 = vmax.f32 %v4621, %v4622
    %v4624 = vsel %vm4616, %v4601, -inf
    %v4625 = vrot.slane %v4624, 4
    %v4626 = vmax.f32 %v4624, %v4625
    %v4627 = vrot.slane %v4626, 2
    %v4628 = vmax.f32 %v4626, %v4627
    %v4629 = vrot.slane %v4628, 1
    %v4630 = vmax.f32 %v4628, %v4629
    %v4631 = vsel %vm4616, %v4602, -inf
    %v4632 = vrot.slane %v4631, 4
    %v4633 = vmax.f32 %v4631, %v4632
    %v4634 = vrot.slane %v4633, 2
    %v4635 = vmax.f32 %v4633, %v4634
    %v4636 = vrot.slane %v4635, 1
    %v4637 = vmax.f32 %v4635, %v4636
    %v4638 = vsel %vm4616, %v4603, -inf
    %v4639 = vrot.slane %v4638, 4
    %v4640 = vmax.f32 %v4638, %v4639
    %v4641 = vrot.slane %v4640, 2
    %v4642 = vmax.f32 %v4640, %v4641
    %v4643 = vrot.slane %v4642, 1
    %v4644 = vmax.f32 %v4642, %v4643
    %v4645 = vsel %vm4616, %v4604, -inf
    %v4646 = vrot.slane %v4645, 4
    %v4647 = vmax.f32 %v4645, %v4646
    %v4648 = vrot.slane %v4647, 2
    %v4649 = vmax.f32 %v4647, %v4648
    %v4650 = vrot.slane %v4649, 1
    %v4651 = vmax.f32 %v4649, %v4650
    %v4652 = vsel %vm4616, %v4605, -inf
    %v4653 = vrot.slane %v4652, 4
    %v4654 = vmax.f32 %v4652, %v4653
    %v4655 = vrot.slane %v4654, 2
    %v4656 = vmax.f32 %v4654, %v4655
    %v4657 = vrot.slane %v4656, 1
    %v4658 = vmax.f32 %v4656, %v4657
    %v4659 = vsel %vm4616, %v4606, -inf
    %v4660 = vrot.slane %v4659, 4
    %v4661 = vmax.f32 %v4659, %v4660
    %v4662 = vrot.slane %v4661, 2
    %v4663 = vmax.f32 %v4661, %v4662
    %v4664 = vrot.slane %v4663, 1
    %v4665 = vmax.f32 %v4663, %v4664
    %v4666 = vsel %vm4616, %v4607, -inf
    %v4667 = vrot.slane %v4666, 4
    %v4668 = vmax.f32 %v4666, %v4667
    %v4669 = vrot.slane %v4668, 2
    %v4670 = vmax.f32 %v4668, %v4669
    %v4671 = vrot.slane %v4670, 1
    %v4672 = vmax.f32 %v4670, %v4671
    %v4673 = vsel %vm4616, %v4608, -inf
    %v4674 = vrot.slane %v4673, 4
    %v4675 = vmax.f32 %v4673, %v4674
    %v4676 = vrot.slane %v4675, 2
    %v4677 = vmax.f32 %v4675, %v4676
    %v4678 = vrot.slane %v4677, 1
    %v4679 = vmax.f32 %v4677, %v4678
    %v4680 = vsel %vm4616, %v4609, -inf
    %v4681 = vrot.slane %v4680, 4
    %v4682 = vmax.f32 %v4680, %v4681
    %v4683 = vrot.slane %v4682, 2
    %v4684 = vmax.f32 %v4682, %v4683
    %v4685 = vrot.slane %v4684, 1
    %v4686 = vmax.f32 %v4684, %v4685
    %v4687 = vsel %vm4616, %v4610, -inf
    %v4688 = vrot.slane %v4687, 4
    %v4689 = vmax.f32 %v4687, %v4688
    %v4690 = vrot.slane %v4689, 2
    %v4691 = vmax.f32 %v4689, %v4690
    %v4692 = vrot.slane %v4691, 1
    %v4693 = vmax.f32 %v4691, %v4692
    %v4694 = vsel %vm4616, %v4611, -inf
    %v4695 = vrot.slane %v4694, 4
    %v4696 = vmax.f32 %v4694, %v4695
    %v4697 = vrot.slane %v4696, 2
    %v4698 = vmax.f32 %v4696, %v4697
    %v4699 = vrot.slane %v4698, 1
    %v4700 = vmax.f32 %v4698, %v4699
    %v4701 = vsel %vm4616, %v4612, -inf
    %v4702 = vrot.slane %v4701, 4
    %v4703 = vmax.f32 %v4701, %v4702
    %v4704 = vrot.slane %v4703, 2
    %v4705 = vmax.f32 %v4703, %v4704
    %v4706 = vrot.slane %v4705, 1
    %v4707 = vmax.f32 %v4705, %v4706
    %v4708 = vsel %vm4616, %v4613, -inf
    %v4709 = vrot.slane %v4708, 4
    %v4710 = vmax.f32 %v4708, %v4709
    %v4711 = vrot.slane %v4710, 2
    %v4712 = vmax.f32 %v4710, %v4711
    %v4713 = vrot.slane %v4712, 1
    %v4714 = vmax.f32 %v4712, %v4713
    %v4715 = vsel %vm4616, %v4614, -inf
    %v4716 = vrot.slane %v4715, 4
    %v4717 = vmax.f32 %v4715, %v4716
    %v4718 = vrot.slane %v4717, 2
    %v4719 = vmax.f32 %v4717, %v4718
    %v4720 = vrot.slane %v4719, 1
    %v4721 = vmax.f32 %v4719, %v4720
    %v4722 = vsel %vm4616, %v4615, -inf
    %v4723 = vrot.slane %v4722, 4
    %v4724 = vmax.f32 %v4722, %v4723
    %v4725 = vrot.slane %v4724, 2
    %v4726 = vmax.f32 %v4724, %v4725
    %v4727 = vrot.slane %v4726, 1
    %v4728 = vmax.f32 %v4726, %v4727
    %v4729 = vsub.f32 %v4600, %v4623
    %v4730 = vsub.f32 %v4601, %v4630
    %v4731 = vsub.f32 %v4602, %v4637
    %v4732 = vsub.f32 %v4603, %v4644
    %v4733 = vsub.f32 %v4604, %v4651
    %v4734 = vsub.f32 %v4605, %v4658
    %v4735 = vsub.f32 %v4606, %v4665
    %v4736 = vsub.f32 %v4607, %v4672
    %v4737 = vsub.f32 %v4608, %v4679
    %v4738 = vsub.f32 %v4609, %v4686
    %v4739 = vsub.f32 %v4610, %v4693
    %v4740 = vsub.f32 %v4611, %v4700
    %v4741 = vsub.f32 %v4612, %v4707
    %v4742 = vsub.f32 %v4613, %v4714
    %v4743 = vsub.f32 %v4614, %v4721
    %v4744 = vsub.f32 %v4615, %v4728
    %v4745 = vmul.f32 %v4729, 1.442695
    %v4746 = vpow.pop %v4745
    %v4747 = vmul.f32 %v4730, 1.442695
    %v4748 = vpow.pop %v4747
    %v4749 = vmul.f32 %v4731, 1.442695
    %v4750 = vpow.pop %v4749
    %v4751 = vmul.f32 %v4732, 1.442695
    %v4752 = vpow.pop %v4751
    %v4753 = vmul.f32 %v4733, 1.442695
    %v4754 = vpow.pop %v4753
    %v4755 = vmul.f32 %v4734, 1.442695
    %v4756 = vpow.pop %v4755
    %v4757 = vmul.f32 %v4735, 1.442695
    %v4758 = vpow.pop %v4757
    %v4759 = vmul.f32 %v4736, 1.442695
    %v4760 = vpow.pop %v4759
    %v4761 = vmul.f32 %v4737, 1.442695
    %v4762 = vpow.pop %v4761
    %v4763 = vmul.f32 %v4738, 1.442695
    %v4764 = vpow.pop %v4763
    %v4765 = vmul.f32 %v4739, 1.442695
    %v4766 = vpow.pop %v4765
    %v4767 = vmul.f32 %v4740, 1.442695
    %v4768 = vpow.pop %v4767
    %v4769 = vmul.f32 %v4741, 1.442695
    %v4770 = vpow.pop %v4769
    %v4771 = vmul.f32 %v4742, 1.442695
    %v4772 = vpow.pop %v4771
    %v4773 = vmul.f32 %v4743, 1.442695
    %v4774 = vpow.pop %v4773
    %v4775 = vmul.f32 %v4744, 1.442695
    %v4776 = vpow.pop %v4775
    %v4777 = vsel %vm4616, %v4746, 0.0
    %v4778 = vrot.slane %v4777, 4
    %v4779 = vadd.f32 %v4777, %v4778
    %v4780 = vrot.slane %v4779, 2
    %v4781 = vadd.f32 %v4779, %v4780
    %v4782 = vrot.slane %v4781, 1
    %v4783 = vadd.f32 %v4781, %v4782
    %v4784 = vsel %vm4616, %v4748, 0.0
    %v4785 = vrot.slane %v4784, 4
    %v4786 = vadd.f32 %v4784, %v4785
    %v4787 = vrot.slane %v4786, 2
    %v4788 = vadd.f32 %v4786, %v4787
    %v4789 = vrot.slane %v4788, 1
    %v4790 = vadd.f32 %v4788, %v4789
    %v4791 = vsel %vm4616, %v4750, 0.0
    %v4792 = vrot.slane %v4791, 4
    %v4793 = vadd.f32 %v4791, %v4792
    %v4794 = vrot.slane %v4793, 2
    %v4795 = vadd.f32 %v4793, %v4794
    %v4796 = vrot.slane %v4795, 1
    %v4797 = vadd.f32 %v4795, %v4796
    %v4798 = vsel %vm4616, %v4752, 0.0
    %v4799 = vrot.slane %v4798, 4
    %v4800 = vadd.f32 %v4798, %v4799
    %v4801 = vrot.slane %v4800, 2
    %v4802 = vadd.f32 %v4800, %v4801
    %v4803 = vrot.slane %v4802, 1
    %v4804 = vadd.f32 %v4802, %v4803
    %v4805 = vsel %vm4616, %v4754, 0.0
    %v4806 = vrot.slane %v4805, 4
    %v4807 = vadd.f32 %v4805, %v4806
    %v4808 = vrot.slane %v4807, 2
    %v4809 = vadd.f32 %v4807, %v4808
    %v4810 = vrot.slane %v4809, 1
    %v4811 = vadd.f32 %v4809, %v4810
    %v4812 = vsel %vm4616, %v4756, 0.0
    %v4813 = vrot.slane %v4812, 4
    %v4814 = vadd.f32 %v4812, %v4813
    %v4815 = vrot.slane %v4814, 2
    %v4816 = vadd.f32 %v4814, %v4815
    %v4817 = vrot.slane %v4816, 1
    %v4818 = vadd.f32 %v4816, %v4817
    %v4819 = vsel %vm4616, %v4758, 0.0
    %v4820 = vrot.slane %v4819, 4
    %v4821 = vadd.f32 %v4819, %v4820
    %v4822 = vrot.slane %v4821, 2
    %v4823 = vadd.f32 %v4821, %v4822
    %v4824 = vrot.slane %v4823, 1
    %v4825 = vadd.f32 %v4823, %v4824
    %v4826 = vsel %vm4616, %v4760, 0.0
    %v4827 = vrot.slane %v4826, 4
    %v4828 = vadd.f32 %v4826, %v4827
    %v4829 = vrot.slane %v4828, 2
    %v4830 = vadd.f32 %v4828, %v4829
    %v4831 = vrot.slane %v4830, 1
    %v4832 = vadd.f32 %v4830, %v4831
    %v4833 = vsel %vm4616, %v4762, 0.0
    %v4834 = vrot.slane %v4833, 4
    %v4835 = vadd.f32 %v4833, %v4834
    %v4836 = vrot.slane %v4835, 2
    %v4837 = vadd.f32 %v4835, %v4836
    %v4838 = vrot.slane %v4837, 1
    %v4839 = vadd.f32 %v4837, %v4838
    %v4840 = vsel %vm4616, %v4764, 0.0
    %v4841 = vrot.slane %v4840, 4
    %v4842 = vadd.f32 %v4840, %v4841
    %v4843 = vrot.slane %v4842, 2
    %v4844 = vadd.f32 %v4842, %v4843
    %v4845 = vrot.slane %v4844, 1
    %v4846 = vadd.f32 %v4844, %v4845
    %v4847 = vsel %vm4616, %v4766, 0.0
    %v4848 = vrot.slane %v4847, 4
    %v4849 = vadd.f32 %v4847, %v4848
    %v4850 = vrot.slane %v4849, 2
    %v4851 = vadd.f32 %v4849, %v4850
    %v4852 = vrot.slane %v4851, 1
    %v4853 = vadd.f32 %v4851, %v4852
    %v4854 = vsel %vm4616, %v4768, 0.0
    %v4855 = vrot.slane %v4854, 4
    %v4856 = vadd.f32 %v4854, %v4855
    %v4857 = vrot.slane %v4856, 2
    %v4858 = vadd.f32 %v4856, %v4857
    %v4859 = vrot.slane %v4858, 1
    %v4860 = vadd.f32 %v4858, %v4859
    %v4861 = vsel %vm4616, %v4770, 0.0
    %v4862 = vrot.slane %v4861, 4
    %v4863 = vadd.f32 %v4861, %v4862
    %v4864 = vrot.slane %v4863, 2
    %v4865 = vadd.f32 %v4863, %v4864
    %v4866 = vrot.slane %v4865, 1
    %v4867 = vadd.f32 %v4865, %v4866
    %v4868 = vsel %vm4616, %v4772, 0.0
    %v4869 = vrot.slane %v4868, 4
    %v4870 = vadd.f32 %v4868, %v4869
    %v4871 = vrot.slane %v4870, 2
    %v4872 = vadd.f32 %v4870, %v4871
    %v4873 = vrot.slane %v4872, 1
    %v4874 = vadd.f32 %v4872, %v4873
    %v4875 = vsel %vm4616, %v4774, 0.0
    %v4876 = vrot.slane %v4875, 4
    %v4877 = vadd.f32 %v4875, %v4876
    %v4878 = vrot.slane %v4877, 2
    %v4879 = vadd.f32 %v4877, %v4878
    %v4880 = vrot.slane %v4879, 1
    %v4881 = vadd.f32 %v4879, %v4880
    %v4882 = vsel %vm4616, %v4776, 0.0
    %v4883 = vrot.slane %v4882, 4
    %v4884 = vadd.f32 %v4882, %v4883
    %v4885 = vrot.slane %v4884, 2
    %v4886 = vadd.f32 %v4884, %v4885
    %v4887 = vrot.slane %v4886, 1
    %v4888 = vadd.f32 %v4886, %v4887
    %v4889 = vlog2.pop %v4783
    %v4890 = vmul.f32 %v4889, 0.6931472
    %v4891 = vlog2.pop %v4790
    %v4892 = vmul.f32 %v4891, 0.6931472
    %v4893 = vlog2.pop %v4797
    %v4894 = vmul.f32 %v4893, 0.6931472
    %v4895 = vlog2.pop %v4804
    %v4896 = vmul.f32 %v4895, 0.6931472
    %v4897 = vlog2.pop %v4811
    %v4898 = vmul.f32 %v4897, 0.6931472
    %v4899 = vlog2.pop %v4818
    %v4900 = vmul.f32 %v4899, 0.6931472
    %v4901 = vlog2.pop %v4825
    %v4902 = vmul.f32 %v4901, 0.6931472
    %v4903 = vlog2.pop %v4832
    %v4904 = vmul.f32 %v4903, 0.6931472
    %v4905 = vlog2.pop %v4839
    %v4906 = vmul.f32 %v4905, 0.6931472
    %v4907 = vlog2.pop %v4846
    %v4908 = vmul.f32 %v4907, 0.6931472
    %v4909 = vlog2.pop %v4853
    %v4910 = vmul.f32 %v4909, 0.6931472
    %v4911 = vlog2.pop %v4860
    %v4912 = vmul.f32 %v4911, 0.6931472
    %v4913 = vlog2.pop %v4867
    %v4914 = vmul.f32 %v4913, 0.6931472
    %v4915 = vlog2.pop %v4874
    %v4916 = vmul.f32 %v4915, 0.6931472
    %v4917 = vlog2.pop %v4881
    %v4918 = vmul.f32 %v4917, 0.6931472
    %v4919 = vlog2.pop %v4888
    %v4920 = vmul.f32 %v4919, 0.6931472
    %v4921 = vsub.f32 %v4729, %v4890
    %v4922 = vsub.f32 %v4730, %v4892
    %v4923 = vsub.f32 %v4731, %v4894
    %v4924 = vsub.f32 %v4732, %v4896
    %v4925 = vsub.f32 %v4733, %v4898
    %v4926 = vsub.f32 %v4734, %v4900
    %v4927 = vsub.f32 %v4735, %v4902
    %v4928 = vsub.f32 %v4736, %v4904
    %v4929 = vsub.f32 %v4737, %v4906
    %v4930 = vsub.f32 %v4738, %v4908
    %v4931 = vsub.f32 %v4739, %v4910
    %v4932 = vsub.f32 %v4740, %v4912
    %v4933 = vsub.f32 %v4741, %v4914
    %v4934 = vsub.f32 %v4742, %v4916
    %v4935 = vsub.f32 %v4743, %v4918
    %v4936 = vsub.f32 %v4744, %v4920
    %4937 = vst.msk [vmem:[%s18] sm:$0xff] %vm4616, %v4921
    %4938 = vst.msk [vmem:[%s18 + $0x8] sm:$0xff] %vm4616, %v4922
    %4939 = vst.msk [vmem:[%s18 + $0x10] sm:$0xff] %vm4616, %v4923
    %4940 = vst.msk [vmem:[%s18 + $0x18] sm:$0xff] %vm4616, %v4924
    %4941 = vst.msk [vmem:[%s18 + $0x20] sm:$0xff] %vm4616, %v4925
    %4942 = vst.msk [vmem:[%s18 + $0x28] sm:$0xff] %vm4616, %v4926
    %4943 = vst.msk [vmem:[%s18 + $0x30] sm:$0xff] %vm4616, %v4927
    %4944 = vst.msk [vmem:[%s18 + $0x38] sm:$0xff] %vm4616, %v4928
    %4945 = vst.msk [vmem:[%s18 + $0x40] sm:$0xff] %vm4616, %v4929
    %4946 = vst.msk [vmem:[%s18 + $0x48] sm:$0xff] %vm4616, %v4930
    %4947 = vst.msk [vmem:[%s18 + $0x50] sm:$0xff] %vm4616, %v4931
    %4948 = vst.msk [vmem:[%s18 + $0x58] sm:$0xff] %vm4616, %v4932
    %4949 = vst.msk [vmem:[%s18 + $0x60] sm:$0xff] %vm4616, %v4933
    %4950 = vst.msk [vmem:[%s18 + $0x68] sm:$0xff] %vm4616, %v4934
    %4951 = vst.msk [vmem:[%s18 + $0x70] sm:$0xff] %vm4616, %v4935
    %4952 = vst.msk [vmem:[%s18 + $0x78] sm:$0xff] %vm4616, %v4936
    // Predicated region
    $region142: #{lstm_tagger_forward.1} parent=1 // pred_check
      _
    $region143: #{lstm_tagger_forward.1} parent=1 // pred_check_branch
      %4954 = sbr.rel (0) target = $region145
    $region144: #{lstm_tagger_forward.1} parent=1 // pred_region
      _
    $region145: #{lstm_tagger_forward.1} parent=1 // pred_fallthru
      _
    // Predicated region
    $region146: #{lstm_tagger_forward.1} parent=1 // pred_check
      _
    $region147: #{lstm_tagger_forward.1} parent=1 // pred_check_branch
      %4956 = sbr.rel (0) target = $region149
    $region148: #{lstm_tagger_forward.1} parent=1 // pred_region
      _
    $region149: #{lstm_tagger_forward.1} parent=1 // pred_fallthru
      _
    %4957 = vsyncpa [#allocation8], 1
    %4958 = vsyncpa [#allocation10], 1
    %4959 = vsyncpa [#allocation13], 1
    %4960 = vsyncpa [#allocation16], 1
    %4961 = vsyncpa [#allocation19], 1
    %4962 = vsyncpa [#allocation22], 1

</llo_original>
